<compile_context>
chip_gen: v7x
topology: tpu7x:2x2x1
jax: 0.10.0
libtpu: 0.0.40
codegen_flags: <defaults>
</compile_context>

<pallas_src>
import jax
import jax.numpy as jnp
from jax.experimental import pallas as pl
from jax.experimental.pallas import tpu as pltpu


def _round_up(x, m):
    return (x + m - 1) // m * m


def lstm_autoencoder_kernel(emb_ref, wih_e_ref, whh_e_ref, b_e_ref,
                            wih_d_ref, whh_d_ref, b_d_ref,
                            wo_ref, bo_ref,
                            logits_ref,
                            ih_ref):
    """Encoder LSTM + decoder LSTM (fed the repeated encoder final hidden) + output projection.

    emb_ref:    (T, BB, E)   bf16, time-major          wih_e_ref: (E,  4*Hp) bf16
    whh_e_ref:  (Hp, 4*Hp)   bf16                      b_e_ref:   (1,  4*Hp) f32
    wih_d_ref:  (Hp, 4*Ep)   bf16                      whh_d_ref: (Ep, 4*Ep) bf16
    b_d_ref:    (1,  4*Ep)   f32
    wo_ref:     (Ep, V1p)    bf16                      bo_ref:    (1,  V1p)  f32
    logits_ref: (T, BB, V1p) f32 out
    ih_ref:     (T, BB, 4*Hp) f32 VMEM scratch (precomputed encoder input-to-hidden gates)

    Gate blocks use PyTorch order [i, f, g, o]; each gate block is zero-padded to Hp/Ep lanes so
    gate slices fall on 128-lane vreg boundaries. Padded hidden lanes provably stay 0 (zero
    weight rows/cols + zero bias => sigmoid(0)*tanh(0) = 0 contributions).
    """
    T, BB, E = emb_ref.shape
    Hp = whh_e_ref.shape[0]
    Ep = whh_d_ref.shape[0]
    V1p = wo_ref.shape[1]
    f32 = jnp.float32
    bf16 = jnp.bfloat16

    # ---- encoder input-to-hidden for ALL timesteps: one batched MXU call (off the serial path) --
    emb_flat = emb_ref[...].reshape(T * BB, E)                          # bf16 (T*BB, E)
    ih_ref[...] = (
        jnp.dot(emb_flat, wih_e_ref[...], preferred_element_type=f32)
        + b_e_ref[...]
    ).reshape(T, BB, 4 * Hp)

    # ---- encoder LSTM (fully unrolled; only the recurrent h @ W_hh matmul per step) ------------
    whh_e = whh_e_ref[...]                                              # bf16 (Hp, 4*Hp)
    h = jnp.zeros((BB, Hp), f32)
    c = jnp.zeros((BB, Hp), f32)
    for t in range(T):                                                  # static full unroll (T small, fixed)
        gates = ih_ref[t] + jnp.dot(h.astype(bf16), whh_e,
                                    preferred_element_type=f32)         # (BB, 4*Hp)
        i_g = jax.nn.sigmoid(gates[:, 0 * Hp:1 * Hp])                   # 128-lane aligned slices
        f_g = jax.nn.sigmoid(gates[:, 1 * Hp:2 * Hp])
        g_g = jnp.tanh(gates[:, 2 * Hp:3 * Hp])
        o_g = jax.nn.sigmoid(gates[:, 3 * Hp:4 * Hp])
        c = f_g * c + i_g * g_g
        h = o_g * jnp.tanh(c)

    # ---- decoder LSTM: input is the encoder final hidden, identical at every step --------------
    dec_in = h.astype(bf16)                                             # (BB, Hp)
    dec_gates_in = (jnp.dot(dec_in, wih_d_ref[...], preferred_element_type=f32)
                    + b_d_ref[...])                                     # hoisted loop-invariant term
    whh_d = whh_d_ref[...]                                              # bf16 (Ep, 4*Ep)
    h = jnp.zeros((BB, Ep), f32)
    c = jnp.zeros((BB, Ep), f32)
    hs = []
    for t in range(T):                                                  # static full unroll
        gates = dec_gates_in + jnp.dot(h.astype(bf16), whh_d,
                                       preferred_element_type=f32)      # (BB, 4*Ep)
        i_g = jax.nn.sigmoid(gates[:, 0 * Ep:1 * Ep])
        f_g = jax.nn.sigmoid(gates[:, 1 * Ep:2 * Ep])
        g_g = jnp.tanh(gates[:, 2 * Ep:3 * Ep])
        o_g = jax.nn.sigmoid(gates[:, 3 * Ep:4 * Ep])
        c = f_g * c + i_g * g_g
        h = o_g * jnp.tanh(c)
        hs.append(h)                                                    # keep f32 hidden state

    # ---- output projection: one bulk matmul over all timesteps + one lane-dense slab store -----
    hs_flat = jnp.concatenate(hs, axis=0).astype(bf16)                  # (T*BB, Ep), time-major
    logits = jnp.dot(hs_flat, wo_ref[...], preferred_element_type=f32) + bo_ref[...]
    logits_ref[...] = logits.reshape(T, BB, V1p)
    # TODO(synk): for large T / vocab, tile the logits over a T grid axis instead of keeping the
    # full (T, B, V1p) block resident in VMEM (matters on v7x's 64 MiB VMEM).


def pack_params_for_kernel(params):
    """Pad gate blocks / hidden dims to 128 lanes and cast matmul weights to bf16."""
    H = params["enc_whh"].shape[0]
    E = params["dec_whh"].shape[0]
    V1 = params["out_w"].shape[1]
    Hp = _round_up(H, 128)
    Ep = _round_up(E, 128)
    V1p = _round_up(V1, 128)
    bf16 = jnp.bfloat16

    def pad_gates(w, hid, hid_p):
        # (in, 4*hid) -> (in, 4*hid_p): each gate block [i,f,g,o] zero-padded to hid_p lanes.
        inp = w.shape[0]
        return jnp.pad(w.reshape(inp, 4, hid),
                       ((0, 0), (0, 0), (0, hid_p - hid))).reshape(inp, 4 * hid_p)

    def pad_rows(w, rows_p):
        return jnp.pad(w, ((0, rows_p - w.shape[0]), (0, 0)))

    return dict(
        enc_wih=pad_gates(params["enc_wih"], H, Hp).astype(bf16),                      # (E,  4Hp)
        enc_whh=pad_rows(pad_gates(params["enc_whh"], H, Hp), Hp).astype(bf16),        # (Hp, 4Hp)
        enc_b=pad_gates(params["enc_b"], H, Hp),                                       # (1,  4Hp) f32
        dec_wih=pad_rows(pad_gates(params["dec_wih"], E, Ep), Hp).astype(bf16),        # (Hp, 4Ep)
        dec_whh=pad_rows(pad_gates(params["dec_whh"], E, Ep), Ep).astype(bf16),        # (Ep, 4Ep)
        dec_b=pad_gates(params["dec_b"], E, Ep),                                       # (1,  4Ep) f32
        out_w=pad_rows(jnp.pad(params["out_w"], ((0, 0), (0, V1p - V1))), Ep).astype(bf16),  # (Ep, V1p)
        out_b=jnp.pad(params["out_b"], ((0, 0), (0, V1p - V1))),                       # (1,  V1p) f32
    )


def lstm_autoencoder_forward(x_tokens, params):
    """x_tokens: (B, T) int32 token ids. Returns logits (B, T, vocab_size+1) float32."""
    emb_table = params["embedding"]                    # (V+1, E), row 0 zero (padding_idx=0)
    B, T = x_tokens.shape
    E = emb_table.shape[1]
    V1 = params["out_w"].shape[1]

    packed = pack_params_for_kernel(params)
    Hp = packed["enc_whh"].shape[0]
    Ep = packed["dec_whh"].shape[0]
    V1p = packed["out_w"].shape[1]

    BB = 8                                             # sublane width: batch rows per grid step
    B_pad = _round_up(B, BB)

    # Pad batch with token 0 (padding_idx -> zero embedding row; padded rows are sliced off).
    # Gather directly time-major so no (T,B,E)-sized transpose is materialised.
    x_pad = jnp.pad(x_tokens, ((0, B_pad - B), (0, 0)))
    emb_tm = emb_table[x_pad.T].astype(jnp.bfloat16)   # (T, B_pad, E)

    logits_tm = pl.pallas_call(
        lstm_autoencoder_kernel,
        out_shape=jax.ShapeDtypeStruct((T, B_pad, V1p), jnp.float32),
        grid=(B_pad // BB,),
        in_specs=[
            pl.BlockSpec((T, BB, E),   lambda i: (0, i, 0)),   # embedded input (time-major)
            pl.BlockSpec((E, 4 * Hp),  lambda i: (0, 0)),      # enc W_ih^T (gate-padded)
            pl.BlockSpec((Hp, 4 * Hp), lambda i: (0, 0)),      # enc W_hh^T
            pl.BlockSpec((1, 4 * Hp),  lambda i: (0, 0)),      # enc bias (b_ih + b_hh)
            pl.BlockSpec((Hp, 4 * Ep), lambda i: (0, 0)),      # dec W_ih^T
            pl.BlockSpec((Ep, 4 * Ep), lambda i: (0, 0)),      # dec W_hh^T
            pl.BlockSpec((1, 4 * Ep),  lambda i: (0, 0)),      # dec bias
            pl.BlockSpec((Ep, V1p),    lambda i: (0, 0)),      # output W^T
            pl.BlockSpec((1, V1p),     lambda i: (0, 0)),      # output bias
        ],
        out_specs=pl.BlockSpec((T, BB, V1p), lambda i: (0, i, 0)),
        scratch_shapes=[pltpu.VMEM((T, BB, 4 * Hp), jnp.float32)],   # precomputed encoder ih gates
        compiler_params=pltpu.CompilerParams(
            dimension_semantics=("parallel",)),        # batch blocks independent -> megacore (v7x)
    )(emb_tm,
      packed["enc_wih"], packed["enc_whh"], packed["enc_b"],
      packed["dec_wih"], packed["dec_whh"], packed["dec_b"],
      packed["out_w"], packed["out_b"])

    # Strip batch/vocab padding and return batch-first (B, T, V+1); this slice+transpose touches a
    # few KiB only (the big transposes of the previous version are gone).
    return jnp.transpose(logits_tm[:, :B, :V1], (1, 0, 2))


def init_params(key, vocab_size, emb_dim, hidden_dim):
    """Deterministic synthetic parameters with the shapes implied by the PyTorch __init__."""
    V1 = vocab_size + 1
    ks = jax.random.split(key, 12)

    def rnd(k, shape, scale=0.1):
        return scale * jax.random.normal(k, shape, dtype=jnp.float32)

    emb = rnd(ks[0], (V1, emb_dim)).at[0].set(0.0)     # padding_idx=0 -> zero row
    params = dict(
        embedding=emb,
        # nn.LSTM(emb_dim, hidden_dim): weight_ih (4H, E), weight_hh (4H, H) -> stored transposed
        enc_wih=rnd(ks[1], (emb_dim, 4 * hidden_dim)),
        enc_whh=rnd(ks[2], (hidden_dim, 4 * hidden_dim)),
        enc_b=rnd(ks[3], (1, 4 * hidden_dim)) + rnd(ks[4], (1, 4 * hidden_dim)),   # b_ih + b_hh
        # nn.LSTM(hidden_dim, emb_dim)
        dec_wih=rnd(ks[5], (hidden_dim, 4 * emb_dim)),
        dec_whh=rnd(ks[6], (emb_dim, 4 * emb_dim)),
        dec_b=rnd(ks[7], (1, 4 * emb_dim)) + rnd(ks[8], (1, 4 * emb_dim)),         # b_ih + b_hh
        # nn.Linear(emb_dim, vocab_size + 1): weight (V1, E) -> stored transposed
        out_w=rnd(ks[9], (emb_dim, V1)),
        out_b=rnd(ks[10], (1, V1)),
    )
    return params


def reference_forward(x_tokens, params):
    """Pure-JAX f32 reference with identical semantics (sanity check)."""
    emb = params["embedding"][x_tokens]                # (B, T, E)
    B, T, _ = emb.shape

    def run_lstm(xs_btd, wih, whh, b, hid):
        def step(carry, x_t):
            h, c = carry
            gates = x_t @ wih + h @ whh + b[0]
            i, f, g, o = jnp.split(gates, 4, axis=-1)
            i, f, o = jax.nn.sigmoid(i), jax.nn.sigmoid(f), jax.nn.sigmoid(o)
            g = jnp.tanh(g)
            c = f * c + i * g
            h = o * jnp.tanh(c)
            return (h, c), h

        h0 = jnp.zeros((B, hid), jnp.float32)
        (h_T, _), hs = jax.lax.scan(step, (h0, h0), jnp.transpose(xs_btd, (1, 0, 2)))
        return h_T, jnp.transpose(hs, (1, 0, 2))

    H = params["enc_whh"].shape[0]
    E = params["dec_whh"].shape[0]
    h_enc, _ = run_lstm(emb, params["enc_wih"], params["enc_whh"], params["enc_b"], H)
    dec_in = jnp.broadcast_to(h_enc[:, None, :], (B, T, H))
    _, dec_out = run_lstm(dec_in, params["dec_wih"], params["dec_whh"], params["dec_b"], E)
    return dec_out @ params["out_w"] + params["out_b"][0]


if __name__ == "__main__":
    B, T = 2, 8
    emb_dim, hidden_dim, vocab_size = 64, 32, 31       # vocab_size = len(char2idx) (synthetic)

    key = jax.random.PRNGKey(0)
    pkey, xkey = jax.random.split(key)
    params = init_params(pkey, vocab_size, emb_dim, hidden_dim)
    x = jax.random.randint(xkey, (B, T), 0, vocab_size + 1, dtype=jnp.int32)

    out = lstm_autoencoder_forward(x, params)
    out = jax.block_until_ready(out)
    assert out.shape == (B, T, vocab_size + 1), out.shape

    ref = reference_forward(x, params)
    max_err = float(jnp.max(jnp.abs(out - ref)))
    # bf16 matmuls with f32 accumulation / f32 state -> small numerical delta vs the f32 reference.
    assert bool(jnp.allclose(out, ref, atol=2e-2, rtol=2e-2)), f"mismatch vs reference (max_err={max_err})"

    print("KERNEL_OK")
</pallas_src>

<mosaic_0001>
module attributes {stable_mosaic.version = 11 : i64} {
  func.func @lstm_autoencoder_kernel(%arg0: i32, %arg1: memref<8x8x64xbf16, #tpu.memory_space<vmem>>, %arg2: memref<64x512xbf16, #tpu.memory_space<vmem>>, %arg3: memref<128x512xbf16, #tpu.memory_space<vmem>>, %arg4: memref<1x512xf32, #tpu.memory_space<vmem>>, %arg5: memref<128x512xbf16, #tpu.memory_space<vmem>>, %arg6: memref<128x512xbf16, #tpu.memory_space<vmem>>, %arg7: memref<1x512xf32, #tpu.memory_space<vmem>>, %arg8: memref<128x128xbf16, #tpu.memory_space<vmem>>, %arg9: memref<1x128xf32, #tpu.memory_space<vmem>>, %arg10: memref<8x8x128xf32, #tpu.memory_space<vmem>>, %arg11: memref<8x8x512xf32, #tpu.memory_space<vmem>>) attributes {dimension_semantics = [#tpu.dimension_semantics<parallel>], iteration_bounds = array<i64: 1>, scalar_prefetch = 0 : i64, scratch_operands = 1 : i64, tpu.core_type = #tpu.core_type<tc>, window_params = [{transform_indices = @transform_0, window_bounds = array<i64: 8, 8, 64>}, {pipeline_mode = #tpu.pipeline_mode<synchronous>, transform_indices = @transform_1, window_bounds = array<i64: 64, 512>}, {pipeline_mode = #tpu.pipeline_mode<synchronous>, transform_indices = @transform_2, window_bounds = array<i64: 128, 512>}, {pipeline_mode = #tpu.pipeline_mode<synchronous>, transform_indices = @transform_3, window_bounds = array<i64: 1, 512>}, {pipeline_mode = #tpu.pipeline_mode<synchronous>, transform_indices = @transform_4, window_bounds = array<i64: 128, 512>}, {pipeline_mode = #tpu.pipeline_mode<synchronous>, transform_indices = @transform_5, window_bounds = array<i64: 128, 512>}, {pipeline_mode = #tpu.pipeline_mode<synchronous>, transform_indices = @transform_6, window_bounds = array<i64: 1, 512>}, {pipeline_mode = #tpu.pipeline_mode<synchronous>, transform_indices = @transform_7, window_bounds = array<i64: 128, 128>}, {pipeline_mode = #tpu.pipeline_mode<synchronous>, transform_indices = @transform_8, window_bounds = array<i64: 1, 128>}, {transform_indices = @transform_9, window_bounds = array<i64: 8, 8, 128>}]} {
    %c0 = arith.constant 0 : index
    %c0_0 = arith.constant 0 : index
    %c0_1 = arith.constant 0 : index
    %0 = vector.load %arg1[%c0, %c0_0, %c0_1] : memref<8x8x64xbf16, #tpu.memory_space<vmem>>, vector<8x8x64xbf16>
    %1 = vector.shape_cast %0 : vector<8x8x64xbf16> to vector<64x64xbf16>
    %c0_2 = arith.constant 0 : index
    %c0_3 = arith.constant 0 : index
    %2 = vector.load %arg2[%c0_2, %c0_3] : memref<64x512xbf16, #tpu.memory_space<vmem>>, vector<64x512xbf16>
    %cst = arith.constant dense<0.000000e+00> : vector<64x512xf32>
    %3 = tpu.matmul %1, %2, %cst {dimension_numbers = #tpu.dot_dimension_numbers<[1], [0], [0], [1], [0, 0, 1, 1], [], []>} : vector<64x64xbf16>, vector<64x512xbf16>, vector<64x512xf32> -> vector<64x512xf32>
    %c0_4 = arith.constant 0 : index
    %c0_5 = arith.constant 0 : index
    %4 = vector.load %arg4[%c0_4, %c0_5] : memref<1x512xf32, #tpu.memory_space<vmem>>, vector<1x512xf32>
    %5 = vector.broadcast %4 : vector<1x512xf32> to vector<64x512xf32>
    %6 = arith.addf %3, %5 : vector<64x512xf32>
    %7 = vector.shape_cast %6 : vector<64x512xf32> to vector<8x8x512xf32>
    %c0_6 = arith.constant 0 : index
    %c0_7 = arith.constant 0 : index
    %c0_8 = arith.constant 0 : index
    %8 = vector.load %arg11[%c0_6, %c0_7, %c0_8] : memref<8x8x512xf32, #tpu.memory_space<vmem>>, vector<8x8x512xf32>
    tpu.vector_store %arg11[%c0_6, %c0_7, %c0_8], %7 {strides = array<i32>} : memref<8x8x512xf32, #tpu.memory_space<vmem>>, vector<8x8x512xf32>,
    %c0_9 = arith.constant 0 : index
    %c0_10 = arith.constant 0 : index
    %9 = vector.load %arg3[%c0_9, %c0_10] : memref<128x512xbf16, #tpu.memory_space<vmem>>, vector<128x512xbf16>
    %cst_11 = arith.constant 0.000000e+00 : f32
    %10 = vector.broadcast %cst_11 : f32 to vector<8x128xf32>
    %cst_12 = arith.constant 0.000000e+00 : f32
    %11 = vector.broadcast %cst_12 : f32 to vector<8x128xf32>
    %c0_13 = arith.constant 0 : index
    %c0_14 = arith.constant 0 : index
    %c0_15 = arith.constant 0 : index
    %12 = vector.load %arg11[%c0_13, %c0_14, %c0_15] : memref<8x8x512xf32, #tpu.memory_space<vmem>>, vector<1x8x512xf32>
    %13 = vector.shape_cast %12 : vector<1x8x512xf32> to vector<8x512xf32>
    %14 = arith.truncf %10 : vector<8x128xf32> to vector<8x128xbf16>
    %cst_16 = arith.constant dense<0.000000e+00> : vector<8x512xf32>
    %15 = tpu.matmul %14, %9, %cst_16 {dimension_numbers = #tpu.dot_dimension_numbers<[1], [0], [0], [1], [0, 0, 1, 1], [], []>} : vector<8x128xbf16>, vector<128x512xbf16>, vector<8x512xf32> -> vector<8x512xf32>
    %16 = arith.addf %13, %15 : vector<8x512xf32>
    %17 = vector.extract_strided_slice %16 {offsets = [0, 0], sizes = [8, 128], strides = [1, 1]} : vector<8x512xf32> to vector<8x128xf32>
    %18 = arith.negf %17 : vector<8x128xf32>
    %19 = math.exp %18 : vector<8x128xf32>
    %cst_17 = arith.constant 1.000000e+00 : f32
    %20 = vector.broadcast %cst_17 : f32 to vector<8x128xf32>
    %21 = arith.addf %20, %19 : vector<8x128xf32>
    %22 = arith.divf %20, %21 : vector<8x128xf32>
    %23 = vector.extract_strided_slice %16 {offsets = [0, 128], sizes = [8, 128], strides = [1, 1]} : vector<8x512xf32> to vector<8x128xf32>
    %24 = arith.negf %23 : vector<8x128xf32>
    %25 = math.exp %24 : vector<8x128xf32>
    %cst_18 = arith.constant 1.000000e+00 : f32
    %26 = vector.broadcast %cst_18 : f32 to vector<8x128xf32>
    %27 = arith.addf %26, %25 : vector<8x128xf32>
    %28 = arith.divf %26, %27 : vector<8x128xf32>
    %29 = vector.extract_strided_slice %16 {offsets = [0, 256], sizes = [8, 128], strides = [1, 1]} : vector<8x512xf32> to vector<8x128xf32>
    %30 = math.tanh %29 : vector<8x128xf32>
    %31 = vector.extract_strided_slice %16 {offsets = [0, 384], sizes = [8, 128], strides = [1, 1]} : vector<8x512xf32> to vector<8x128xf32>
    %32 = arith.negf %31 : vector<8x128xf32>
    %33 = math.exp %32 : vector<8x128xf32>
    %cst_19 = arith.constant 1.000000e+00 : f32
    %34 = vector.broadcast %cst_19 : f32 to vector<8x128xf32>
    %35 = arith.addf %34, %33 : vector<8x128xf32>
    %36 = arith.divf %34, %35 : vector<8x128xf32>
    %37 = arith.mulf %28, %11 : vector<8x128xf32>
    %38 = arith.mulf %22, %30 : vector<8x128xf32>
    %39 = arith.addf %37, %38 : vector<8x128xf32>
    %40 = math.tanh %39 : vector<8x128xf32>
    %41 = arith.mulf %36, %40 : vector<8x128xf32>
    %c1 = arith.constant 1 : index
    %c0_20 = arith.constant 0 : index
    %c0_21 = arith.constant 0 : index
    %42 = vector.load %arg11[%c1, %c0_20, %c0_21] : memref<8x8x512xf32, #tpu.memory_space<vmem>>, vector<1x8x512xf32>
    %43 = vector.shape_cast %42 : vector<1x8x512xf32> to vector<8x512xf32>
    %44 = arith.truncf %41 : vector<8x128xf32> to vector<8x128xbf16>
    %cst_22 = arith.constant dense<0.000000e+00> : vector<8x512xf32>
    %45 = tpu.matmul %44, %9, %cst_22 {dimension_numbers = #tpu.dot_dimension_numbers<[1], [0], [0], [1], [0, 0, 1, 1], [], []>} : vector<8x128xbf16>, vector<128x512xbf16>, vector<8x512xf32> -> vector<8x512xf32>
    %46 = arith.addf %43, %45 : vector<8x512xf32>
    %47 = vector.extract_strided_slice %46 {offsets = [0, 0], sizes = [8, 128], strides = [1, 1]} : vector<8x512xf32> to vector<8x128xf32>
    %48 = arith.negf %47 : vector<8x128xf32>
    %49 = math.exp %48 : vector<8x128xf32>
    %cst_23 = arith.constant 1.000000e+00 : f32
    %50 = vector.broadcast %cst_23 : f32 to vector<8x128xf32>
    %51 = arith.addf %50, %49 : vector<8x128xf32>
    %52 = arith.divf %50, %51 : vector<8x128xf32>
    %53 = vector.extract_strided_slice %46 {offsets = [0, 128], sizes = [8, 128], strides = [1, 1]} : vector<8x512xf32> to vector<8x128xf32>
    %54 = arith.negf %53 : vector<8x128xf32>
    %55 = math.exp %54 : vector<8x128xf32>
    %cst_24 = arith.constant 1.000000e+00 : f32
    %56 = vector.broadcast %cst_24 : f32 to vector<8x128xf32>
    %57 = arith.addf %56, %55 : vector<8x128xf32>
    %58 = arith.divf %56, %57 : vector<8x128xf32>
    %59 = vector.extract_strided_slice %46 {offsets = [0, 256], sizes = [8, 128], strides = [1, 1]} : vector<8x512xf32> to vector<8x128xf32>
    %60 = math.tanh %59 : vector<8x128xf32>
    %61 = vector.extract_strided_slice %46 {offsets = [0, 384], sizes = [8, 128], strides = [1, 1]} : vector<8x512xf32> to vector<8x128xf32>
    %62 = arith.negf %61 : vector<8x128xf32>
    %63 = math.exp %62 : vector<8x128xf32>
    %cst_25 = arith.constant 1.000000e+00 : f32
    %64 = vector.broadcast %cst_25 : f32 to vector<8x128xf32>
    %65 = arith.addf %64, %63 : vector<8x128xf32>
    %66 = arith.divf %64, %65 : vector<8x128xf32>
    %67 = arith.mulf %58, %39 : vector<8x128xf32>
    %68 = arith.mulf %52, %60 : vector<8x128xf32>
    %69 = arith.addf %67, %68 : vector<8x128xf32>
    %70 = math.tanh %69 : vector<8x128xf32>
    %71 = arith.mulf %66, %70 : vector<8x128xf32>
    %c2 = arith.constant 2 : index
    %c0_26 = arith.constant 0 : index
    %c0_27 = arith.constant 0 : index
    %72 = vector.load %arg11[%c2, %c0_26, %c0_27] : memref<8x8x512xf32, #tpu.memory_space<vmem>>, vector<1x8x512xf32>
    %73 = vector.shape_cast %72 : vector<1x8x512xf32> to vector<8x512xf32>
    %74 = arith.truncf %71 : vector<8x128xf32> to vector<8x128xbf16>
    %cst_28 = arith.constant dense<0.000000e+00> : vector<8x512xf32>
    %75 = tpu.matmul %74, %9, %cst_28 {dimension_numbers = #tpu.dot_dimension_numbers<[1], [0], [0], [1], [0, 0, 1, 1], [], []>} : vector<8x128xbf16>, vector<128x512xbf16>, vector<8x512xf32> -> vector<8x512xf32>
    %76 = arith.addf %73, %75 : vector<8x512xf32>
    %77 = vector.extract_strided_slice %76 {offsets = [0, 0], sizes = [8, 128], strides = [1, 1]} : vector<8x512xf32> to vector<8x128xf32>
    %78 = arith.negf %77 : vector<8x128xf32>
    %79 = math.exp %78 : vector<8x128xf32>
    %cst_29 = arith.constant 1.000000e+00 : f32
    %80 = vector.broadcast %cst_29 : f32 to vector<8x128xf32>
    %81 = arith.addf %80, %79 : vector<8x128xf32>
    %82 = arith.divf %80, %81 : vector<8x128xf32>
    %83 = vector.extract_strided_slice %76 {offsets = [0, 128], sizes = [8, 128], strides = [1, 1]} : vector<8x512xf32> to vector<8x128xf32>
    %84 = arith.negf %83 : vector<8x128xf32>
    %85 = math.exp %84 : vector<8x128xf32>
    %cst_30 = arith.constant 1.000000e+00 : f32
    %86 = vector.broadcast %cst_30 : f32 to vector<8x128xf32>
    %87 = arith.addf %86, %85 : vector<8x128xf32>
    %88 = arith.divf %86, %87 : vector<8x128xf32>
    %89 = vector.extract_strided_slice %76 {offsets = [0, 256], sizes = [8, 128], strides = [1, 1]} : vector<8x512xf32> to vector<8x128xf32>
    %90 = math.tanh %89 : vector<8x128xf32>
    %91 = vector.extract_strided_slice %76 {offsets = [0, 384], sizes = [8, 128], strides = [1, 1]} : vector<8x512xf32> to vector<8x128xf32>
    %92 = arith.negf %91 : vector<8x128xf32>
    %93 = math.exp %92 : vector<8x128xf32>
    %cst_31 = arith.constant 1.000000e+00 : f32
    %94 = vector.broadcast %cst_31 : f32 to vector<8x128xf32>
    %95 = arith.addf %94, %93 : vector<8x128xf32>
    %96 = arith.divf %94, %95 : vector<8x128xf32>
    %97 = arith.mulf %88, %69 : vector<8x128xf32>
    %98 = arith.mulf %82, %90 : vector<8x128xf32>
    %99 = arith.addf %97, %98 : vector<8x128xf32>
    %100 = math.tanh %99 : vector<8x128xf32>
    %101 = arith.mulf %96, %100 : vector<8x128xf32>
    %c3 = arith.constant 3 : index
    %c0_32 = arith.constant 0 : index
    %c0_33 = arith.constant 0 : index
    %102 = vector.load %arg11[%c3, %c0_32, %c0_33] : memref<8x8x512xf32, #tpu.memory_space<vmem>>, vector<1x8x512xf32>
    %103 = vector.shape_cast %102 : vector<1x8x512xf32> to vector<8x512xf32>
    %104 = arith.truncf %101 : vector<8x128xf32> to vector<8x128xbf16>
    %cst_34 = arith.constant dense<0.000000e+00> : vector<8x512xf32>
    %105 = tpu.matmul %104, %9, %cst_34 {dimension_numbers = #tpu.dot_dimension_numbers<[1], [0], [0], [1], [0, 0, 1, 1], [], []>} : vector<8x128xbf16>, vector<128x512xbf16>, vector<8x512xf32> -> vector<8x512xf32>
    %106 = arith.addf %103, %105 : vector<8x512xf32>
    %107 = vector.extract_strided_slice %106 {offsets = [0, 0], sizes = [8, 128], strides = [1, 1]} : vector<8x512xf32> to vector<8x128xf32>
    %108 = arith.negf %107 : vector<8x128xf32>
    %109 = math.exp %108 : vector<8x128xf32>
    %cst_35 = arith.constant 1.000000e+00 : f32
    %110 = vector.broadcast %cst_35 : f32 to vector<8x128xf32>
    %111 = arith.addf %110, %109 : vector<8x128xf32>
    %112 = arith.divf %110, %111 : vector<8x128xf32>
    %113 = vector.extract_strided_slice %106 {offsets = [0, 128], sizes = [8, 128], strides = [1, 1]} : vector<8x512xf32> to vector<8x128xf32>
    %114 = arith.negf %113 : vector<8x128xf32>
    %115 = math.exp %114 : vector<8x128xf32>
    %cst_36 = arith.constant 1.000000e+00 : f32
    %116 = vector.broadcast %cst_36 : f32 to vector<8x128xf32>
    %117 = arith.addf %116, %115 : vector<8x128xf32>
    %118 = arith.divf %116, %117 : vector<8x128xf32>
    %119 = vector.extract_strided_slice %106 {offsets = [0, 256], sizes = [8, 128], strides = [1, 1]} : vector<8x512xf32> to vector<8x128xf32>
    %120 = math.tanh %119 : vector<8x128xf32>
    %121 = vector.extract_strided_slice %106 {offsets = [0, 384], sizes = [8, 128], strides = [1, 1]} : vector<8x512xf32> to vector<8x128xf32>
    %122 = arith.negf %121 : vector<8x128xf32>
    %123 = math.exp %122 : vector<8x128xf32>
    %cst_37 = arith.constant 1.000000e+00 : f32
    %124 = vector.broadcast %cst_37 : f32 to vector<8x128xf32>
    %125 = arith.addf %124, %123 : vector<8x128xf32>
    %126 = arith.divf %124, %125 : vector<8x128xf32>
    %127 = arith.mulf %118, %99 : vector<8x128xf32>
    %128 = arith.mulf %112, %120 : vector<8x128xf32>
    %129 = arith.addf %127, %128 : vector<8x128xf32>
    %130 = math.tanh %129 : vector<8x128xf32>
    %131 = arith.mulf %126, %130 : vector<8x128xf32>
    %c4 = arith.constant 4 : index
    %c0_38 = arith.constant 0 : index
    %c0_39 = arith.constant 0 : index
    %132 = vector.load %arg11[%c4, %c0_38, %c0_39] : memref<8x8x512xf32, #tpu.memory_space<vmem>>, vector<1x8x512xf32>
    %133 = vector.shape_cast %132 : vector<1x8x512xf32> to vector<8x512xf32>
    %134 = arith.truncf %131 : vector<8x128xf32> to vector<8x128xbf16>
    %cst_40 = arith.constant dense<0.000000e+00> : vector<8x512xf32>
    %135 = tpu.matmul %134, %9, %cst_40 {dimension_numbers = #tpu.dot_dimension_numbers<[1], [0], [0], [1], [0, 0, 1, 1], [], []>} : vector<8x128xbf16>, vector<128x512xbf16>, vector<8x512xf32> -> vector<8x512xf32>
    %136 = arith.addf %133, %135 : vector<8x512xf32>
    %137 = vector.extract_strided_slice %136 {offsets = [0, 0], sizes = [8, 128], strides = [1, 1]} : vector<8x512xf32> to vector<8x128xf32>
    %138 = arith.negf %137 : vector<8x128xf32>
    %139 = math.exp %138 : vector<8x128xf32>
    %cst_41 = arith.constant 1.000000e+00 : f32
    %140 = vector.broadcast %cst_41 : f32 to vector<8x128xf32>
    %141 = arith.addf %140, %139 : vector<8x128xf32>
    %142 = arith.divf %140, %141 : vector<8x128xf32>
    %143 = vector.extract_strided_slice %136 {offsets = [0, 128], sizes = [8, 128], strides = [1, 1]} : vector<8x512xf32> to vector<8x128xf32>
    %144 = arith.negf %143 : vector<8x128xf32>
    %145 = math.exp %144 : vector<8x128xf32>
    %cst_42 = arith.constant 1.000000e+00 : f32
    %146 = vector.broadcast %cst_42 : f32 to vector<8x128xf32>
    %147 = arith.addf %146, %145 : vector<8x128xf32>
    %148 = arith.divf %146, %147 : vector<8x128xf32>
    %149 = vector.extract_strided_slice %136 {offsets = [0, 256], sizes = [8, 128], strides = [1, 1]} : vector<8x512xf32> to vector<8x128xf32>
    %150 = math.tanh %149 : vector<8x128xf32>
    %151 = vector.extract_strided_slice %136 {offsets = [0, 384], sizes = [8, 128], strides = [1, 1]} : vector<8x512xf32> to vector<8x128xf32>
    %152 = arith.negf %151 : vector<8x128xf32>
    %153 = math.exp %152 : vector<8x128xf32>
    %cst_43 = arith.constant 1.000000e+00 : f32
    %154 = vector.broadcast %cst_43 : f32 to vector<8x128xf32>
    %155 = arith.addf %154, %153 : vector<8x128xf32>
    %156 = arith.divf %154, %155 : vector<8x128xf32>
    %157 = arith.mulf %148, %129 : vector<8x128xf32>
    %158 = arith.mulf %142, %150 : vector<8x128xf32>
    %159 = arith.addf %157, %158 : vector<8x128xf32>
    %160 = math.tanh %159 : vector<8x128xf32>
    %161 = arith.mulf %156, %160 : vector<8x128xf32>
    %c5 = arith.constant 5 : index
    %c0_44 = arith.constant 0 : index
    %c0_45 = arith.constant 0 : index
    %162 = vector.load %arg11[%c5, %c0_44, %c0_45] : memref<8x8x512xf32, #tpu.memory_space<vmem>>, vector<1x8x512xf32>
    %163 = vector.shape_cast %162 : vector<1x8x512xf32> to vector<8x512xf32>
    %164 = arith.truncf %161 : vector<8x128xf32> to vector<8x128xbf16>
    %cst_46 = arith.constant dense<0.000000e+00> : vector<8x512xf32>
    %165 = tpu.matmul %164, %9, %cst_46 {dimension_numbers = #tpu.dot_dimension_numbers<[1], [0], [0], [1], [0, 0, 1, 1], [], []>} : vector<8x128xbf16>, vector<128x512xbf16>, vector<8x512xf32> -> vector<8x512xf32>
    %166 = arith.addf %163, %165 : vector<8x512xf32>
    %167 = vector.extract_strided_slice %166 {offsets = [0, 0], sizes = [8, 128], strides = [1, 1]} : vector<8x512xf32> to vector<8x128xf32>
    %168 = arith.negf %167 : vector<8x128xf32>
    %169 = math.exp %168 : vector<8x128xf32>
    %cst_47 = arith.constant 1.000000e+00 : f32
    %170 = vector.broadcast %cst_47 : f32 to vector<8x128xf32>
    %171 = arith.addf %170, %169 : vector<8x128xf32>
    %172 = arith.divf %170, %171 : vector<8x128xf32>
    %173 = vector.extract_strided_slice %166 {offsets = [0, 128], sizes = [8, 128], strides = [1, 1]} : vector<8x512xf32> to vector<8x128xf32>
    %174 = arith.negf %173 : vector<8x128xf32>
    %175 = math.exp %174 : vector<8x128xf32>
    %cst_48 = arith.constant 1.000000e+00 : f32
    %176 = vector.broadcast %cst_48 : f32 to vector<8x128xf32>
    %177 = arith.addf %176, %175 : vector<8x128xf32>
    %178 = arith.divf %176, %177 : vector<8x128xf32>
    %179 = vector.extract_strided_slice %166 {offsets = [0, 256], sizes = [8, 128], strides = [1, 1]} : vector<8x512xf32> to vector<8x128xf32>
    %180 = math.tanh %179 : vector<8x128xf32>
    %181 = vector.extract_strided_slice %166 {offsets = [0, 384], sizes = [8, 128], strides = [1, 1]} : vector<8x512xf32> to vector<8x128xf32>
    %182 = arith.negf %181 : vector<8x128xf32>
    %183 = math.exp %182 : vector<8x128xf32>
    %cst_49 = arith.constant 1.000000e+00 : f32
    %184 = vector.broadcast %cst_49 : f32 to vector<8x128xf32>
    %185 = arith.addf %184, %183 : vector<8x128xf32>
    %186 = arith.divf %184, %185 : vector<8x128xf32>
    %187 = arith.mulf %178, %159 : vector<8x128xf32>
    %188 = arith.mulf %172, %180 : vector<8x128xf32>
    %189 = arith.addf %187, %188 : vector<8x128xf32>
    %190 = math.tanh %189 : vector<8x128xf32>
    %191 = arith.mulf %186, %190 : vector<8x128xf32>
    %c6 = arith.constant 6 : index
    %c0_50 = arith.constant 0 : index
    %c0_51 = arith.constant 0 : index
    %192 = vector.load %arg11[%c6, %c0_50, %c0_51] : memref<8x8x512xf32, #tpu.memory_space<vmem>>, vector<1x8x512xf32>
    %193 = vector.shape_cast %192 : vector<1x8x512xf32> to vector<8x512xf32>
    %194 = arith.truncf %191 : vector<8x128xf32> to vector<8x128xbf16>
    %cst_52 = arith.constant dense<0.000000e+00> : vector<8x512xf32>
    %195 = tpu.matmul %194, %9, %cst_52 {dimension_numbers = #tpu.dot_dimension_numbers<[1], [0], [0], [1], [0, 0, 1, 1], [], []>} : vector<8x128xbf16>, vector<128x512xbf16>, vector<8x512xf32> -> vector<8x512xf32>
    %196 = arith.addf %193, %195 : vector<8x512xf32>
    %197 = vector.extract_strided_slice %196 {offsets = [0, 0], sizes = [8, 128], strides = [1, 1]} : vector<8x512xf32> to vector<8x128xf32>
    %198 = arith.negf %197 : vector<8x128xf32>
    %199 = math.exp %198 : vector<8x128xf32>
    %cst_53 = arith.constant 1.000000e+00 : f32
    %200 = vector.broadcast %cst_53 : f32 to vector<8x128xf32>
    %201 = arith.addf %200, %199 : vector<8x128xf32>
    %202 = arith.divf %200, %201 : vector<8x128xf32>
    %203 = vector.extract_strided_slice %196 {offsets = [0, 128], sizes = [8, 128], strides = [1, 1]} : vector<8x512xf32> to vector<8x128xf32>
    %204 = arith.negf %203 : vector<8x128xf32>
    %205 = math.exp %204 : vector<8x128xf32>
    %cst_54 = arith.constant 1.000000e+00 : f32
    %206 = vector.broadcast %cst_54 : f32 to vector<8x128xf32>
    %207 = arith.addf %206, %205 : vector<8x128xf32>
    %208 = arith.divf %206, %207 : vector<8x128xf32>
    %209 = vector.extract_strided_slice %196 {offsets = [0, 256], sizes = [8, 128], strides = [1, 1]} : vector<8x512xf32> to vector<8x128xf32>
    %210 = math.tanh %209 : vector<8x128xf32>
    %211 = vector.extract_strided_slice %196 {offsets = [0, 384], sizes = [8, 128], strides = [1, 1]} : vector<8x512xf32> to vector<8x128xf32>
    %212 = arith.negf %211 : vector<8x128xf32>
    %213 = math.exp %212 : vector<8x128xf32>
    %cst_55 = arith.constant 1.000000e+00 : f32
    %214 = vector.broadcast %cst_55 : f32 to vector<8x128xf32>
    %215 = arith.addf %214, %213 : vector<8x128xf32>
    %216 = arith.divf %214, %215 : vector<8x128xf32>
    %217 = arith.mulf %208, %189 : vector<8x128xf32>
    %218 = arith.mulf %202, %210 : vector<8x128xf32>
    %219 = arith.addf %217, %218 : vector<8x128xf32>
    %220 = math.tanh %219 : vector<8x128xf32>
    %221 = arith.mulf %216, %220 : vector<8x128xf32>
    %c7 = arith.constant 7 : index
    %c0_56 = arith.constant 0 : index
    %c0_57 = arith.constant 0 : index
    %222 = vector.load %arg11[%c7, %c0_56, %c0_57] : memref<8x8x512xf32, #tpu.memory_space<vmem>>, vector<1x8x512xf32>
    %223 = vector.shape_cast %222 : vector<1x8x512xf32> to vector<8x512xf32>
    %224 = arith.truncf %221 : vector<8x128xf32> to vector<8x128xbf16>
    %cst_58 = arith.constant dense<0.000000e+00> : vector<8x512xf32>
    %225 = tpu.matmul %224, %9, %cst_58 {dimension_numbers = #tpu.dot_dimension_numbers<[1], [0], [0], [1], [0, 0, 1, 1], [], []>} : vector<8x128xbf16>, vector<128x512xbf16>, vector<8x512xf32> -> vector<8x512xf32>
    %226 = arith.addf %223, %225 : vector<8x512xf32>
    %227 = vector.extract_strided_slice %226 {offsets = [0, 0], sizes = [8, 128], strides = [1, 1]} : vector<8x512xf32> to vector<8x128xf32>
    %228 = arith.negf %227 : vector<8x128xf32>
    %229 = math.exp %228 : vector<8x128xf32>
    %cst_59 = arith.constant 1.000000e+00 : f32
    %230 = vector.broadcast %cst_59 : f32 to vector<8x128xf32>
    %231 = arith.addf %230, %229 : vector<8x128xf32>
    %232 = arith.divf %230, %231 : vector<8x128xf32>
    %233 = vector.extract_strided_slice %226 {offsets = [0, 128], sizes = [8, 128], strides = [1, 1]} : vector<8x512xf32> to vector<8x128xf32>
    %234 = arith.negf %233 : vector<8x128xf32>
    %235 = math.exp %234 : vector<8x128xf32>
    %cst_60 = arith.constant 1.000000e+00 : f32
    %236 = vector.broadcast %cst_60 : f32 to vector<8x128xf32>
    %237 = arith.addf %236, %235 : vector<8x128xf32>
    %238 = arith.divf %236, %237 : vector<8x128xf32>
    %239 = vector.extract_strided_slice %226 {offsets = [0, 256], sizes = [8, 128], strides = [1, 1]} : vector<8x512xf32> to vector<8x128xf32>
    %240 = math.tanh %239 : vector<8x128xf32>
    %241 = vector.extract_strided_slice %226 {offsets = [0, 384], sizes = [8, 128], strides = [1, 1]} : vector<8x512xf32> to vector<8x128xf32>
    %242 = arith.negf %241 : vector<8x128xf32>
    %243 = math.exp %242 : vector<8x128xf32>
    %cst_61 = arith.constant 1.000000e+00 : f32
    %244 = vector.broadcast %cst_61 : f32 to vector<8x128xf32>
    %245 = arith.addf %244, %243 : vector<8x128xf32>
    %246 = arith.divf %244, %245 : vector<8x128xf32>
    %247 = arith.mulf %238, %219 : vector<8x128xf32>
    %248 = arith.mulf %232, %240 : vector<8x128xf32>
    %249 = arith.addf %247, %248 : vector<8x128xf32>
    %250 = math.tanh %249 : vector<8x128xf32>
    %251 = arith.mulf %246, %250 : vector<8x128xf32>
    %252 = arith.truncf %251 : vector<8x128xf32> to vector<8x128xbf16>
    %c0_62 = arith.constant 0 : index
    %c0_63 = arith.constant 0 : index
    %253 = vector.load %arg5[%c0_62, %c0_63] : memref<128x512xbf16, #tpu.memory_space<vmem>>, vector<128x512xbf16>
    %cst_64 = arith.constant dense<0.000000e+00> : vector<8x512xf32>
    %254 = tpu.matmul %252, %253, %cst_64 {dimension_numbers = #tpu.dot_dimension_numbers<[1], [0], [0], [1], [0, 0, 1, 1], [], []>} : vector<8x128xbf16>, vector<128x512xbf16>, vector<8x512xf32> -> vector<8x512xf32>
    %c0_65 = arith.constant 0 : index
    %c0_66 = arith.constant 0 : index
    %255 = vector.load %arg7[%c0_65, %c0_66] : memref<1x512xf32, #tpu.memory_space<vmem>>, vector<1x512xf32>
    %256 = vector.broadcast %255 : vector<1x512xf32> to vector<8x512xf32>
    %257 = arith.addf %254, %256 : vector<8x512xf32>
    %c0_67 = arith.constant 0 : index
    %c0_68 = arith.constant 0 : index
    %258 = vector.load %arg6[%c0_67, %c0_68] : memref<128x512xbf16, #tpu.memory_space<vmem>>, vector<128x512xbf16>
    %cst_69 = arith.constant 0.000000e+00 : f32
    %259 = vector.broadcast %cst_69 : f32 to vector<8x128xf32>
    %cst_70 = arith.constant 0.000000e+00 : f32
    %260 = vector.broadcast %cst_70 : f32 to vector<8x128xf32>
    %261 = arith.truncf %259 : vector<8x128xf32> to vector<8x128xbf16>
    %cst_71 = arith.constant dense<0.000000e+00> : vector<8x512xf32>
    %262 = tpu.matmul %261, %258, %cst_71 {dimension_numbers = #tpu.dot_dimension_numbers<[1], [0], [0], [1], [0, 0, 1, 1], [], []>} : vector<8x128xbf16>, vector<128x512xbf16>, vector<8x512xf32> -> vector<8x512xf32>
    %263 = arith.addf %257, %262 : vector<8x512xf32>
    %264 = vector.extract_strided_slice %263 {offsets = [0, 0], sizes = [8, 128], strides = [1, 1]} : vector<8x512xf32> to vector<8x128xf32>
    %265 = arith.negf %264 : vector<8x128xf32>
    %266 = math.exp %265 : vector<8x128xf32>
    %cst_72 = arith.constant 1.000000e+00 : f32
    %267 = vector.broadcast %cst_72 : f32 to vector<8x128xf32>
    %268 = arith.addf %267, %266 : vector<8x128xf32>
    %269 = arith.divf %267, %268 : vector<8x128xf32>
    %270 = vector.extract_strided_slice %263 {offsets = [0, 128], sizes = [8, 128], strides = [1, 1]} : vector<8x512xf32> to vector<8x128xf32>
    %271 = arith.negf %270 : vector<8x128xf32>
    %272 = math.exp %271 : vector<8x128xf32>
    %cst_73 = arith.constant 1.000000e+00 : f32
    %273 = vector.broadcast %cst_73 : f32 to vector<8x128xf32>
    %274 = arith.addf %273, %272 : vector<8x128xf32>
    %275 = arith.divf %273, %274 : vector<8x128xf32>
    %276 = vector.extract_strided_slice %263 {offsets = [0, 256], sizes = [8, 128], strides = [1, 1]} : vector<8x512xf32> to vector<8x128xf32>
    %277 = math.tanh %276 : vector<8x128xf32>
    %278 = vector.extract_strided_slice %263 {offsets = [0, 384], sizes = [8, 128], strides = [1, 1]} : vector<8x512xf32> to vector<8x128xf32>
    %279 = arith.negf %278 : vector<8x128xf32>
    %280 = math.exp %279 : vector<8x128xf32>
    %cst_74 = arith.constant 1.000000e+00 : f32
    %281 = vector.broadcast %cst_74 : f32 to vector<8x128xf32>
    %282 = arith.addf %281, %280 : vector<8x128xf32>
    %283 = arith.divf %281, %282 : vector<8x128xf32>
    %284 = arith.mulf %275, %260 : vector<8x128xf32>
    %285 = arith.mulf %269, %277 : vector<8x128xf32>
    %286 = arith.addf %284, %285 : vector<8x128xf32>
    %287 = math.tanh %286 : vector<8x128xf32>
    %288 = arith.mulf %283, %287 : vector<8x128xf32>
    %289 = arith.truncf %288 : vector<8x128xf32> to vector<8x128xbf16>
    %cst_75 = arith.constant dense<0.000000e+00> : vector<8x512xf32>
    %290 = tpu.matmul %289, %258, %cst_75 {dimension_numbers = #tpu.dot_dimension_numbers<[1], [0], [0], [1], [0, 0, 1, 1], [], []>} : vector<8x128xbf16>, vector<128x512xbf16>, vector<8x512xf32> -> vector<8x512xf32>
    %291 = arith.addf %257, %290 : vector<8x512xf32>
    %292 = vector.extract_strided_slice %291 {offsets = [0, 0], sizes = [8, 128], strides = [1, 1]} : vector<8x512xf32> to vector<8x128xf32>
    %293 = arith.negf %292 : vector<8x128xf32>
    %294 = math.exp %293 : vector<8x128xf32>
    %cst_76 = arith.constant 1.000000e+00 : f32
    %295 = vector.broadcast %cst_76 : f32 to vector<8x128xf32>
    %296 = arith.addf %295, %294 : vector<8x128xf32>
    %297 = arith.divf %295, %296 : vector<8x128xf32>
    %298 = vector.extract_strided_slice %291 {offsets = [0, 128], sizes = [8, 128], strides = [1, 1]} : vector<8x512xf32> to vector<8x128xf32>
    %299 = arith.negf %298 : vector<8x128xf32>
    %300 = math.exp %299 : vector<8x128xf32>
    %cst_77 = arith.constant 1.000000e+00 : f32
    %301 = vector.broadcast %cst_77 : f32 to vector<8x128xf32>
    %302 = arith.addf %301, %300 : vector<8x128xf32>
    %303 = arith.divf %301, %302 : vector<8x128xf32>
    %304 = vector.extract_strided_slice %291 {offsets = [0, 256], sizes = [8, 128], strides = [1, 1]} : vector<8x512xf32> to vector<8x128xf32>
    %305 = math.tanh %304 : vector<8x128xf32>
    %306 = vector.extract_strided_slice %291 {offsets = [0, 384], sizes = [8, 128], strides = [1, 1]} : vector<8x512xf32> to vector<8x128xf32>
    %307 = arith.negf %306 : vector<8x128xf32>
    %308 = math.exp %307 : vector<8x128xf32>
    %cst_78 = arith.constant 1.000000e+00 : f32
    %309 = vector.broadcast %cst_78 : f32 to vector<8x128xf32>
    %310 = arith.addf %309, %308 : vector<8x128xf32>
    %311 = arith.divf %309, %310 : vector<8x128xf32>
    %312 = arith.mulf %303, %286 : vector<8x128xf32>
    %313 = arith.mulf %297, %305 : vector<8x128xf32>
    %314 = arith.addf %312, %313 : vector<8x128xf32>
    %315 = math.tanh %314 : vector<8x128xf32>
    %316 = arith.mulf %311, %315 : vector<8x128xf32>
    %317 = arith.truncf %316 : vector<8x128xf32> to vector<8x128xbf16>
    %cst_79 = arith.constant dense<0.000000e+00> : vector<8x512xf32>
    %318 = tpu.matmul %317, %258, %cst_79 {dimension_numbers = #tpu.dot_dimension_numbers<[1], [0], [0], [1], [0, 0, 1, 1], [], []>} : vector<8x128xbf16>, vector<128x512xbf16>, vector<8x512xf32> -> vector<8x512xf32>
    %319 = arith.addf %257, %318 : vector<8x512xf32>
    %320 = vector.extract_strided_slice %319 {offsets = [0, 0], sizes = [8, 128], strides = [1, 1]} : vector<8x512xf32> to vector<8x128xf32>
    %321 = arith.negf %320 : vector<8x128xf32>
    %322 = math.exp %321 : vector<8x128xf32>
    %cst_80 = arith.constant 1.000000e+00 : f32
    %323 = vector.broadcast %cst_80 : f32 to vector<8x128xf32>
    %324 = arith.addf %323, %322 : vector<8x128xf32>
    %325 = arith.divf %323, %324 : vector<8x128xf32>
    %326 = vector.extract_strided_slice %319 {offsets = [0, 128], sizes = [8, 128], strides = [1, 1]} : vector<8x512xf32> to vector<8x128xf32>
    %327 = arith.negf %326 : vector<8x128xf32>
    %328 = math.exp %327 : vector<8x128xf32>
    %cst_81 = arith.constant 1.000000e+00 : f32
    %329 = vector.broadcast %cst_81 : f32 to vector<8x128xf32>
    %330 = arith.addf %329, %328 : vector<8x128xf32>
    %331 = arith.divf %329, %330 : vector<8x128xf32>
    %332 = vector.extract_strided_slice %319 {offsets = [0, 256], sizes = [8, 128], strides = [1, 1]} : vector<8x512xf32> to vector<8x128xf32>
    %333 = math.tanh %332 : vector<8x128xf32>
    %334 = vector.extract_strided_slice %319 {offsets = [0, 384], sizes = [8, 128], strides = [1, 1]} : vector<8x512xf32> to vector<8x128xf32>
    %335 = arith.negf %334 : vector<8x128xf32>
    %336 = math.exp %335 : vector<8x128xf32>
    %cst_82 = arith.constant 1.000000e+00 : f32
    %337 = vector.broadcast %cst_82 : f32 to vector<8x128xf32>
    %338 = arith.addf %337, %336 : vector<8x128xf32>
    %339 = arith.divf %337, %338 : vector<8x128xf32>
    %340 = arith.mulf %331, %314 : vector<8x128xf32>
    %341 = arith.mulf %325, %333 : vector<8x128xf32>
    %342 = arith.addf %340, %341 : vector<8x128xf32>
    %343 = math.tanh %342 : vector<8x128xf32>
    %344 = arith.mulf %339, %343 : vector<8x128xf32>
    %345 = arith.truncf %344 : vector<8x128xf32> to vector<8x128xbf16>
    %cst_83 = arith.constant dense<0.000000e+00> : vector<8x512xf32>
    %346 = tpu.matmul %345, %258, %cst_83 {dimension_numbers = #tpu.dot_dimension_numbers<[1], [0], [0], [1], [0, 0, 1, 1], [], []>} : vector<8x128xbf16>, vector<128x512xbf16>, vector<8x512xf32> -> vector<8x512xf32>
    %347 = arith.addf %257, %346 : vector<8x512xf32>
    %348 = vector.extract_strided_slice %347 {offsets = [0, 0], sizes = [8, 128], strides = [1, 1]} : vector<8x512xf32> to vector<8x128xf32>
    %349 = arith.negf %348 : vector<8x128xf32>
    %350 = math.exp %349 : vector<8x128xf32>
    %cst_84 = arith.constant 1.000000e+00 : f32
    %351 = vector.broadcast %cst_84 : f32 to vector<8x128xf32>
    %352 = arith.addf %351, %350 : vector<8x128xf32>
    %353 = arith.divf %351, %352 : vector<8x128xf32>
    %354 = vector.extract_strided_slice %347 {offsets = [0, 128], sizes = [8, 128], strides = [1, 1]} : vector<8x512xf32> to vector<8x128xf32>
    %355 = arith.negf %354 : vector<8x128xf32>
    %356 = math.exp %355 : vector<8x128xf32>
    %cst_85 = arith.constant 1.000000e+00 : f32
    %357 = vector.broadcast %cst_85 : f32 to vector<8x128xf32>
    %358 = arith.addf %357, %356 : vector<8x128xf32>
    %359 = arith.divf %357, %358 : vector<8x128xf32>
    %360 = vector.extract_strided_slice %347 {offsets = [0, 256], sizes = [8, 128], strides = [1, 1]} : vector<8x512xf32> to vector<8x128xf32>
    %361 = math.tanh %360 : vector<8x128xf32>
    %362 = vector.extract_strided_slice %347 {offsets = [0, 384], sizes = [8, 128], strides = [1, 1]} : vector<8x512xf32> to vector<8x128xf32>
    %363 = arith.negf %362 : vector<8x128xf32>
    %364 = math.exp %363 : vector<8x128xf32>
    %cst_86 = arith.constant 1.000000e+00 : f32
    %365 = vector.broadcast %cst_86 : f32 to vector<8x128xf32>
    %366 = arith.addf %365, %364 : vector<8x128xf32>
    %367 = arith.divf %365, %366 : vector<8x128xf32>
    %368 = arith.mulf %359, %342 : vector<8x128xf32>
    %369 = arith.mulf %353, %361 : vector<8x128xf32>
    %370 = arith.addf %368, %369 : vector<8x128xf32>
    %371 = math.tanh %370 : vector<8x128xf32>
    %372 = arith.mulf %367, %371 : vector<8x128xf32>
    %373 = arith.truncf %372 : vector<8x128xf32> to vector<8x128xbf16>
    %cst_87 = arith.constant dense<0.000000e+00> : vector<8x512xf32>
    %374 = tpu.matmul %373, %258, %cst_87 {dimension_numbers = #tpu.dot_dimension_numbers<[1], [0], [0], [1], [0, 0, 1, 1], [], []>} : vector<8x128xbf16>, vector<128x512xbf16>, vector<8x512xf32> -> vector<8x512xf32>
    %375 = arith.addf %257, %374 : vector<8x512xf32>
    %376 = vector.extract_strided_slice %375 {offsets = [0, 0], sizes = [8, 128], strides = [1, 1]} : vector<8x512xf32> to vector<8x128xf32>
    %377 = arith.negf %376 : vector<8x128xf32>
    %378 = math.exp %377 : vector<8x128xf32>
    %cst_88 = arith.constant 1.000000e+00 : f32
    %379 = vector.broadcast %cst_88 : f32 to vector<8x128xf32>
    %380 = arith.addf %379, %378 : vector<8x128xf32>
    %381 = arith.divf %379, %380 : vector<8x128xf32>
    %382 = vector.extract_strided_slice %375 {offsets = [0, 128], sizes = [8, 128], strides = [1, 1]} : vector<8x512xf32> to vector<8x128xf32>
    %383 = arith.negf %382 : vector<8x128xf32>
    %384 = math.exp %383 : vector<8x128xf32>
    %cst_89 = arith.constant 1.000000e+00 : f32
    %385 = vector.broadcast %cst_89 : f32 to vector<8x128xf32>
    %386 = arith.addf %385, %384 : vector<8x128xf32>
    %387 = arith.divf %385, %386 : vector<8x128xf32>
    %388 = vector.extract_strided_slice %375 {offsets = [0, 256], sizes = [8, 128], strides = [1, 1]} : vector<8x512xf32> to vector<8x128xf32>
    %389 = math.tanh %388 : vector<8x128xf32>
    %390 = vector.extract_strided_slice %375 {offsets = [0, 384], sizes = [8, 128], strides = [1, 1]} : vector<8x512xf32> to vector<8x128xf32>
    %391 = arith.negf %390 : vector<8x128xf32>
    %392 = math.exp %391 : vector<8x128xf32>
    %cst_90 = arith.constant 1.000000e+00 : f32
    %393 = vector.broadcast %cst_90 : f32 to vector<8x128xf32>
    %394 = arith.addf %393, %392 : vector<8x128xf32>
    %395 = arith.divf %393, %394 : vector<8x128xf32>
    %396 = arith.mulf %387, %370 : vector<8x128xf32>
    %397 = arith.mulf %381, %389 : vector<8x128xf32>
    %398 = arith.addf %396, %397 : vector<8x128xf32>
    %399 = math.tanh %398 : vector<8x128xf32>
    %400 = arith.mulf %395, %399 : vector<8x128xf32>
    %401 = arith.truncf %400 : vector<8x128xf32> to vector<8x128xbf16>
    %cst_91 = arith.constant dense<0.000000e+00> : vector<8x512xf32>
    %402 = tpu.matmul %401, %258, %cst_91 {dimension_numbers = #tpu.dot_dimension_numbers<[1], [0], [0], [1], [0, 0, 1, 1], [], []>} : vector<8x128xbf16>, vector<128x512xbf16>, vector<8x512xf32> -> vector<8x512xf32>
    %403 = arith.addf %257, %402 : vector<8x512xf32>
    %404 = vector.extract_strided_slice %403 {offsets = [0, 0], sizes = [8, 128], strides = [1, 1]} : vector<8x512xf32> to vector<8x128xf32>
    %405 = arith.negf %404 : vector<8x128xf32>
    %406 = math.exp %405 : vector<8x128xf32>
    %cst_92 = arith.constant 1.000000e+00 : f32
    %407 = vector.broadcast %cst_92 : f32 to vector<8x128xf32>
    %408 = arith.addf %407, %406 : vector<8x128xf32>
    %409 = arith.divf %407, %408 : vector<8x128xf32>
    %410 = vector.extract_strided_slice %403 {offsets = [0, 128], sizes = [8, 128], strides = [1, 1]} : vector<8x512xf32> to vector<8x128xf32>
    %411 = arith.negf %410 : vector<8x128xf32>
    %412 = math.exp %411 : vector<8x128xf32>
    %cst_93 = arith.constant 1.000000e+00 : f32
    %413 = vector.broadcast %cst_93 : f32 to vector<8x128xf32>
    %414 = arith.addf %413, %412 : vector<8x128xf32>
    %415 = arith.divf %413, %414 : vector<8x128xf32>
    %416 = vector.extract_strided_slice %403 {offsets = [0, 256], sizes = [8, 128], strides = [1, 1]} : vector<8x512xf32> to vector<8x128xf32>
    %417 = math.tanh %416 : vector<8x128xf32>
    %418 = vector.extract_strided_slice %403 {offsets = [0, 384], sizes = [8, 128], strides = [1, 1]} : vector<8x512xf32> to vector<8x128xf32>
    %419 = arith.negf %418 : vector<8x128xf32>
    %420 = math.exp %419 : vector<8x128xf32>
    %cst_94 = arith.constant 1.000000e+00 : f32
    %421 = vector.broadcast %cst_94 : f32 to vector<8x128xf32>
    %422 = arith.addf %421, %420 : vector<8x128xf32>
    %423 = arith.divf %421, %422 : vector<8x128xf32>
    %424 = arith.mulf %415, %398 : vector<8x128xf32>
    %425 = arith.mulf %409, %417 : vector<8x128xf32>
    %426 = arith.addf %424, %425 : vector<8x128xf32>
    %427 = math.tanh %426 : vector<8x128xf32>
    %428 = arith.mulf %423, %427 : vector<8x128xf32>
    %429 = arith.truncf %428 : vector<8x128xf32> to vector<8x128xbf16>
    %cst_95 = arith.constant dense<0.000000e+00> : vector<8x512xf32>
    %430 = tpu.matmul %429, %258, %cst_95 {dimension_numbers = #tpu.dot_dimension_numbers<[1], [0], [0], [1], [0, 0, 1, 1], [], []>} : vector<8x128xbf16>, vector<128x512xbf16>, vector<8x512xf32> -> vector<8x512xf32>
    %431 = arith.addf %257, %430 : vector<8x512xf32>
    %432 = vector.extract_strided_slice %431 {offsets = [0, 0], sizes = [8, 128], strides = [1, 1]} : vector<8x512xf32> to vector<8x128xf32>
    %433 = arith.negf %432 : vector<8x128xf32>
    %434 = math.exp %433 : vector<8x128xf32>
    %cst_96 = arith.constant 1.000000e+00 : f32
    %435 = vector.broadcast %cst_96 : f32 to vector<8x128xf32>
    %436 = arith.addf %435, %434 : vector<8x128xf32>
    %437 = arith.divf %435, %436 : vector<8x128xf32>
    %438 = vector.extract_strided_slice %431 {offsets = [0, 128], sizes = [8, 128], strides = [1, 1]} : vector<8x512xf32> to vector<8x128xf32>
    %439 = arith.negf %438 : vector<8x128xf32>
    %440 = math.exp %439 : vector<8x128xf32>
    %cst_97 = arith.constant 1.000000e+00 : f32
    %441 = vector.broadcast %cst_97 : f32 to vector<8x128xf32>
    %442 = arith.addf %441, %440 : vector<8x128xf32>
    %443 = arith.divf %441, %442 : vector<8x128xf32>
    %444 = vector.extract_strided_slice %431 {offsets = [0, 256], sizes = [8, 128], strides = [1, 1]} : vector<8x512xf32> to vector<8x128xf32>
    %445 = math.tanh %444 : vector<8x128xf32>
    %446 = vector.extract_strided_slice %431 {offsets = [0, 384], sizes = [8, 128], strides = [1, 1]} : vector<8x512xf32> to vector<8x128xf32>
    %447 = arith.negf %446 : vector<8x128xf32>
    %448 = math.exp %447 : vector<8x128xf32>
    %cst_98 = arith.constant 1.000000e+00 : f32
    %449 = vector.broadcast %cst_98 : f32 to vector<8x128xf32>
    %450 = arith.addf %449, %448 : vector<8x128xf32>
    %451 = arith.divf %449, %450 : vector<8x128xf32>
    %452 = arith.mulf %443, %426 : vector<8x128xf32>
    %453 = arith.mulf %437, %445 : vector<8x128xf32>
    %454 = arith.addf %452, %453 : vector<8x128xf32>
    %455 = math.tanh %454 : vector<8x128xf32>
    %456 = arith.mulf %451, %455 : vector<8x128xf32>
    %457 = arith.truncf %456 : vector<8x128xf32> to vector<8x128xbf16>
    %cst_99 = arith.constant dense<0.000000e+00> : vector<8x512xf32>
    %458 = tpu.matmul %457, %258, %cst_99 {dimension_numbers = #tpu.dot_dimension_numbers<[1], [0], [0], [1], [0, 0, 1, 1], [], []>} : vector<8x128xbf16>, vector<128x512xbf16>, vector<8x512xf32> -> vector<8x512xf32>
    %459 = arith.addf %257, %458 : vector<8x512xf32>
    %460 = vector.extract_strided_slice %459 {offsets = [0, 0], sizes = [8, 128], strides = [1, 1]} : vector<8x512xf32> to vector<8x128xf32>
    %461 = arith.negf %460 : vector<8x128xf32>
    %462 = math.exp %461 : vector<8x128xf32>
    %cst_100 = arith.constant 1.000000e+00 : f32
    %463 = vector.broadcast %cst_100 : f32 to vector<8x128xf32>
    %464 = arith.addf %463, %462 : vector<8x128xf32>
    %465 = arith.divf %463, %464 : vector<8x128xf32>
    %466 = vector.extract_strided_slice %459 {offsets = [0, 128], sizes = [8, 128], strides = [1, 1]} : vector<8x512xf32> to vector<8x128xf32>
    %467 = arith.negf %466 : vector<8x128xf32>
    %468 = math.exp %467 : vector<8x128xf32>
    %cst_101 = arith.constant 1.000000e+00 : f32
    %469 = vector.broadcast %cst_101 : f32 to vector<8x128xf32>
    %470 = arith.addf %469, %468 : vector<8x128xf32>
    %471 = arith.divf %469, %470 : vector<8x128xf32>
    %472 = vector.extract_strided_slice %459 {offsets = [0, 256], sizes = [8, 128], strides = [1, 1]} : vector<8x512xf32> to vector<8x128xf32>
    %473 = math.tanh %472 : vector<8x128xf32>
    %474 = vector.extract_strided_slice %459 {offsets = [0, 384], sizes = [8, 128], strides = [1, 1]} : vector<8x512xf32> to vector<8x128xf32>
    %475 = arith.negf %474 : vector<8x128xf32>
    %476 = math.exp %475 : vector<8x128xf32>
    %cst_102 = arith.constant 1.000000e+00 : f32
    %477 = vector.broadcast %cst_102 : f32 to vector<8x128xf32>
    %478 = arith.addf %477, %476 : vector<8x128xf32>
    %479 = arith.divf %477, %478 : vector<8x128xf32>
    %480 = arith.mulf %471, %454 : vector<8x128xf32>
    %481 = arith.mulf %465, %473 : vector<8x128xf32>
    %482 = arith.addf %480, %481 : vector<8x128xf32>
    %483 = math.tanh %482 : vector<8x128xf32>
    %484 = arith.mulf %479, %483 : vector<8x128xf32>
    %485 = tpu.concatenate %288, %316, %344, %372, %400, %428, %456, %484 in 0 : vector<8x128xf32>, vector<8x128xf32>, vector<8x128xf32>, vector<8x128xf32>, vector<8x128xf32>, vector<8x128xf32>, vector<8x128xf32>, vector<8x128xf32> -> vector<64x128xf32>
    %486 = arith.truncf %485 : vector<64x128xf32> to vector<64x128xbf16>
    %c0_103 = arith.constant 0 : index
    %c0_104 = arith.constant 0 : index
    %487 = vector.load %arg8[%c0_103, %c0_104] : memref<128x128xbf16, #tpu.memory_space<vmem>>, vector<128x128xbf16>
    %cst_105 = arith.constant dense<0.000000e+00> : vector<64x128xf32>
    %488 = tpu.matmul %486, %487, %cst_105 {dimension_numbers = #tpu.dot_dimension_numbers<[1], [0], [0], [1], [0, 0, 1, 1], [], []>} : vector<64x128xbf16>, vector<128x128xbf16>, vector<64x128xf32> -> vector<64x128xf32>
    %c0_106 = arith.constant 0 : index
    %c0_107 = arith.constant 0 : index
    %489 = vector.load %arg9[%c0_106, %c0_107] : memref<1x128xf32, #tpu.memory_space<vmem>>, vector<1x128xf32>
    %490 = vector.broadcast %489 : vector<1x128xf32> to vector<64x128xf32>
    %491 = arith.addf %488, %490 : vector<64x128xf32>
    %492 = vector.shape_cast %491 : vector<64x128xf32> to vector<8x8x128xf32>
    %c0_108 = arith.constant 0 : index
    %c0_109 = arith.constant 0 : index
    %c0_110 = arith.constant 0 : index
    %493 = vector.load %arg10[%c0_108, %c0_109, %c0_110] : memref<8x8x128xf32, #tpu.memory_space<vmem>>, vector<8x8x128xf32>
    tpu.vector_store %arg10[%c0_108, %c0_109, %c0_110], %492 {strides = array<i32>} : memref<8x8x128xf32, #tpu.memory_space<vmem>>, vector<8x8x128xf32>,
    return
  }
  func.func @transform_0(%arg0: i32) -> (i32, i32, i32) {
    %c0_i32 = arith.constant 0 : i32
    %c0_i32_0 = arith.constant 0 : i32
    %c0_i32_1 = arith.constant 0 : i32
    return %c0_i32, %arg0, %c0_i32_0 : i32, i32, i32
  }
  func.func @transform_1(%arg0: i32) -> (i32, i32) {
    %c0_i32 = arith.constant 0 : i32
    %c0_i32_0 = arith.constant 0 : i32
    %c0_i32_1 = arith.constant 0 : i32
    return %c0_i32, %c0_i32_0 : i32, i32
  }
  func.func @transform_2(%arg0: i32) -> (i32, i32) {
    %c0_i32 = arith.constant 0 : i32
    %c0_i32_0 = arith.constant 0 : i32
    %c0_i32_1 = arith.constant 0 : i32
    return %c0_i32, %c0_i32_0 : i32, i32
  }
  func.func @transform_3(%arg0: i32) -> (i32, i32) {
    %c0_i32 = arith.constant 0 : i32
    %c0_i32_0 = arith.constant 0 : i32
    %c0_i32_1 = arith.constant 0 : i32
    return %c0_i32, %c0_i32_0 : i32, i32
  }
  func.func @transform_4(%arg0: i32) -> (i32, i32) {
    %c0_i32 = arith.constant 0 : i32
    %c0_i32_0 = arith.constant 0 : i32
    %c0_i32_1 = arith.constant 0 : i32
    return %c0_i32, %c0_i32_0 : i32, i32
  }
  func.func @transform_5(%arg0: i32) -> (i32, i32) {
    %c0_i32 = arith.constant 0 : i32
    %c0_i32_0 = arith.constant 0 : i32
    %c0_i32_1 = arith.constant 0 : i32
    return %c0_i32, %c0_i32_0 : i32, i32
  }
  func.func @transform_6(%arg0: i32) -> (i32, i32) {
    %c0_i32 = arith.constant 0 : i32
    %c0_i32_0 = arith.constant 0 : i32
    %c0_i32_1 = arith.constant 0 : i32
    return %c0_i32, %c0_i32_0 : i32, i32
  }
  func.func @transform_7(%arg0: i32) -> (i32, i32) {
    %c0_i32 = arith.constant 0 : i32
    %c0_i32_0 = arith.constant 0 : i32
    %c0_i32_1 = arith.constant 0 : i32
    return %c0_i32, %c0_i32_0 : i32, i32
  }
  func.func @transform_8(%arg0: i32) -> (i32, i32) {
    %c0_i32 = arith.constant 0 : i32
    %c0_i32_0 = arith.constant 0 : i32
    %c0_i32_1 = arith.constant 0 : i32
    return %c0_i32, %c0_i32_0 : i32, i32
  }
  func.func @transform_9(%arg0: i32) -> (i32, i32, i32) {
    %c0_i32 = arith.constant 0 : i32
    %c0_i32_0 = arith.constant 0 : i32
    %c0_i32_1 = arith.constant 0 : i32
    return %c0_i32, %arg0, %c0_i32_0 : i32, i32, i32
  }
}

</mosaic_0001>

<llo_original>
// kernel: tpu_custom_call.1
$region0: #{tpu_custom_call.1}
  #allocation0 [shape = 'u32[]', space=smem, size = 0x4, offset = 0x4, fixed_abs, tag = 'smem constant byte address 0x4 - core index']
  #allocation1 [shape = 'u32[144,128]{1,0:T(1,128)}', space=vmem, size = 0x12000, scoped, tag = 'internal scratch']
  #allocation2 [shape = 'f32[8,8,512]{2,1,0:T(8,128)}', space=vmem, size = 0x20000, scoped, tag = 'scratch operand']
  %s0 = inlined_call_operand.hbm [shape: bf16[8,8,64], index: 0, kind: input, shape index: {}]
  %s1 = inlined_call_operand.hbm [shape: bf16[64,512], index: 1, kind: input, shape index: {}]
  %s2 = inlined_call_operand.hbm [shape: bf16[128,512], index: 2, kind: input, shape index: {}]
  %s3 = inlined_call_operand.vmem [shape: f32[1,512], index: 3, kind: input, shape index: {}]
  %s4 = inlined_call_operand.hbm [shape: bf16[128,512], index: 4, kind: input, shape index: {}]
  %s5 = inlined_call_operand.hbm [shape: bf16[128,512], index: 5, kind: input, shape index: {}]
  %s6 = inlined_call_operand.vmem [shape: f32[1,512], index: 6, kind: input, shape index: {}]
  %s7 = inlined_call_operand.hbm [shape: bf16[128,128], index: 7, kind: input, shape index: {}]
  %s8 = inlined_call_operand.vmem [shape: f32[1,128], index: 8, kind: input, shape index: {}]
  %s9 = inlined_call_operand.hbm [shape: f32[8,8,128], index: 9, kind: output, shape index: {}]
  %s10 = sld [smem:[#allocation0]]
  $region70: #{tpu_custom_call.1} parent=0
    _
  %s12 = ssub.s32 1, %s10
  %s13 = scalar_select 0, %s12, %s10
  $region1: #{tpu_custom_call.1} parent=0
    #allocation3 [shape = 'u8[16384]{0}', space=vmem, size = 0x4000, scoped, tag = 'input window, operand 0, single buffered']
    #allocation4 [shape = 's32[1]{0}', space=sflag, size = 0x4, scoped, tag = 'scoped memory for tpu_custom_call.1']
    #allocation5 [shape = 's32[1]{0}', space=sflag, size = 0x4, scoped, tag = 'scoped memory for tpu_custom_call.1']
    #allocation6 [shape = 'u8[65536]{0}', space=vmem, size = 0x10000, scoped, tag = 'input window, operand 1, single buffered']
    #allocation7 [shape = 's32[1]{0}', space=sflag, size = 0x4, scoped, tag = 'scoped memory for tpu_custom_call.1']
    #allocation8 [shape = 'u8[131072]{0}', space=vmem, size = 0x20000, scoped, tag = 'input window, operand 2, single buffered']
    #allocation9 [shape = 'u8[131072]{0}', space=vmem, size = 0x20000, scoped, tag = 'input window, operand 4, single buffered']
    #allocation10 [shape = 's32[1]{0}', space=sflag, size = 0x4, scoped, tag = 'scoped memory for tpu_custom_call.1']
    #allocation11 [shape = 'u8[131072]{0}', space=vmem, size = 0x20000, scoped, tag = 'input window, operand 5, single buffered']
    #allocation12 [shape = 'u8[32768]{0}', space=vmem, size = 0x8000, scoped, tag = 'input window, operand 7, single buffered']
    #allocation13 [shape = 's32[1]{0}', space=sflag, size = 0x4, scoped, tag = 'scoped memory for tpu_custom_call.1']
    #allocation14 [shape = 'u8[32768]{0}', space=vmem, size = 0x8000, scoped, tag = 'output window, operand 0, single buffered']
    %14 = vsyncpa [#allocation4], 0
    %15 = vsyncpa [#allocation7], 0
    %16 = vsyncpa [#allocation10], 0
    %17 = vsyncpa [#allocation13], 0
    %18 = vsyncpa [#allocation5], 0
    // Predicated region
    $region2: #{tpu_custom_call.1} parent=1 // pred_check
      _
    $region3: #{tpu_custom_call.1} parent=1 // pred_check_branch
      %20 = sbr.rel (0) target = $region5
    $region4: #{tpu_custom_call.1} parent=1 // pred_region
      %s22 = ssub.s32 512, 512
      %23 = vsyncadd [#allocation4], %s22
      %s24 = sshll.u32 [#allocation3], 4
      %s25 = int_to_ptr.vmem [resolvable:$true] %s24
      %30 = dma.hbm_to_vmem [thread:$0]  %s0, 512, %s25, [#allocation4], 64, 64, 4
    $region5: #{tpu_custom_call.1} parent=1 // pred_fallthru
      _
    // Predicated region
    $region6: #{tpu_custom_call.1} parent=1 // pred_check
      _
    $region7: #{tpu_custom_call.1} parent=1 // pred_check_branch
      %32 = sbr.rel (0) target = $region9
    $region8: #{tpu_custom_call.1} parent=1 // pred_region
      %s34 = ssub.s32 2048, 2048
      %35 = vsyncadd [#allocation7], %s34
      %s36 = sshll.u32 [#allocation6], 4
      %s37 = int_to_ptr.vmem [resolvable:$true] %s36
      %42 = dma.hbm_to_vmem [thread:$0]  %s1, 2048, %s37, [#allocation7], 256, 256, 16
    $region9: #{tpu_custom_call.1} parent=1 // pred_fallthru
      _
    // Predicated region
    $region10: #{tpu_custom_call.1} parent=1 // pred_check
      _
    $region11: #{tpu_custom_call.1} parent=1 // pred_check_branch
      %44 = sbr.rel (0) target = $region13
    $region12: #{tpu_custom_call.1} parent=1 // pred_region
      %s46 = ssub.s32 4096, 4096
      %47 = vsyncadd [#allocation7], %s46
      %s48 = sshll.u32 [#allocation8], 4
      %s49 = int_to_ptr.vmem [resolvable:$true] %s48
      %54 = dma.hbm_to_vmem [thread:$0]  %s2, 4096, %s49, [#allocation7], 256, 256, 16
    $region13: #{tpu_custom_call.1} parent=1 // pred_fallthru
      _
    // Predicated region
    $region14: #{tpu_custom_call.1} parent=1 // pred_check
      _
    $region15: #{tpu_custom_call.1} parent=1 // pred_check_branch
      %56 = sbr.rel (0) target = $region17
    $region16: #{tpu_custom_call.1} parent=1 // pred_region
      _
    $region17: #{tpu_custom_call.1} parent=1 // pred_fallthru
      _
    // Predicated region
    $region18: #{tpu_custom_call.1} parent=1 // pred_check
      _
    $region19: #{tpu_custom_call.1} parent=1 // pred_check_branch
      %58 = sbr.rel (0) target = $region21
    $region20: #{tpu_custom_call.1} parent=1 // pred_region
      %s60 = ssub.s32 4096, 4096
      %61 = vsyncadd [#allocation10], %s60
      %s62 = sshll.u32 [#allocation9], 4
      %s63 = int_to_ptr.vmem [resolvable:$true] %s62
      %68 = dma.hbm_to_vmem [thread:$0]  %s4, 4096, %s63, [#allocation10], 256, 256, 16
    $region21: #{tpu_custom_call.1} parent=1 // pred_fallthru
      _
    // Predicated region
    $region22: #{tpu_custom_call.1} parent=1 // pred_check
      _
    $region23: #{tpu_custom_call.1} parent=1 // pred_check_branch
      %70 = sbr.rel (0) target = $region25
    $region24: #{tpu_custom_call.1} parent=1 // pred_region
      %s72 = ssub.s32 4096, 4096
      %73 = vsyncadd [#allocation10], %s72
      %s74 = sshll.u32 [#allocation11], 4
      %s75 = int_to_ptr.vmem [resolvable:$true] %s74
      %80 = dma.hbm_to_vmem [thread:$0]  %s5, 4096, %s75, [#allocation10], 256, 256, 16
    $region25: #{tpu_custom_call.1} parent=1 // pred_fallthru
      _
    // Predicated region
    $region26: #{tpu_custom_call.1} parent=1 // pred_check
      _
    $region27: #{tpu_custom_call.1} parent=1 // pred_check_branch
      %82 = sbr.rel (0) target = $region29
    $region28: #{tpu_custom_call.1} parent=1 // pred_region
      _
    $region29: #{tpu_custom_call.1} parent=1 // pred_fallthru
      _
    // Predicated region
    $region30: #{tpu_custom_call.1} parent=1 // pred_check
      _
    $region31: #{tpu_custom_call.1} parent=1 // pred_check_branch
      %84 = sbr.rel (0) target = $region33
    $region32: #{tpu_custom_call.1} parent=1 // pred_region
      %s86 = ssub.s32 1024, 1024
      %87 = vsyncadd [#allocation13], %s86
      %s88 = sshll.u32 [#allocation12], 4
      %s89 = int_to_ptr.vmem [resolvable:$true] %s88
      %94 = dma.hbm_to_vmem [thread:$0]  %s7, 1024, %s89, [#allocation13], 64, 64, 4
    $region33: #{tpu_custom_call.1} parent=1 // pred_fallthru
      _
    // Predicated region
    $region34: #{tpu_custom_call.1} parent=1 // pred_check
      _
    $region35: #{tpu_custom_call.1} parent=1 // pred_check_branch
      %96 = sbr.rel (0) target = $region37
    $region36: #{tpu_custom_call.1} parent=1 // pred_region
      _
    $region37: #{tpu_custom_call.1} parent=1 // pred_fallthru
      _
    // Predicated region
    $region38: #{tpu_custom_call.1} parent=1 // pred_check
      _
    $region39: #{tpu_custom_call.1} parent=1 // pred_check_branch
      %98 = sbr.rel (0) target = $region41
    $region40: #{tpu_custom_call.1} parent=1 // pred_region
      %99 = dma.done [#allocation4], 512
    $region41: #{tpu_custom_call.1} parent=1 // pred_fallthru
      _
    // Predicated region
    $region42: #{tpu_custom_call.1} parent=1 // pred_check
      _
    $region43: #{tpu_custom_call.1} parent=1 // pred_check_branch
      %101 = sbr.rel (0) target = $region45
    $region44: #{tpu_custom_call.1} parent=1 // pred_region
      %102 = dma.done [#allocation7], 2048
    $region45: #{tpu_custom_call.1} parent=1 // pred_fallthru
      _
    // Predicated region
    $region46: #{tpu_custom_call.1} parent=1 // pred_check
      _
    $region47: #{tpu_custom_call.1} parent=1 // pred_check_branch
      %104 = sbr.rel (0) target = $region49
    $region48: #{tpu_custom_call.1} parent=1 // pred_region
      %105 = dma.done [#allocation7], 4096
    $region49: #{tpu_custom_call.1} parent=1 // pred_fallthru
      _
    // Predicated region
    $region50: #{tpu_custom_call.1} parent=1 // pred_check
      _
    $region51: #{tpu_custom_call.1} parent=1 // pred_check_branch
      %107 = sbr.rel (0) target = $region53
    $region52: #{tpu_custom_call.1} parent=1 // pred_region
      %108 = dma.done [#allocation10], 4096
    $region53: #{tpu_custom_call.1} parent=1 // pred_fallthru
      _
    // Predicated region
    $region54: #{tpu_custom_call.1} parent=1 // pred_check
      _
    $region55: #{tpu_custom_call.1} parent=1 // pred_check_branch
      %110 = sbr.rel (0) target = $region57
    $region56: #{tpu_custom_call.1} parent=1 // pred_region
      %111 = dma.done [#allocation10], 4096
    $region57: #{tpu_custom_call.1} parent=1 // pred_fallthru
      _
    // Predicated region
    $region58: #{tpu_custom_call.1} parent=1 // pred_check
      _
    $region59: #{tpu_custom_call.1} parent=1 // pred_check_branch
      %113 = sbr.rel (0) target = $region61
    $region60: #{tpu_custom_call.1} parent=1 // pred_region
      %114 = dma.done [#allocation13], 1024
    $region61: #{tpu_custom_call.1} parent=1 // pred_fallthru
      _
    %v116 = vld [vmem:[#allocation3] sm:$0xf]
    %v117 = vld [vmem:[#allocation3 + $0x4] sm:$0xf]
    %v118 = vld [vmem:[#allocation3 + $0x8] sm:$0xf]
    %v119 = vld [vmem:[#allocation3 + $0xc] sm:$0xf]
    %v120 = vld [vmem:[#allocation3 + $0x10] sm:$0xf]
    %v121 = vld [vmem:[#allocation3 + $0x14] sm:$0xf]
    %v122 = vld [vmem:[#allocation3 + $0x18] sm:$0xf]
    %v123 = vld [vmem:[#allocation3 + $0x1c] sm:$0xf]
    %v124 = vld [vmem:[#allocation6] sm:$0xff]
    %v125 = vld [vmem:[#allocation6 + $0x8] sm:$0xff]
    %v126 = vld [vmem:[#allocation6 + $0x10] sm:$0xff]
    %v127 = vld [vmem:[#allocation6 + $0x18] sm:$0xff]
    %v128 = vld [vmem:[#allocation6 + $0x20] sm:$0xff]
    %v129 = vld [vmem:[#allocation6 + $0x28] sm:$0xff]
    %v130 = vld [vmem:[#allocation6 + $0x30] sm:$0xff]
    %v131 = vld [vmem:[#allocation6 + $0x38] sm:$0xff]
    %v132 = vld [vmem:[#allocation6 + $0x40] sm:$0xff]
    %v133 = vld [vmem:[#allocation6 + $0x48] sm:$0xff]
    %v134 = vld [vmem:[#allocation6 + $0x50] sm:$0xff]
    %v135 = vld [vmem:[#allocation6 + $0x58] sm:$0xff]
    %v136 = vld [vmem:[#allocation6 + $0x60] sm:$0xff]
    %v137 = vld [vmem:[#allocation6 + $0x68] sm:$0xff]
    %v138 = vld [vmem:[#allocation6 + $0x70] sm:$0xff]
    %v139 = vld [vmem:[#allocation6 + $0x78] sm:$0xff]
    %v140 = vld [vmem:[%s3] sm:$0xf]
    %v142 = vlaneseq
    %v143 = vshrl.u32 %v142, 7
    %v144 = vsub.s32 0, %v143
    %v145 = vrot.slane %v140, %v144
    %v146 = vlaneseq
    %v147 = vshrl.u32 %v146, 7
    %v148 = vsub.s32 1, %v147
    %v149 = vrot.slane %v140, %v148
    %v150 = vlaneseq
    %v151 = vshrl.u32 %v150, 7
    %v152 = vsub.s32 2, %v151
    %v153 = vrot.slane %v140, %v152
    %v154 = vlaneseq
    %v155 = vshrl.u32 %v154, 7
    %v156 = vsub.s32 3, %v155
    %v157 = vrot.slane %v140, %v156
    %v170 = vunpack.c.l.b16 %v116
    %v171 = vunpack.c.l.b16 %v117
    %v172 = vunpack.c.l.b16 %v118
    %v173 = vunpack.c.l.b16 %v119
    %v174 = vunpack.c.l.b16 %v120
    %v175 = vunpack.c.l.b16 %v121
    %v176 = vunpack.c.l.b16 %v122
    %v177 = vunpack.c.l.b16 %v123
    %v178 = vpack.c.b16 %v171, %v170
    %v179 = vpack.c.b16 %v173, %v172
    %v180 = vpack.c.b16 %v175, %v174
    %v181 = vpack.c.b16 %v177, %v176
    %v198 = vunpack.c.l.b16 %v124
    %v199 = vunpack.c.h.b16 %v124
    %v200 = vunpack.c.l.b16 %v125
    %v201 = vunpack.c.h.b16 %v125
    %v202 = vunpack.c.l.b16 %v126
    %v203 = vunpack.c.h.b16 %v126
    %v204 = vunpack.c.l.b16 %v127
    %v205 = vunpack.c.h.b16 %v127
    %v206 = vunpack.c.l.b16 %v128
    %v207 = vunpack.c.h.b16 %v128
    %v208 = vunpack.c.l.b16 %v129
    %v209 = vunpack.c.h.b16 %v129
    %v210 = vunpack.c.l.b16 %v130
    %v211 = vunpack.c.h.b16 %v130
    %v212 = vunpack.c.l.b16 %v131
    %v213 = vunpack.c.h.b16 %v131
    %v214 = vunpack.c.l.b16 %v132
    %v215 = vunpack.c.h.b16 %v132
    %v216 = vunpack.c.l.b16 %v133
    %v217 = vunpack.c.h.b16 %v133
    %v218 = vunpack.c.l.b16 %v134
    %v219 = vunpack.c.h.b16 %v134
    %v220 = vunpack.c.l.b16 %v135
    %v221 = vunpack.c.h.b16 %v135
    %v222 = vunpack.c.l.b16 %v136
    %v223 = vunpack.c.h.b16 %v136
    %v224 = vunpack.c.l.b16 %v137
    %v225 = vunpack.c.h.b16 %v137
    %v226 = vunpack.c.l.b16 %v138
    %v227 = vunpack.c.h.b16 %v138
    %v228 = vunpack.c.l.b16 %v139
    %v229 = vunpack.c.h.b16 %v139
    %v230 = vpack.c.b16 %v202, %v198
    %v231 = vpack.c.b16 %v203, %v199
    %v232 = vpack.c.b16 %v204, %v200
    %v233 = vpack.c.b16 %v205, %v201
    %v234 = vpack.c.b16 %v210, %v206
    %v235 = vpack.c.b16 %v211, %v207
    %v236 = vpack.c.b16 %v212, %v208
    %v237 = vpack.c.b16 %v213, %v209
    %v238 = vpack.c.b16 %v218, %v214
    %v239 = vpack.c.b16 %v219, %v215
    %v240 = vpack.c.b16 %v220, %v216
    %v241 = vpack.c.b16 %v221, %v217
    %v242 = vpack.c.b16 %v226, %v222
    %v243 = vpack.c.b16 %v227, %v223
    %v244 = vpack.c.b16 %v228, %v224
    %v245 = vpack.c.b16 %v229, %v225
    %vm262 = vcmask 523264
    %v264 = vsel %vm262, %v178, 0
    %v267 = vsel %vm262, %v179, 0
    %v270 = vsel %vm262, %v180, 0
    %v273 = vsel %vm262, %v181, 0
    %275 = vmatprep.subr.bf16.mxu0 %v231
    %276 = vmatpush1.bf16.msra.mxu0 %v230
    %277 = vmatprep.subr.bf16.mxu0 %v235
    %278 = vmatpush1.bf16.msra.mxu0 %v234
    %279 = vmatprep.subr.bf16.mxu0 %v239
    %280 = vmatpush1.bf16.msra.mxu0 %v238
    %281 = vmatprep.subr.bf16.mxu0 %v243
    %282 = vmatpush1.bf16.msra.mxu0 %v242
    %283 = vmatprep.subr.bf16.mxu0 0
    %284 = vmatpush1.bf16.msra.mxu0 0
    %285 = vmatprep.subr.bf16.mxu0 0
    %286 = vmatpush1.bf16.msra.mxu0 0
    %287 = vmatprep.subr.bf16.mxu0 0
    %288 = vmatpush1.bf16.msra.mxu0 0
    %289 = vmatprep.subr.bf16.mxu0 0
    %290 = vmatpush1.bf16.msra.mxu0 0
    %291 = vmatprep.subr.bf16.mxu0 0
    %292 = vmatpush1.bf16.msra.mxu0 0
    %293 = vmatprep.subr.bf16.mxu0 0
    %294 = vmatpush1.bf16.msra.mxu0 0
    %295 = vmatprep.subr.bf16.mxu0 0
    %296 = vmatpush1.bf16.msra.mxu0 0
    %297 = vmatprep.subr.bf16.mxu0 0
    %298 = vmatpush1.bf16.msra.mxu0 0
    %299 = vmatprep.subr.bf16.mxu0 0
    %300 = vmatpush1.bf16.msra.mxu0 0
    %301 = vmatprep.subr.bf16.mxu0 0
    %302 = vmatpush1.bf16.msra.mxu0 0
    %303 = vmatprep.subr.bf16.mxu0 0
    %304 = vmatpush1.bf16.msra.mxu0 0
    %305 = vmatprep.subr.bf16.mxu0 0
    %306 = vmatpush1.bf16.msra.mxu0 0
    %307 = vmatprep.mubr.bf16.mxu0 0
    %308 = vmatmul.mubr.bf16.gmra.mrb[0].mxu0 %v264
    %v309 = vpop.f32.mrb[0].mxu0
    %v310 = vadd.f32 %v145, %v309
    %v311 = vpop.f32.mrb[0].mxu0
    %v312 = vadd.f32 %v149, %v311
    %v313 = vpop.f32.mrb[0].mxu0
    %v314 = vadd.f32 %v145, %v313
    %v315 = vpop.f32.mrb[0].mxu0
    %v316 = vadd.f32 %v149, %v315
    %317 = vmatprep.mubr.bf16.mxu0 0
    %318 = vmatmul.mubr.bf16.gmra.mrb[0].mxu0 %v267
    %v319 = vpop.f32.mrb[0].mxu0
    %v320 = vadd.f32 %v145, %v319
    %v321 = vpop.f32.mrb[0].mxu0
    %v322 = vadd.f32 %v149, %v321
    %v323 = vpop.f32.mrb[0].mxu0
    %v324 = vadd.f32 %v145, %v323
    %v325 = vpop.f32.mrb[0].mxu0
    %v326 = vadd.f32 %v149, %v325
    %327 = vmatprep.mubr.bf16.mxu0 0
    %328 = vmatmul.mubr.bf16.gmra.mrb[0].mxu0 %v270
    %v329 = vpop.f32.mrb[0].mxu0
    %v330 = vadd.f32 %v145, %v329
    %v331 = vpop.f32.mrb[0].mxu0
    %v332 = vadd.f32 %v149, %v331
    %v333 = vpop.f32.mrb[0].mxu0
    %v334 = vadd.f32 %v145, %v333
    %v335 = vpop.f32.mrb[0].mxu0
    %v336 = vadd.f32 %v149, %v335
    %337 = vmatprep.mubr.bf16.mxu0 0
    %338 = vmatmul.mubr.bf16.gmra.mrb[0].mxu0 %v273
    %v339 = vpop.f32.mrb[0].mxu0
    %v340 = vadd.f32 %v145, %v339
    %v341 = vpop.f32.mrb[0].mxu0
    %v342 = vadd.f32 %v149, %v341
    %v343 = vpop.f32.mrb[0].mxu0
    %v344 = vadd.f32 %v145, %v343
    %v345 = vpop.f32.mrb[0].mxu0
    %v346 = vadd.f32 %v149, %v345
    %347 = vdwg.mxu0
    %348 = vmatprep.subr.bf16.mxu0 %v233
    %349 = vmatpush1.bf16.msra.mxu0 %v232
    %350 = vmatprep.subr.bf16.mxu0 %v237
    %351 = vmatpush1.bf16.msra.mxu0 %v236
    %352 = vmatprep.subr.bf16.mxu0 %v241
    %353 = vmatpush1.bf16.msra.mxu0 %v240
    %354 = vmatprep.subr.bf16.mxu0 %v245
    %355 = vmatpush1.bf16.msra.mxu0 %v244
    %356 = vmatprep.subr.bf16.mxu0 0
    %357 = vmatpush1.bf16.msra.mxu0 0
    %358 = vmatprep.subr.bf16.mxu0 0
    %359 = vmatpush1.bf16.msra.mxu0 0
    %360 = vmatprep.subr.bf16.mxu0 0
    %361 = vmatpush1.bf16.msra.mxu0 0
    %362 = vmatprep.subr.bf16.mxu0 0
    %363 = vmatpush1.bf16.msra.mxu0 0
    %364 = vmatprep.subr.bf16.mxu0 0
    %365 = vmatpush1.bf16.msra.mxu0 0
    %366 = vmatprep.subr.bf16.mxu0 0
    %367 = vmatpush1.bf16.msra.mxu0 0
    %368 = vmatprep.subr.bf16.mxu0 0
    %369 = vmatpush1.bf16.msra.mxu0 0
    %370 = vmatprep.subr.bf16.mxu0 0
    %371 = vmatpush1.bf16.msra.mxu0 0
    %372 = vmatprep.subr.bf16.mxu0 0
    %373 = vmatpush1.bf16.msra.mxu0 0
    %374 = vmatprep.subr.bf16.mxu0 0
    %375 = vmatpush1.bf16.msra.mxu0 0
    %376 = vmatprep.subr.bf16.mxu0 0
    %377 = vmatpush1.bf16.msra.mxu0 0
    %378 = vmatprep.subr.bf16.mxu0 0
    %379 = vmatpush1.bf16.msra.mxu0 0
    %380 = vmatprep.mubr.bf16.mxu0 0
    %381 = vmatmul.mubr.bf16.gmra.mrb[0].mxu0 %v264
    %v382 = vpop.f32.mrb[0].mxu0
    %v383 = vadd.f32 %v153, %v382
    %v384 = vpop.f32.mrb[0].mxu0
    %v385 = vadd.f32 %v157, %v384
    %v386 = vpop.f32.mrb[0].mxu0
    %v387 = vadd.f32 %v153, %v386
    %v388 = vpop.f32.mrb[0].mxu0
    %v389 = vadd.f32 %v157, %v388
    %390 = vmatprep.mubr.bf16.mxu0 0
    %391 = vmatmul.mubr.bf16.gmra.mrb[0].mxu0 %v267
    %v392 = vpop.f32.mrb[0].mxu0
    %v393 = vadd.f32 %v153, %v392
    %v394 = vpop.f32.mrb[0].mxu0
    %v395 = vadd.f32 %v157, %v394
    %v396 = vpop.f32.mrb[0].mxu0
    %v397 = vadd.f32 %v153, %v396
    %v398 = vpop.f32.mrb[0].mxu0
    %v399 = vadd.f32 %v157, %v398
    %400 = vmatprep.mubr.bf16.mxu0 0
    %401 = vmatmul.mubr.bf16.gmra.mrb[0].mxu0 %v270
    %v402 = vpop.f32.mrb[0].mxu0
    %v403 = vadd.f32 %v153, %v402
    %v404 = vpop.f32.mrb[0].mxu0
    %v405 = vadd.f32 %v157, %v404
    %v406 = vpop.f32.mrb[0].mxu0
    %v407 = vadd.f32 %v153, %v406
    %v408 = vpop.f32.mrb[0].mxu0
    %v409 = vadd.f32 %v157, %v408
    %410 = vmatprep.mubr.bf16.mxu0 0
    %411 = vmatmul.mubr.bf16.gmra.mrb[0].mxu0 %v273
    %v412 = vpop.f32.mrb[0].mxu0
    %v413 = vadd.f32 %v153, %v412
    %v414 = vpop.f32.mrb[0].mxu0
    %v415 = vadd.f32 %v157, %v414
    %v416 = vpop.f32.mrb[0].mxu0
    %v417 = vadd.f32 %v153, %v416
    %v418 = vpop.f32.mrb[0].mxu0
    %v419 = vadd.f32 %v157, %v418
    %420 = vdwg.mxu0
    %421 = vst [vmem:[#allocation2] sm:$0xff] %v310
    %422 = vst [vmem:[#allocation2 + $0x8] sm:$0xff] %v312
    %423 = vst [vmem:[#allocation2 + $0x10] sm:$0xff] %v383
    %424 = vst [vmem:[#allocation2 + $0x18] sm:$0xff] %v385
    %425 = vst [vmem:[#allocation2 + $0x20] sm:$0xff] %v314
    %426 = vst [vmem:[#allocation2 + $0x28] sm:$0xff] %v316
    %427 = vst [vmem:[#allocation2 + $0x30] sm:$0xff] %v387
    %428 = vst [vmem:[#allocation2 + $0x38] sm:$0xff] %v389
    %429 = vst [vmem:[#allocation2 + $0x40] sm:$0xff] %v320
    %430 = vst [vmem:[#allocation2 + $0x48] sm:$0xff] %v322
    %431 = vst [vmem:[#allocation2 + $0x50] sm:$0xff] %v393
    %432 = vst [vmem:[#allocation2 + $0x58] sm:$0xff] %v395
    %433 = vst [vmem:[#allocation2 + $0x60] sm:$0xff] %v324
    %434 = vst [vmem:[#allocation2 + $0x68] sm:$0xff] %v326
    %435 = vst [vmem:[#allocation2 + $0x70] sm:$0xff] %v397
    %436 = vst [vmem:[#allocation2 + $0x78] sm:$0xff] %v399
    %437 = vst [vmem:[#allocation2 + $0x80] sm:$0xff] %v330
    %438 = vst [vmem:[#allocation2 + $0x88] sm:$0xff] %v332
    %439 = vst [vmem:[#allocation2 + $0x90] sm:$0xff] %v403
    %440 = vst [vmem:[#allocation2 + $0x98] sm:$0xff] %v405
    %441 = vst [vmem:[#allocation2 + $0xa0] sm:$0xff] %v334
    %442 = vst [vmem:[#allocation2 + $0xa8] sm:$0xff] %v336
    %443 = vst [vmem:[#allocation2 + $0xb0] sm:$0xff] %v407
    %444 = vst [vmem:[#allocation2 + $0xb8] sm:$0xff] %v409
    %445 = vst [vmem:[#allocation2 + $0xc0] sm:$0xff] %v340
    %446 = vst [vmem:[#allocation2 + $0xc8] sm:$0xff] %v342
    %447 = vst [vmem:[#allocation2 + $0xd0] sm:$0xff] %v413
    %448 = vst [vmem:[#allocation2 + $0xd8] sm:$0xff] %v415
    %449 = vst [vmem:[#allocation2 + $0xe0] sm:$0xff] %v344
    %450 = vst [vmem:[#allocation2 + $0xe8] sm:$0xff] %v346
    %451 = vst [vmem:[#allocation2 + $0xf0] sm:$0xff] %v417
    %452 = vst [vmem:[#allocation2 + $0xf8] sm:$0xff] %v419
    %v453 = vld [vmem:[#allocation8] sm:$0xff]
    %v454 = vld [vmem:[#allocation8 + $0x8] sm:$0xff]
    %v455 = vld [vmem:[#allocation8 + $0x10] sm:$0xff]
    %v456 = vld [vmem:[#allocation8 + $0x18] sm:$0xff]
    %v457 = vld [vmem:[#allocation8 + $0x20] sm:$0xff]
    %v458 = vld [vmem:[#allocation8 + $0x28] sm:$0xff]
    %v459 = vld [vmem:[#allocation8 + $0x30] sm:$0xff]
    %v460 = vld [vmem:[#allocation8 + $0x38] sm:$0xff]
    %v461 = vld [vmem:[#allocation8 + $0x40] sm:$0xff]
    %v462 = vld [vmem:[#allocation8 + $0x48] sm:$0xff]
    %v463 = vld [vmem:[#allocation8 + $0x50] sm:$0xff]
    %v464 = vld [vmem:[#allocation8 + $0x58] sm:$0xff]
    %v465 = vld [vmem:[#allocation8 + $0x60] sm:$0xff]
    %v466 = vld [vmem:[#allocation8 + $0x68] sm:$0xff]
    %v467 = vld [vmem:[#allocation8 + $0x70] sm:$0xff]
    %v468 = vld [vmem:[#allocation8 + $0x78] sm:$0xff]
    %v469 = vld [vmem:[#allocation8 + $0x80] sm:$0xff]
    %v470 = vld [vmem:[#allocation8 + $0x88] sm:$0xff]
    %v471 = vld [vmem:[#allocation8 + $0x90] sm:$0xff]
    %v472 = vld [vmem:[#allocation8 + $0x98] sm:$0xff]
    %v473 = vld [vmem:[#allocation8 + $0xa0] sm:$0xff]
    %v474 = vld [vmem:[#allocation8 + $0xa8] sm:$0xff]
    %v475 = vld [vmem:[#allocation8 + $0xb0] sm:$0xff]
    %v476 = vld [vmem:[#allocation8 + $0xb8] sm:$0xff]
    %v477 = vld [vmem:[#allocation8 + $0xc0] sm:$0xff]
    %v478 = vld [vmem:[#allocation8 + $0xc8] sm:$0xff]
    %v479 = vld [vmem:[#allocation8 + $0xd0] sm:$0xff]
    %v480 = vld [vmem:[#allocation8 + $0xd8] sm:$0xff]
    %v481 = vld [vmem:[#allocation8 + $0xe0] sm:$0xff]
    %v482 = vld [vmem:[#allocation8 + $0xe8] sm:$0xff]
    %v483 = vld [vmem:[#allocation8 + $0xf0] sm:$0xff]
    %v484 = vld [vmem:[#allocation8 + $0xf8] sm:$0xff]
    %v485 = vld [vmem:[#allocation2] sm:$0xff]
    %v486 = vld [vmem:[#allocation2 + $0x8] sm:$0xff]
    %v487 = vld [vmem:[#allocation2 + $0x10] sm:$0xff]
    %v488 = vld [vmem:[#allocation2 + $0x18] sm:$0xff]
    %v521 = vunpack.c.l.b16 %v453
    %v522 = vunpack.c.h.b16 %v453
    %v523 = vunpack.c.l.b16 %v454
    %v524 = vunpack.c.h.b16 %v454
    %v525 = vunpack.c.l.b16 %v455
    %v526 = vunpack.c.h.b16 %v455
    %v527 = vunpack.c.l.b16 %v456
    %v528 = vunpack.c.h.b16 %v456
    %v529 = vunpack.c.l.b16 %v457
    %v530 = vunpack.c.h.b16 %v457
    %v531 = vunpack.c.l.b16 %v458
    %v532 = vunpack.c.h.b16 %v458
    %v533 = vunpack.c.l.b16 %v459
    %v534 = vunpack.c.h.b16 %v459
    %v535 = vunpack.c.l.b16 %v460
    %v536 = vunpack.c.h.b16 %v460
    %v537 = vunpack.c.l.b16 %v461
    %v538 = vunpack.c.h.b16 %v461
    %v539 = vunpack.c.l.b16 %v462
    %v540 = vunpack.c.h.b16 %v462
    %v541 = vunpack.c.l.b16 %v463
    %v542 = vunpack.c.h.b16 %v463
    %v543 = vunpack.c.l.b16 %v464
    %v544 = vunpack.c.h.b16 %v464
    %v545 = vunpack.c.l.b16 %v465
    %v546 = vunpack.c.h.b16 %v465
    %v547 = vunpack.c.l.b16 %v466
    %v548 = vunpack.c.h.b16 %v466
    %v549 = vunpack.c.l.b16 %v467
    %v550 = vunpack.c.h.b16 %v467
    %v551 = vunpack.c.l.b16 %v468
    %v552 = vunpack.c.h.b16 %v468
    %v553 = vunpack.c.l.b16 %v469
    %v554 = vunpack.c.h.b16 %v469
    %v555 = vunpack.c.l.b16 %v470
    %v556 = vunpack.c.h.b16 %v470
    %v557 = vunpack.c.l.b16 %v471
    %v558 = vunpack.c.h.b16 %v471
    %v559 = vunpack.c.l.b16 %v472
    %v560 = vunpack.c.h.b16 %v472
    %v561 = vunpack.c.l.b16 %v473
    %v562 = vunpack.c.h.b16 %v473
    %v563 = vunpack.c.l.b16 %v474
    %v564 = vunpack.c.h.b16 %v474
    %v565 = vunpack.c.l.b16 %v475
    %v566 = vunpack.c.h.b16 %v475
    %v567 = vunpack.c.l.b16 %v476
    %v568 = vunpack.c.h.b16 %v476
    %v569 = vunpack.c.l.b16 %v477
    %v570 = vunpack.c.h.b16 %v477
    %v571 = vunpack.c.l.b16 %v478
    %v572 = vunpack.c.h.b16 %v478
    %v573 = vunpack.c.l.b16 %v479
    %v574 = vunpack.c.h.b16 %v479
    %v575 = vunpack.c.l.b16 %v480
    %v576 = vunpack.c.h.b16 %v480
    %v577 = vunpack.c.l.b16 %v481
    %v578 = vunpack.c.h.b16 %v481
    %v579 = vunpack.c.l.b16 %v482
    %v580 = vunpack.c.h.b16 %v482
    %v581 = vunpack.c.l.b16 %v483
    %v582 = vunpack.c.h.b16 %v483
    %v583 = vunpack.c.l.b16 %v484
    %v584 = vunpack.c.h.b16 %v484
    %v585 = vpack.c.b16 %v525, %v521
    %v586 = vpack.c.b16 %v526, %v522
    %v587 = vpack.c.b16 %v527, %v523
    %v588 = vpack.c.b16 %v528, %v524
    %v589 = vpack.c.b16 %v533, %v529
    %v590 = vpack.c.b16 %v534, %v530
    %v591 = vpack.c.b16 %v535, %v531
    %v592 = vpack.c.b16 %v536, %v532
    %v593 = vpack.c.b16 %v541, %v537
    %v594 = vpack.c.b16 %v542, %v538
    %v595 = vpack.c.b16 %v543, %v539
    %v596 = vpack.c.b16 %v544, %v540
    %v597 = vpack.c.b16 %v549, %v545
    %v598 = vpack.c.b16 %v550, %v546
    %v599 = vpack.c.b16 %v551, %v547
    %v600 = vpack.c.b16 %v552, %v548
    %v601 = vpack.c.b16 %v557, %v553
    %v602 = vpack.c.b16 %v558, %v554
    %v603 = vpack.c.b16 %v559, %v555
    %v604 = vpack.c.b16 %v560, %v556
    %v605 = vpack.c.b16 %v565, %v561
    %v606 = vpack.c.b16 %v566, %v562
    %v607 = vpack.c.b16 %v567, %v563
    %v608 = vpack.c.b16 %v568, %v564
    %v609 = vpack.c.b16 %v573, %v569
    %v610 = vpack.c.b16 %v574, %v570
    %v611 = vpack.c.b16 %v575, %v571
    %v612 = vpack.c.b16 %v576, %v572
    %v613 = vpack.c.b16 %v581, %v577
    %v614 = vpack.c.b16 %v582, %v578
    %v615 = vpack.c.b16 %v583, %v579
    %v616 = vpack.c.b16 %v584, %v580
    %649 = vmatprep.subr.bf16.mxu0 %v586
    %650 = vmatpush1.bf16.msra.mxu0 %v585
    %651 = vmatprep.subr.bf16.mxu0 %v590
    %652 = vmatpush1.bf16.msra.mxu0 %v589
    %653 = vmatprep.subr.bf16.mxu0 %v594
    %654 = vmatpush1.bf16.msra.mxu0 %v593
    %655 = vmatprep.subr.bf16.mxu0 %v598
    %656 = vmatpush1.bf16.msra.mxu0 %v597
    %657 = vmatprep.subr.bf16.mxu0 %v602
    %658 = vmatpush1.bf16.msra.mxu0 %v601
    %659 = vmatprep.subr.bf16.mxu0 %v606
    %660 = vmatpush1.bf16.msra.mxu0 %v605
    %661 = vmatprep.subr.bf16.mxu0 %v610
    %662 = vmatpush1.bf16.msra.mxu0 %v609
    %663 = vmatprep.subr.bf16.mxu0 %v614
    %664 = vmatpush1.bf16.msra.mxu0 %v613
    %665 = vmatprep.subr.bf16.mxu0 0
    %666 = vmatpush1.bf16.msra.mxu0 0
    %667 = vmatprep.subr.bf16.mxu0 0
    %668 = vmatpush1.bf16.msra.mxu0 0
    %669 = vmatprep.subr.bf16.mxu0 0
    %670 = vmatpush1.bf16.msra.mxu0 0
    %671 = vmatprep.subr.bf16.mxu0 0
    %672 = vmatpush1.bf16.msra.mxu0 0
    %673 = vmatprep.subr.bf16.mxu0 0
    %674 = vmatpush1.bf16.msra.mxu0 0
    %675 = vmatprep.subr.bf16.mxu0 0
    %676 = vmatpush1.bf16.msra.mxu0 0
    %677 = vmatprep.subr.bf16.mxu0 0
    %678 = vmatpush1.bf16.msra.mxu0 0
    %679 = vmatprep.subr.bf16.mxu0 0
    %680 = vmatpush1.bf16.msra.mxu0 0
    %681 = vmatprep.mubr.bf16.mxu0 0
    %682 = vmatmul.mubr.bf16.gmra.mrb[0].mxu0 0
    %v683 = vpop.f32.mrb[0].mxu0
    %v684 = vadd.f32 0.0, %v683
    %v685 = vpop.f32.mrb[0].mxu0
    %v686 = vadd.f32 0.0, %v685
    %v687 = vpop.f32.mrb[0].mxu0
    %v688 = vpop.f32.mrb[0].mxu0
    %689 = vdwg.mxu0
    %690 = vmatprep.subr.bf16.mxu0 %v588
    %691 = vmatpush1.bf16.msra.mxu0 %v587
    %692 = vmatprep.subr.bf16.mxu0 %v592
    %693 = vmatpush1.bf16.msra.mxu0 %v591
    %694 = vmatprep.subr.bf16.mxu0 %v596
    %695 = vmatpush1.bf16.msra.mxu0 %v595
    %696 = vmatprep.subr.bf16.mxu0 %v600
    %697 = vmatpush1.bf16.msra.mxu0 %v599
    %698 = vmatprep.subr.bf16.mxu0 %v604
    %699 = vmatpush1.bf16.msra.mxu0 %v603
    %700 = vmatprep.subr.bf16.mxu0 %v608
    %701 = vmatpush1.bf16.msra.mxu0 %v607
    %702 = vmatprep.subr.bf16.mxu0 %v612
    %703 = vmatpush1.bf16.msra.mxu0 %v611
    %704 = vmatprep.subr.bf16.mxu0 %v616
    %705 = vmatpush1.bf16.msra.mxu0 %v615
    %706 = vmatprep.subr.bf16.mxu0 0
    %707 = vmatpush1.bf16.msra.mxu0 0
    %708 = vmatprep.subr.bf16.mxu0 0
    %709 = vmatpush1.bf16.msra.mxu0 0
    %710 = vmatprep.subr.bf16.mxu0 0
    %711 = vmatpush1.bf16.msra.mxu0 0
    %712 = vmatprep.subr.bf16.mxu0 0
    %713 = vmatpush1.bf16.msra.mxu0 0
    %714 = vmatprep.subr.bf16.mxu0 0
    %715 = vmatpush1.bf16.msra.mxu0 0
    %716 = vmatprep.subr.bf16.mxu0 0
    %717 = vmatpush1.bf16.msra.mxu0 0
    %718 = vmatprep.subr.bf16.mxu0 0
    %719 = vmatpush1.bf16.msra.mxu0 0
    %720 = vmatprep.subr.bf16.mxu0 0
    %721 = vmatpush1.bf16.msra.mxu0 0
    %722 = vmatprep.mubr.bf16.mxu0 0
    %723 = vmatmul.mubr.bf16.gmra.mrb[0].mxu0 0
    %v724 = vpop.f32.mrb[0].mxu0
    %v725 = vadd.f32 0.0, %v724
    %v726 = vpop.f32.mrb[0].mxu0
    %v727 = vadd.f32 0.0, %v726
    %v728 = vpop.f32.mrb[0].mxu0
    %v729 = vpop.f32.mrb[0].mxu0
    %730 = vdwg.mxu0
    %v731 = vadd.f32 %v485, %v684
    %v732 = vadd.f32 %v486, %v686
    %v733 = vadd.f32 %v487, %v725
    %v734 = vadd.f32 %v488, %v727
    %v735 = vxor.u32 %v731, 2147483648
    %v736 = vmul.f32 %v735, 1.442695
    %v737 = vpow.pop %v736
    %v738 = vadd.f32 %v737, 1.0
    %v739 = vrcp.pop %v738
    %v740 = vmul.f32 1.0, %v739
    %v741 = vxor.u32 %v732, 2147483648
    %v742 = vmul.f32 %v741, 1.442695
    %v743 = vpow.pop %v742
    %v744 = vadd.f32 %v743, 1.0
    %v745 = vrcp.pop %v744
    %v746 = vmul.f32 1.0, %v745
    %v747 = vtanh.pop %v733
    %v748 = vxor.u32 %v734, 2147483648
    %v749 = vmul.f32 %v748, 1.442695
    %v750 = vpow.pop %v749
    %v751 = vadd.f32 %v750, 1.0
    %v752 = vrcp.pop %v751
    %v753 = vmul.f32 1.0, %v752
    %v754 = vmul.f32 %v746, 0.0
    %v755 = vmul.f32 %v740, %v747
    %v756 = vadd.f32 %v754, %v755
    %v757 = vtanh.pop %v756
    %v758 = vmul.f32 %v753, %v757
    %s759 = scalar_lea.vmem [#allocation2], 32
    %v760 = vld [vmem:[%s759] sm:$0xff]
    %v761 = vld [vmem:[%s759 + $0x8] sm:$0xff]
    %v762 = vld [vmem:[%s759 + $0x10] sm:$0xff]
    %v763 = vld [vmem:[%s759 + $0x18] sm:$0xff]
    %v764 = vpack.c.bf16 %v758, %v758
    %765 = vmatprep.subr.bf16.mxu0 %v586
    %766 = vmatpush1.bf16.msra.mxu0 %v585
    %767 = vmatprep.subr.bf16.mxu0 %v590
    %768 = vmatpush1.bf16.msra.mxu0 %v589
    %769 = vmatprep.subr.bf16.mxu0 %v594
    %770 = vmatpush1.bf16.msra.mxu0 %v593
    %771 = vmatprep.subr.bf16.mxu0 %v598
    %772 = vmatpush1.bf16.msra.mxu0 %v597
    %773 = vmatprep.subr.bf16.mxu0 %v602
    %774 = vmatpush1.bf16.msra.mxu0 %v601
    %775 = vmatprep.subr.bf16.mxu0 %v606
    %776 = vmatpush1.bf16.msra.mxu0 %v605
    %777 = vmatprep.subr.bf16.mxu0 %v610
    %778 = vmatpush1.bf16.msra.mxu0 %v609
    %779 = vmatprep.subr.bf16.mxu0 %v614
    %780 = vmatpush1.bf16.msra.mxu0 %v613
    %781 = vmatprep.subr.bf16.mxu0 0
    %782 = vmatpush1.bf16.msra.mxu0 0
    %783 = vmatprep.subr.bf16.mxu0 0
    %784 = vmatpush1.bf16.msra.mxu0 0
    %785 = vmatprep.subr.bf16.mxu0 0
    %786 = vmatpush1.bf16.msra.mxu0 0
    %787 = vmatprep.subr.bf16.mxu0 0
    %788 = vmatpush1.bf16.msra.mxu0 0
    %789 = vmatprep.subr.bf16.mxu0 0
    %790 = vmatpush1.bf16.msra.mxu0 0
    %791 = vmatprep.subr.bf16.mxu0 0
    %792 = vmatpush1.bf16.msra.mxu0 0
    %793 = vmatprep.subr.bf16.mxu0 0
    %794 = vmatpush1.bf16.msra.mxu0 0
    %795 = vmatprep.subr.bf16.mxu0 0
    %796 = vmatpush1.bf16.msra.mxu0 0
    %797 = vmatprep.mubr.bf16.mxu0 0
    %798 = vmatmul.mubr.bf16.gmra.mrb[0].mxu0 %v764
    %v799 = vpop.f32.mrb[0].mxu0
    %v800 = vadd.f32 0.0, %v799
    %v801 = vpop.f32.mrb[0].mxu0
    %v802 = vadd.f32 0.0, %v801
    %v803 = vpop.f32.mrb[0].mxu0
    %v804 = vpop.f32.mrb[0].mxu0
    %805 = vdwg.mxu0
    %806 = vmatprep.subr.bf16.mxu0 %v588
    %807 = vmatpush1.bf16.msra.mxu0 %v587
    %808 = vmatprep.subr.bf16.mxu0 %v592
    %809 = vmatpush1.bf16.msra.mxu0 %v591
    %810 = vmatprep.subr.bf16.mxu0 %v596
    %811 = vmatpush1.bf16.msra.mxu0 %v595
    %812 = vmatprep.subr.bf16.mxu0 %v600
    %813 = vmatpush1.bf16.msra.mxu0 %v599
    %814 = vmatprep.subr.bf16.mxu0 %v604
    %815 = vmatpush1.bf16.msra.mxu0 %v603
    %816 = vmatprep.subr.bf16.mxu0 %v608
    %817 = vmatpush1.bf16.msra.mxu0 %v607
    %818 = vmatprep.subr.bf16.mxu0 %v612
    %819 = vmatpush1.bf16.msra.mxu0 %v611
    %820 = vmatprep.subr.bf16.mxu0 %v616
    %821 = vmatpush1.bf16.msra.mxu0 %v615
    %822 = vmatprep.subr.bf16.mxu0 0
    %823 = vmatpush1.bf16.msra.mxu0 0
    %824 = vmatprep.subr.bf16.mxu0 0
    %825 = vmatpush1.bf16.msra.mxu0 0
    %826 = vmatprep.subr.bf16.mxu0 0
    %827 = vmatpush1.bf16.msra.mxu0 0
    %828 = vmatprep.subr.bf16.mxu0 0
    %829 = vmatpush1.bf16.msra.mxu0 0
    %830 = vmatprep.subr.bf16.mxu0 0
    %831 = vmatpush1.bf16.msra.mxu0 0
    %832 = vmatprep.subr.bf16.mxu0 0
    %833 = vmatpush1.bf16.msra.mxu0 0
    %834 = vmatprep.subr.bf16.mxu0 0
    %835 = vmatpush1.bf16.msra.mxu0 0
    %836 = vmatprep.subr.bf16.mxu0 0
    %837 = vmatpush1.bf16.msra.mxu0 0
    %838 = vmatprep.mubr.bf16.mxu0 0
    %839 = vmatmul.mubr.bf16.gmra.mrb[0].mxu0 %v764
    %v840 = vpop.f32.mrb[0].mxu0
    %v841 = vadd.f32 0.0, %v840
    %v842 = vpop.f32.mrb[0].mxu0
    %v843 = vadd.f32 0.0, %v842
    %v844 = vpop.f32.mrb[0].mxu0
    %v845 = vpop.f32.mrb[0].mxu0
    %846 = vdwg.mxu0
    %v847 = vadd.f32 %v760, %v800
    %v848 = vadd.f32 %v761, %v802
    %v849 = vadd.f32 %v762, %v841
    %v850 = vadd.f32 %v763, %v843
    %v851 = vxor.u32 %v847, 2147483648
    %v852 = vmul.f32 %v851, 1.442695
    %v853 = vpow.pop %v852
    %v854 = vadd.f32 %v853, 1.0
    %v855 = vrcp.pop %v854
    %v856 = vmul.f32 1.0, %v855
    %v857 = vxor.u32 %v848, 2147483648
    %v858 = vmul.f32 %v857, 1.442695
    %v859 = vpow.pop %v858
    %v860 = vadd.f32 %v859, 1.0
    %v861 = vrcp.pop %v860
    %v862 = vmul.f32 1.0, %v861
    %v863 = vtanh.pop %v849
    %v864 = vxor.u32 %v850, 2147483648
    %v865 = vmul.f32 %v864, 1.442695
    %v866 = vpow.pop %v865
    %v867 = vadd.f32 %v866, 1.0
    %v868 = vrcp.pop %v867
    %v869 = vmul.f32 1.0, %v868
    %v870 = vmul.f32 %v862, %v756
    %v871 = vmul.f32 %v856, %v863
    %v872 = vadd.f32 %v870, %v871
    %v873 = vtanh.pop %v872
    %v874 = vmul.f32 %v869, %v873
    %s875 = scalar_lea.vmem [#allocation2], 64
    %v876 = vld [vmem:[%s875] sm:$0xff]
    %v877 = vld [vmem:[%s875 + $0x8] sm:$0xff]
    %v878 = vld [vmem:[%s875 + $0x10] sm:$0xff]
    %v879 = vld [vmem:[%s875 + $0x18] sm:$0xff]
    %v880 = vpack.c.bf16 %v874, %v874
    %881 = vmatprep.subr.bf16.mxu0 %v586
    %882 = vmatpush1.bf16.msra.mxu0 %v585
    %883 = vmatprep.subr.bf16.mxu0 %v590
    %884 = vmatpush1.bf16.msra.mxu0 %v589
    %885 = vmatprep.subr.bf16.mxu0 %v594
    %886 = vmatpush1.bf16.msra.mxu0 %v593
    %887 = vmatprep.subr.bf16.mxu0 %v598
    %888 = vmatpush1.bf16.msra.mxu0 %v597
    %889 = vmatprep.subr.bf16.mxu0 %v602
    %890 = vmatpush1.bf16.msra.mxu0 %v601
    %891 = vmatprep.subr.bf16.mxu0 %v606
    %892 = vmatpush1.bf16.msra.mxu0 %v605
    %893 = vmatprep.subr.bf16.mxu0 %v610
    %894 = vmatpush1.bf16.msra.mxu0 %v609
    %895 = vmatprep.subr.bf16.mxu0 %v614
    %896 = vmatpush1.bf16.msra.mxu0 %v613
    %897 = vmatprep.subr.bf16.mxu0 0
    %898 = vmatpush1.bf16.msra.mxu0 0
    %899 = vmatprep.subr.bf16.mxu0 0
    %900 = vmatpush1.bf16.msra.mxu0 0
    %901 = vmatprep.subr.bf16.mxu0 0
    %902 = vmatpush1.bf16.msra.mxu0 0
    %903 = vmatprep.subr.bf16.mxu0 0
    %904 = vmatpush1.bf16.msra.mxu0 0
    %905 = vmatprep.subr.bf16.mxu0 0
    %906 = vmatpush1.bf16.msra.mxu0 0
    %907 = vmatprep.subr.bf16.mxu0 0
    %908 = vmatpush1.bf16.msra.mxu0 0
    %909 = vmatprep.subr.bf16.mxu0 0
    %910 = vmatpush1.bf16.msra.mxu0 0
    %911 = vmatprep.subr.bf16.mxu0 0
    %912 = vmatpush1.bf16.msra.mxu0 0
    %913 = vmatprep.mubr.bf16.mxu0 0
    %914 = vmatmul.mubr.bf16.gmra.mrb[0].mxu0 %v880
    %v915 = vpop.f32.mrb[0].mxu0
    %v916 = vadd.f32 0.0, %v915
    %v917 = vpop.f32.mrb[0].mxu0
    %v918 = vadd.f32 0.0, %v917
    %v919 = vpop.f32.mrb[0].mxu0
    %v920 = vpop.f32.mrb[0].mxu0
    %921 = vdwg.mxu0
    %922 = vmatprep.subr.bf16.mxu0 %v588
    %923 = vmatpush1.bf16.msra.mxu0 %v587
    %924 = vmatprep.subr.bf16.mxu0 %v592
    %925 = vmatpush1.bf16.msra.mxu0 %v591
    %926 = vmatprep.subr.bf16.mxu0 %v596
    %927 = vmatpush1.bf16.msra.mxu0 %v595
    %928 = vmatprep.subr.bf16.mxu0 %v600
    %929 = vmatpush1.bf16.msra.mxu0 %v599
    %930 = vmatprep.subr.bf16.mxu0 %v604
    %931 = vmatpush1.bf16.msra.mxu0 %v603
    %932 = vmatprep.subr.bf16.mxu0 %v608
    %933 = vmatpush1.bf16.msra.mxu0 %v607
    %934 = vmatprep.subr.bf16.mxu0 %v612
    %935 = vmatpush1.bf16.msra.mxu0 %v611
    %936 = vmatprep.subr.bf16.mxu0 %v616
    %937 = vmatpush1.bf16.msra.mxu0 %v615
    %938 = vmatprep.subr.bf16.mxu0 0
    %939 = vmatpush1.bf16.msra.mxu0 0
    %940 = vmatprep.subr.bf16.mxu0 0
    %941 = vmatpush1.bf16.msra.mxu0 0
    %942 = vmatprep.subr.bf16.mxu0 0
    %943 = vmatpush1.bf16.msra.mxu0 0
    %944 = vmatprep.subr.bf16.mxu0 0
    %945 = vmatpush1.bf16.msra.mxu0 0
    %946 = vmatprep.subr.bf16.mxu0 0
    %947 = vmatpush1.bf16.msra.mxu0 0
    %948 = vmatprep.subr.bf16.mxu0 0
    %949 = vmatpush1.bf16.msra.mxu0 0
    %950 = vmatprep.subr.bf16.mxu0 0
    %951 = vmatpush1.bf16.msra.mxu0 0
    %952 = vmatprep.subr.bf16.mxu0 0
    %953 = vmatpush1.bf16.msra.mxu0 0
    %954 = vmatprep.mubr.bf16.mxu0 0
    %955 = vmatmul.mubr.bf16.gmra.mrb[0].mxu0 %v880
    %v956 = vpop.f32.mrb[0].mxu0
    %v957 = vadd.f32 0.0, %v956
    %v958 = vpop.f32.mrb[0].mxu0
    %v959 = vadd.f32 0.0, %v958
    %v960 = vpop.f32.mrb[0].mxu0
    %v961 = vpop.f32.mrb[0].mxu0
    %962 = vdwg.mxu0
    %v963 = vadd.f32 %v876, %v916
    %v964 = vadd.f32 %v877, %v918
    %v965 = vadd.f32 %v878, %v957
    %v966 = vadd.f32 %v879, %v959
    %v967 = vxor.u32 %v963, 2147483648
    %v968 = vmul.f32 %v967, 1.442695
    %v969 = vpow.pop %v968
    %v970 = vadd.f32 %v969, 1.0
    %v971 = vrcp.pop %v970
    %v972 = vmul.f32 1.0, %v971
    %v973 = vxor.u32 %v964, 2147483648
    %v974 = vmul.f32 %v973, 1.442695
    %v975 = vpow.pop %v974
    %v976 = vadd.f32 %v975, 1.0
    %v977 = vrcp.pop %v976
    %v978 = vmul.f32 1.0, %v977
    %v979 = vtanh.pop %v965
    %v980 = vxor.u32 %v966, 2147483648
    %v981 = vmul.f32 %v980, 1.442695
    %v982 = vpow.pop %v981
    %v983 = vadd.f32 %v982, 1.0
    %v984 = vrcp.pop %v983
    %v985 = vmul.f32 1.0, %v984
    %v986 = vmul.f32 %v978, %v872
    %v987 = vmul.f32 %v972, %v979
    %v988 = vadd.f32 %v986, %v987
    %v989 = vtanh.pop %v988
    %v990 = vmul.f32 %v985, %v989
    %s991 = scalar_lea.vmem [#allocation2], 96
    %v992 = vld [vmem:[%s991] sm:$0xff]
    %v993 = vld [vmem:[%s991 + $0x8] sm:$0xff]
    %v994 = vld [vmem:[%s991 + $0x10] sm:$0xff]
    %v995 = vld [vmem:[%s991 + $0x18] sm:$0xff]
    %v996 = vpack.c.bf16 %v990, %v990
    %997 = vmatprep.subr.bf16.mxu0 %v586
    %998 = vmatpush1.bf16.msra.mxu0 %v585
    %999 = vmatprep.subr.bf16.mxu0 %v590
    %1000 = vmatpush1.bf16.msra.mxu0 %v589
    %1001 = vmatprep.subr.bf16.mxu0 %v594
    %1002 = vmatpush1.bf16.msra.mxu0 %v593
    %1003 = vmatprep.subr.bf16.mxu0 %v598
    %1004 = vmatpush1.bf16.msra.mxu0 %v597
    %1005 = vmatprep.subr.bf16.mxu0 %v602
    %1006 = vmatpush1.bf16.msra.mxu0 %v601
    %1007 = vmatprep.subr.bf16.mxu0 %v606
    %1008 = vmatpush1.bf16.msra.mxu0 %v605
    %1009 = vmatprep.subr.bf16.mxu0 %v610
    %1010 = vmatpush1.bf16.msra.mxu0 %v609
    %1011 = vmatprep.subr.bf16.mxu0 %v614
    %1012 = vmatpush1.bf16.msra.mxu0 %v613
    %1013 = vmatprep.subr.bf16.mxu0 0
    %1014 = vmatpush1.bf16.msra.mxu0 0
    %1015 = vmatprep.subr.bf16.mxu0 0
    %1016 = vmatpush1.bf16.msra.mxu0 0
    %1017 = vmatprep.subr.bf16.mxu0 0
    %1018 = vmatpush1.bf16.msra.mxu0 0
    %1019 = vmatprep.subr.bf16.mxu0 0
    %1020 = vmatpush1.bf16.msra.mxu0 0
    %1021 = vmatprep.subr.bf16.mxu0 0
    %1022 = vmatpush1.bf16.msra.mxu0 0
    %1023 = vmatprep.subr.bf16.mxu0 0
    %1024 = vmatpush1.bf16.msra.mxu0 0
    %1025 = vmatprep.subr.bf16.mxu0 0
    %1026 = vmatpush1.bf16.msra.mxu0 0
    %1027 = vmatprep.subr.bf16.mxu0 0
    %1028 = vmatpush1.bf16.msra.mxu0 0
    %1029 = vmatprep.mubr.bf16.mxu0 0
    %1030 = vmatmul.mubr.bf16.gmra.mrb[0].mxu0 %v996
    %v1031 = vpop.f32.mrb[0].mxu0
    %v1032 = vadd.f32 0.0, %v1031
    %v1033 = vpop.f32.mrb[0].mxu0
    %v1034 = vadd.f32 0.0, %v1033
    %v1035 = vpop.f32.mrb[0].mxu0
    %v1036 = vpop.f32.mrb[0].mxu0
    %1037 = vdwg.mxu0
    %1038 = vmatprep.subr.bf16.mxu0 %v588
    %1039 = vmatpush1.bf16.msra.mxu0 %v587
    %1040 = vmatprep.subr.bf16.mxu0 %v592
    %1041 = vmatpush1.bf16.msra.mxu0 %v591
    %1042 = vmatprep.subr.bf16.mxu0 %v596
    %1043 = vmatpush1.bf16.msra.mxu0 %v595
    %1044 = vmatprep.subr.bf16.mxu0 %v600
    %1045 = vmatpush1.bf16.msra.mxu0 %v599
    %1046 = vmatprep.subr.bf16.mxu0 %v604
    %1047 = vmatpush1.bf16.msra.mxu0 %v603
    %1048 = vmatprep.subr.bf16.mxu0 %v608
    %1049 = vmatpush1.bf16.msra.mxu0 %v607
    %1050 = vmatprep.subr.bf16.mxu0 %v612
    %1051 = vmatpush1.bf16.msra.mxu0 %v611
    %1052 = vmatprep.subr.bf16.mxu0 %v616
    %1053 = vmatpush1.bf16.msra.mxu0 %v615
    %1054 = vmatprep.subr.bf16.mxu0 0
    %1055 = vmatpush1.bf16.msra.mxu0 0
    %1056 = vmatprep.subr.bf16.mxu0 0
    %1057 = vmatpush1.bf16.msra.mxu0 0
    %1058 = vmatprep.subr.bf16.mxu0 0
    %1059 = vmatpush1.bf16.msra.mxu0 0
    %1060 = vmatprep.subr.bf16.mxu0 0
    %1061 = vmatpush1.bf16.msra.mxu0 0
    %1062 = vmatprep.subr.bf16.mxu0 0
    %1063 = vmatpush1.bf16.msra.mxu0 0
    %1064 = vmatprep.subr.bf16.mxu0 0
    %1065 = vmatpush1.bf16.msra.mxu0 0
    %1066 = vmatprep.subr.bf16.mxu0 0
    %1067 = vmatpush1.bf16.msra.mxu0 0
    %1068 = vmatprep.subr.bf16.mxu0 0
    %1069 = vmatpush1.bf16.msra.mxu0 0
    %1070 = vmatprep.mubr.bf16.mxu0 0
    %1071 = vmatmul.mubr.bf16.gmra.mrb[0].mxu0 %v996
    %v1072 = vpop.f32.mrb[0].mxu0
    %v1073 = vadd.f32 0.0, %v1072
    %v1074 = vpop.f32.mrb[0].mxu0
    %v1075 = vadd.f32 0.0, %v1074
    %v1076 = vpop.f32.mrb[0].mxu0
    %v1077 = vpop.f32.mrb[0].mxu0
    %1078 = vdwg.mxu0
    %v1079 = vadd.f32 %v992, %v1032
    %v1080 = vadd.f32 %v993, %v1034
    %v1081 = vadd.f32 %v994, %v1073
    %v1082 = vadd.f32 %v995, %v1075
    %v1083 = vxor.u32 %v1079, 2147483648
    %v1084 = vmul.f32 %v1083, 1.442695
    %v1085 = vpow.pop %v1084
    %v1086 = vadd.f32 %v1085, 1.0
    %v1087 = vrcp.pop %v1086
    %v1088 = vmul.f32 1.0, %v1087
    %v1089 = vxor.u32 %v1080, 2147483648
    %v1090 = vmul.f32 %v1089, 1.442695
    %v1091 = vpow.pop %v1090
    %v1092 = vadd.f32 %v1091, 1.0
    %v1093 = vrcp.pop %v1092
    %v1094 = vmul.f32 1.0, %v1093
    %v1095 = vtanh.pop %v1081
    %v1096 = vxor.u32 %v1082, 2147483648
    %v1097 = vmul.f32 %v1096, 1.442695
    %v1098 = vpow.pop %v1097
    %v1099 = vadd.f32 %v1098, 1.0
    %v1100 = vrcp.pop %v1099
    %v1101 = vmul.f32 1.0, %v1100
    %v1102 = vmul.f32 %v1094, %v988
    %v1103 = vmul.f32 %v1088, %v1095
    %v1104 = vadd.f32 %v1102, %v1103
    %v1105 = vtanh.pop %v1104
    %v1106 = vmul.f32 %v1101, %v1105
    %s1107 = scalar_lea.vmem [#allocation2], 128
    %v1108 = vld [vmem:[%s1107] sm:$0xff]
    %v1109 = vld [vmem:[%s1107 + $0x8] sm:$0xff]
    %v1110 = vld [vmem:[%s1107 + $0x10] sm:$0xff]
    %v1111 = vld [vmem:[%s1107 + $0x18] sm:$0xff]
    %v1112 = vpack.c.bf16 %v1106, %v1106
    %1113 = vmatprep.subr.bf16.mxu0 %v586
    %1114 = vmatpush1.bf16.msra.mxu0 %v585
    %1115 = vmatprep.subr.bf16.mxu0 %v590
    %1116 = vmatpush1.bf16.msra.mxu0 %v589
    %1117 = vmatprep.subr.bf16.mxu0 %v594
    %1118 = vmatpush1.bf16.msra.mxu0 %v593
    %1119 = vmatprep.subr.bf16.mxu0 %v598
    %1120 = vmatpush1.bf16.msra.mxu0 %v597
    %1121 = vmatprep.subr.bf16.mxu0 %v602
    %1122 = vmatpush1.bf16.msra.mxu0 %v601
    %1123 = vmatprep.subr.bf16.mxu0 %v606
    %1124 = vmatpush1.bf16.msra.mxu0 %v605
    %1125 = vmatprep.subr.bf16.mxu0 %v610
    %1126 = vmatpush1.bf16.msra.mxu0 %v609
    %1127 = vmatprep.subr.bf16.mxu0 %v614
    %1128 = vmatpush1.bf16.msra.mxu0 %v613
    %1129 = vmatprep.subr.bf16.mxu0 0
    %1130 = vmatpush1.bf16.msra.mxu0 0
    %1131 = vmatprep.subr.bf16.mxu0 0
    %1132 = vmatpush1.bf16.msra.mxu0 0
    %1133 = vmatprep.subr.bf16.mxu0 0
    %1134 = vmatpush1.bf16.msra.mxu0 0
    %1135 = vmatprep.subr.bf16.mxu0 0
    %1136 = vmatpush1.bf16.msra.mxu0 0
    %1137 = vmatprep.subr.bf16.mxu0 0
    %1138 = vmatpush1.bf16.msra.mxu0 0
    %1139 = vmatprep.subr.bf16.mxu0 0
    %1140 = vmatpush1.bf16.msra.mxu0 0
    %1141 = vmatprep.subr.bf16.mxu0 0
    %1142 = vmatpush1.bf16.msra.mxu0 0
    %1143 = vmatprep.subr.bf16.mxu0 0
    %1144 = vmatpush1.bf16.msra.mxu0 0
    %1145 = vmatprep.mubr.bf16.mxu0 0
    %1146 = vmatmul.mubr.bf16.gmra.mrb[0].mxu0 %v1112
    %v1147 = vpop.f32.mrb[0].mxu0
    %v1148 = vadd.f32 0.0, %v1147
    %v1149 = vpop.f32.mrb[0].mxu0
    %v1150 = vadd.f32 0.0, %v1149
    %v1151 = vpop.f32.mrb[0].mxu0
    %v1152 = vpop.f32.mrb[0].mxu0
    %1153 = vdwg.mxu0
    %1154 = vmatprep.subr.bf16.mxu0 %v588
    %1155 = vmatpush1.bf16.msra.mxu0 %v587
    %1156 = vmatprep.subr.bf16.mxu0 %v592
    %1157 = vmatpush1.bf16.msra.mxu0 %v591
    %1158 = vmatprep.subr.bf16.mxu0 %v596
    %1159 = vmatpush1.bf16.msra.mxu0 %v595
    %1160 = vmatprep.subr.bf16.mxu0 %v600
    %1161 = vmatpush1.bf16.msra.mxu0 %v599
    %1162 = vmatprep.subr.bf16.mxu0 %v604
    %1163 = vmatpush1.bf16.msra.mxu0 %v603
    %1164 = vmatprep.subr.bf16.mxu0 %v608
    %1165 = vmatpush1.bf16.msra.mxu0 %v607
    %1166 = vmatprep.subr.bf16.mxu0 %v612
    %1167 = vmatpush1.bf16.msra.mxu0 %v611
    %1168 = vmatprep.subr.bf16.mxu0 %v616
    %1169 = vmatpush1.bf16.msra.mxu0 %v615
    %1170 = vmatprep.subr.bf16.mxu0 0
    %1171 = vmatpush1.bf16.msra.mxu0 0
    %1172 = vmatprep.subr.bf16.mxu0 0
    %1173 = vmatpush1.bf16.msra.mxu0 0
    %1174 = vmatprep.subr.bf16.mxu0 0
    %1175 = vmatpush1.bf16.msra.mxu0 0
    %1176 = vmatprep.subr.bf16.mxu0 0
    %1177 = vmatpush1.bf16.msra.mxu0 0
    %1178 = vmatprep.subr.bf16.mxu0 0
    %1179 = vmatpush1.bf16.msra.mxu0 0
    %1180 = vmatprep.subr.bf16.mxu0 0
    %1181 = vmatpush1.bf16.msra.mxu0 0
    %1182 = vmatprep.subr.bf16.mxu0 0
    %1183 = vmatpush1.bf16.msra.mxu0 0
    %1184 = vmatprep.subr.bf16.mxu0 0
    %1185 = vmatpush1.bf16.msra.mxu0 0
    %1186 = vmatprep.mubr.bf16.mxu0 0
    %1187 = vmatmul.mubr.bf16.gmra.mrb[0].mxu0 %v1112
    %v1188 = vpop.f32.mrb[0].mxu0
    %v1189 = vadd.f32 0.0, %v1188
    %v1190 = vpop.f32.mrb[0].mxu0
    %v1191 = vadd.f32 0.0, %v1190
    %v1192 = vpop.f32.mrb[0].mxu0
    %v1193 = vpop.f32.mrb[0].mxu0
    %1194 = vdwg.mxu0
    %v1195 = vadd.f32 %v1108, %v1148
    %v1196 = vadd.f32 %v1109, %v1150
    %v1197 = vadd.f32 %v1110, %v1189
    %v1198 = vadd.f32 %v1111, %v1191
    %v1199 = vxor.u32 %v1195, 2147483648
    %v1200 = vmul.f32 %v1199, 1.442695
    %v1201 = vpow.pop %v1200
    %v1202 = vadd.f32 %v1201, 1.0
    %v1203 = vrcp.pop %v1202
    %v1204 = vmul.f32 1.0, %v1203
    %v1205 = vxor.u32 %v1196, 2147483648
    %v1206 = vmul.f32 %v1205, 1.442695
    %v1207 = vpow.pop %v1206
    %v1208 = vadd.f32 %v1207, 1.0
    %v1209 = vrcp.pop %v1208
    %v1210 = vmul.f32 1.0, %v1209
    %v1211 = vtanh.pop %v1197
    %v1212 = vxor.u32 %v1198, 2147483648
    %v1213 = vmul.f32 %v1212, 1.442695
    %v1214 = vpow.pop %v1213
    %v1215 = vadd.f32 %v1214, 1.0
    %v1216 = vrcp.pop %v1215
    %v1217 = vmul.f32 1.0, %v1216
    %v1218 = vmul.f32 %v1210, %v1104
    %v1219 = vmul.f32 %v1204, %v1211
    %v1220 = vadd.f32 %v1218, %v1219
    %v1221 = vtanh.pop %v1220
    %v1222 = vmul.f32 %v1217, %v1221
    %s1223 = scalar_lea.vmem [#allocation2], 160
    %v1224 = vld [vmem:[%s1223] sm:$0xff]
    %v1225 = vld [vmem:[%s1223 + $0x8] sm:$0xff]
    %v1226 = vld [vmem:[%s1223 + $0x10] sm:$0xff]
    %v1227 = vld [vmem:[%s1223 + $0x18] sm:$0xff]
    %v1228 = vpack.c.bf16 %v1222, %v1222
    %1229 = vmatprep.subr.bf16.mxu0 %v586
    %1230 = vmatpush1.bf16.msra.mxu0 %v585
    %1231 = vmatprep.subr.bf16.mxu0 %v590
    %1232 = vmatpush1.bf16.msra.mxu0 %v589
    %1233 = vmatprep.subr.bf16.mxu0 %v594
    %1234 = vmatpush1.bf16.msra.mxu0 %v593
    %1235 = vmatprep.subr.bf16.mxu0 %v598
    %1236 = vmatpush1.bf16.msra.mxu0 %v597
    %1237 = vmatprep.subr.bf16.mxu0 %v602
    %1238 = vmatpush1.bf16.msra.mxu0 %v601
    %1239 = vmatprep.subr.bf16.mxu0 %v606
    %1240 = vmatpush1.bf16.msra.mxu0 %v605
    %1241 = vmatprep.subr.bf16.mxu0 %v610
    %1242 = vmatpush1.bf16.msra.mxu0 %v609
    %1243 = vmatprep.subr.bf16.mxu0 %v614
    %1244 = vmatpush1.bf16.msra.mxu0 %v613
    %1245 = vmatprep.subr.bf16.mxu0 0
    %1246 = vmatpush1.bf16.msra.mxu0 0
    %1247 = vmatprep.subr.bf16.mxu0 0
    %1248 = vmatpush1.bf16.msra.mxu0 0
    %1249 = vmatprep.subr.bf16.mxu0 0
    %1250 = vmatpush1.bf16.msra.mxu0 0
    %1251 = vmatprep.subr.bf16.mxu0 0
    %1252 = vmatpush1.bf16.msra.mxu0 0
    %1253 = vmatprep.subr.bf16.mxu0 0
    %1254 = vmatpush1.bf16.msra.mxu0 0
    %1255 = vmatprep.subr.bf16.mxu0 0
    %1256 = vmatpush1.bf16.msra.mxu0 0
    %1257 = vmatprep.subr.bf16.mxu0 0
    %1258 = vmatpush1.bf16.msra.mxu0 0
    %1259 = vmatprep.subr.bf16.mxu0 0
    %1260 = vmatpush1.bf16.msra.mxu0 0
    %1261 = vmatprep.mubr.bf16.mxu0 0
    %1262 = vmatmul.mubr.bf16.gmra.mrb[0].mxu0 %v1228
    %v1263 = vpop.f32.mrb[0].mxu0
    %v1264 = vadd.f32 0.0, %v1263
    %v1265 = vpop.f32.mrb[0].mxu0
    %v1266 = vadd.f32 0.0, %v1265
    %v1267 = vpop.f32.mrb[0].mxu0
    %v1268 = vpop.f32.mrb[0].mxu0
    %1269 = vdwg.mxu0
    %1270 = vmatprep.subr.bf16.mxu0 %v588
    %1271 = vmatpush1.bf16.msra.mxu0 %v587
    %1272 = vmatprep.subr.bf16.mxu0 %v592
    %1273 = vmatpush1.bf16.msra.mxu0 %v591
    %1274 = vmatprep.subr.bf16.mxu0 %v596
    %1275 = vmatpush1.bf16.msra.mxu0 %v595
    %1276 = vmatprep.subr.bf16.mxu0 %v600
    %1277 = vmatpush1.bf16.msra.mxu0 %v599
    %1278 = vmatprep.subr.bf16.mxu0 %v604
    %1279 = vmatpush1.bf16.msra.mxu0 %v603
    %1280 = vmatprep.subr.bf16.mxu0 %v608
    %1281 = vmatpush1.bf16.msra.mxu0 %v607
    %1282 = vmatprep.subr.bf16.mxu0 %v612
    %1283 = vmatpush1.bf16.msra.mxu0 %v611
    %1284 = vmatprep.subr.bf16.mxu0 %v616
    %1285 = vmatpush1.bf16.msra.mxu0 %v615
    %1286 = vmatprep.subr.bf16.mxu0 0
    %1287 = vmatpush1.bf16.msra.mxu0 0
    %1288 = vmatprep.subr.bf16.mxu0 0
    %1289 = vmatpush1.bf16.msra.mxu0 0
    %1290 = vmatprep.subr.bf16.mxu0 0
    %1291 = vmatpush1.bf16.msra.mxu0 0
    %1292 = vmatprep.subr.bf16.mxu0 0
    %1293 = vmatpush1.bf16.msra.mxu0 0
    %1294 = vmatprep.subr.bf16.mxu0 0
    %1295 = vmatpush1.bf16.msra.mxu0 0
    %1296 = vmatprep.subr.bf16.mxu0 0
    %1297 = vmatpush1.bf16.msra.mxu0 0
    %1298 = vmatprep.subr.bf16.mxu0 0
    %1299 = vmatpush1.bf16.msra.mxu0 0
    %1300 = vmatprep.subr.bf16.mxu0 0
    %1301 = vmatpush1.bf16.msra.mxu0 0
    %1302 = vmatprep.mubr.bf16.mxu0 0
    %1303 = vmatmul.mubr.bf16.gmra.mrb[0].mxu0 %v1228
    %v1304 = vpop.f32.mrb[0].mxu0
    %v1305 = vadd.f32 0.0, %v1304
    %v1306 = vpop.f32.mrb[0].mxu0
    %v1307 = vadd.f32 0.0, %v1306
    %v1308 = vpop.f32.mrb[0].mxu0
    %v1309 = vpop.f32.mrb[0].mxu0
    %1310 = vdwg.mxu0
    %v1311 = vadd.f32 %v1224, %v1264
    %v1312 = vadd.f32 %v1225, %v1266
    %v1313 = vadd.f32 %v1226, %v1305
    %v1314 = vadd.f32 %v1227, %v1307
    %v1315 = vxor.u32 %v1311, 2147483648
    %v1316 = vmul.f32 %v1315, 1.442695
    %v1317 = vpow.pop %v1316
    %v1318 = vadd.f32 %v1317, 1.0
    %v1319 = vrcp.pop %v1318
    %v1320 = vmul.f32 1.0, %v1319
    %v1321 = vxor.u32 %v1312, 2147483648
    %v1322 = vmul.f32 %v1321, 1.442695
    %v1323 = vpow.pop %v1322
    %v1324 = vadd.f32 %v1323, 1.0
    %v1325 = vrcp.pop %v1324
    %v1326 = vmul.f32 1.0, %v1325
    %v1327 = vtanh.pop %v1313
    %v1328 = vxor.u32 %v1314, 2147483648
    %v1329 = vmul.f32 %v1328, 1.442695
    %v1330 = vpow.pop %v1329
    %v1331 = vadd.f32 %v1330, 1.0
    %v1332 = vrcp.pop %v1331
    %v1333 = vmul.f32 1.0, %v1332
    %v1334 = vmul.f32 %v1326, %v1220
    %v1335 = vmul.f32 %v1320, %v1327
    %v1336 = vadd.f32 %v1334, %v1335
    %v1337 = vtanh.pop %v1336
    %v1338 = vmul.f32 %v1333, %v1337
    %s1339 = scalar_lea.vmem [#allocation2], 192
    %v1340 = vld [vmem:[%s1339] sm:$0xff]
    %v1341 = vld [vmem:[%s1339 + $0x8] sm:$0xff]
    %v1342 = vld [vmem:[%s1339 + $0x10] sm:$0xff]
    %v1343 = vld [vmem:[%s1339 + $0x18] sm:$0xff]
    %v1344 = vpack.c.bf16 %v1338, %v1338
    %1345 = vmatprep.subr.bf16.mxu0 %v586
    %1346 = vmatpush1.bf16.msra.mxu0 %v585
    %1347 = vmatprep.subr.bf16.mxu0 %v590
    %1348 = vmatpush1.bf16.msra.mxu0 %v589
    %1349 = vmatprep.subr.bf16.mxu0 %v594
    %1350 = vmatpush1.bf16.msra.mxu0 %v593
    %1351 = vmatprep.subr.bf16.mxu0 %v598
    %1352 = vmatpush1.bf16.msra.mxu0 %v597
    %1353 = vmatprep.subr.bf16.mxu0 %v602
    %1354 = vmatpush1.bf16.msra.mxu0 %v601
    %1355 = vmatprep.subr.bf16.mxu0 %v606
    %1356 = vmatpush1.bf16.msra.mxu0 %v605
    %1357 = vmatprep.subr.bf16.mxu0 %v610
    %1358 = vmatpush1.bf16.msra.mxu0 %v609
    %1359 = vmatprep.subr.bf16.mxu0 %v614
    %1360 = vmatpush1.bf16.msra.mxu0 %v613
    %1361 = vmatprep.subr.bf16.mxu0 0
    %1362 = vmatpush1.bf16.msra.mxu0 0
    %1363 = vmatprep.subr.bf16.mxu0 0
    %1364 = vmatpush1.bf16.msra.mxu0 0
    %1365 = vmatprep.subr.bf16.mxu0 0
    %1366 = vmatpush1.bf16.msra.mxu0 0
    %1367 = vmatprep.subr.bf16.mxu0 0
    %1368 = vmatpush1.bf16.msra.mxu0 0
    %1369 = vmatprep.subr.bf16.mxu0 0
    %1370 = vmatpush1.bf16.msra.mxu0 0
    %1371 = vmatprep.subr.bf16.mxu0 0
    %1372 = vmatpush1.bf16.msra.mxu0 0
    %1373 = vmatprep.subr.bf16.mxu0 0
    %1374 = vmatpush1.bf16.msra.mxu0 0
    %1375 = vmatprep.subr.bf16.mxu0 0
    %1376 = vmatpush1.bf16.msra.mxu0 0
    %1377 = vmatprep.mubr.bf16.mxu0 0
    %1378 = vmatmul.mubr.bf16.gmra.mrb[0].mxu0 %v1344
    %v1379 = vpop.f32.mrb[0].mxu0
    %v1380 = vadd.f32 0.0, %v1379
    %v1381 = vpop.f32.mrb[0].mxu0
    %v1382 = vadd.f32 0.0, %v1381
    %v1383 = vpop.f32.mrb[0].mxu0
    %v1384 = vpop.f32.mrb[0].mxu0
    %1385 = vdwg.mxu0
    %1386 = vmatprep.subr.bf16.mxu0 %v588
    %1387 = vmatpush1.bf16.msra.mxu0 %v587
    %1388 = vmatprep.subr.bf16.mxu0 %v592
    %1389 = vmatpush1.bf16.msra.mxu0 %v591
    %1390 = vmatprep.subr.bf16.mxu0 %v596
    %1391 = vmatpush1.bf16.msra.mxu0 %v595
    %1392 = vmatprep.subr.bf16.mxu0 %v600
    %1393 = vmatpush1.bf16.msra.mxu0 %v599
    %1394 = vmatprep.subr.bf16.mxu0 %v604
    %1395 = vmatpush1.bf16.msra.mxu0 %v603
    %1396 = vmatprep.subr.bf16.mxu0 %v608
    %1397 = vmatpush1.bf16.msra.mxu0 %v607
    %1398 = vmatprep.subr.bf16.mxu0 %v612
    %1399 = vmatpush1.bf16.msra.mxu0 %v611
    %1400 = vmatprep.subr.bf16.mxu0 %v616
    %1401 = vmatpush1.bf16.msra.mxu0 %v615
    %1402 = vmatprep.subr.bf16.mxu0 0
    %1403 = vmatpush1.bf16.msra.mxu0 0
    %1404 = vmatprep.subr.bf16.mxu0 0
    %1405 = vmatpush1.bf16.msra.mxu0 0
    %1406 = vmatprep.subr.bf16.mxu0 0
    %1407 = vmatpush1.bf16.msra.mxu0 0
    %1408 = vmatprep.subr.bf16.mxu0 0
    %1409 = vmatpush1.bf16.msra.mxu0 0
    %1410 = vmatprep.subr.bf16.mxu0 0
    %1411 = vmatpush1.bf16.msra.mxu0 0
    %1412 = vmatprep.subr.bf16.mxu0 0
    %1413 = vmatpush1.bf16.msra.mxu0 0
    %1414 = vmatprep.subr.bf16.mxu0 0
    %1415 = vmatpush1.bf16.msra.mxu0 0
    %1416 = vmatprep.subr.bf16.mxu0 0
    %1417 = vmatpush1.bf16.msra.mxu0 0
    %1418 = vmatprep.mubr.bf16.mxu0 0
    %1419 = vmatmul.mubr.bf16.gmra.mrb[0].mxu0 %v1344
    %v1420 = vpop.f32.mrb[0].mxu0
    %v1421 = vadd.f32 0.0, %v1420
    %v1422 = vpop.f32.mrb[0].mxu0
    %v1423 = vadd.f32 0.0, %v1422
    %v1424 = vpop.f32.mrb[0].mxu0
    %v1425 = vpop.f32.mrb[0].mxu0
    %1426 = vdwg.mxu0
    %v1427 = vadd.f32 %v1340, %v1380
    %v1428 = vadd.f32 %v1341, %v1382
    %v1429 = vadd.f32 %v1342, %v1421
    %v1430 = vadd.f32 %v1343, %v1423
    %v1431 = vxor.u32 %v1427, 2147483648
    %v1432 = vmul.f32 %v1431, 1.442695
    %v1433 = vpow.pop %v1432
    %v1434 = vadd.f32 %v1433, 1.0
    %v1435 = vrcp.pop %v1434
    %v1436 = vmul.f32 1.0, %v1435
    %v1437 = vxor.u32 %v1428, 2147483648
    %v1438 = vmul.f32 %v1437, 1.442695
    %v1439 = vpow.pop %v1438
    %v1440 = vadd.f32 %v1439, 1.0
    %v1441 = vrcp.pop %v1440
    %v1442 = vmul.f32 1.0, %v1441
    %v1443 = vtanh.pop %v1429
    %v1444 = vxor.u32 %v1430, 2147483648
    %v1445 = vmul.f32 %v1444, 1.442695
    %v1446 = vpow.pop %v1445
    %v1447 = vadd.f32 %v1446, 1.0
    %v1448 = vrcp.pop %v1447
    %v1449 = vmul.f32 1.0, %v1448
    %v1450 = vmul.f32 %v1442, %v1336
    %v1451 = vmul.f32 %v1436, %v1443
    %v1452 = vadd.f32 %v1450, %v1451
    %v1453 = vtanh.pop %v1452
    %v1454 = vmul.f32 %v1449, %v1453
    %s1455 = scalar_lea.vmem [#allocation2], 224
    %v1456 = vld [vmem:[%s1455] sm:$0xff]
    %v1457 = vld [vmem:[%s1455 + $0x8] sm:$0xff]
    %v1458 = vld [vmem:[%s1455 + $0x10] sm:$0xff]
    %v1459 = vld [vmem:[%s1455 + $0x18] sm:$0xff]
    %v1460 = vpack.c.bf16 %v1454, %v1454
    %1461 = vmatprep.subr.bf16.mxu0 %v586
    %1462 = vmatpush1.bf16.msra.mxu0 %v585
    %1463 = vmatprep.subr.bf16.mxu0 %v590
    %1464 = vmatpush1.bf16.msra.mxu0 %v589
    %1465 = vmatprep.subr.bf16.mxu0 %v594
    %1466 = vmatpush1.bf16.msra.mxu0 %v593
    %1467 = vmatprep.subr.bf16.mxu0 %v598
    %1468 = vmatpush1.bf16.msra.mxu0 %v597
    %1469 = vmatprep.subr.bf16.mxu0 %v602
    %1470 = vmatpush1.bf16.msra.mxu0 %v601
    %1471 = vmatprep.subr.bf16.mxu0 %v606
    %1472 = vmatpush1.bf16.msra.mxu0 %v605
    %1473 = vmatprep.subr.bf16.mxu0 %v610
    %1474 = vmatpush1.bf16.msra.mxu0 %v609
    %1475 = vmatprep.subr.bf16.mxu0 %v614
    %1476 = vmatpush1.bf16.msra.mxu0 %v613
    %1477 = vmatprep.subr.bf16.mxu0 0
    %1478 = vmatpush1.bf16.msra.mxu0 0
    %1479 = vmatprep.subr.bf16.mxu0 0
    %1480 = vmatpush1.bf16.msra.mxu0 0
    %1481 = vmatprep.subr.bf16.mxu0 0
    %1482 = vmatpush1.bf16.msra.mxu0 0
    %1483 = vmatprep.subr.bf16.mxu0 0
    %1484 = vmatpush1.bf16.msra.mxu0 0
    %1485 = vmatprep.subr.bf16.mxu0 0
    %1486 = vmatpush1.bf16.msra.mxu0 0
    %1487 = vmatprep.subr.bf16.mxu0 0
    %1488 = vmatpush1.bf16.msra.mxu0 0
    %1489 = vmatprep.subr.bf16.mxu0 0
    %1490 = vmatpush1.bf16.msra.mxu0 0
    %1491 = vmatprep.subr.bf16.mxu0 0
    %1492 = vmatpush1.bf16.msra.mxu0 0
    %1493 = vmatprep.mubr.bf16.mxu0 0
    %1494 = vmatmul.mubr.bf16.gmra.mrb[0].mxu0 %v1460
    %v1495 = vpop.f32.mrb[0].mxu0
    %v1496 = vadd.f32 0.0, %v1495
    %v1497 = vpop.f32.mrb[0].mxu0
    %v1498 = vadd.f32 0.0, %v1497
    %v1499 = vpop.f32.mrb[0].mxu0
    %v1500 = vpop.f32.mrb[0].mxu0
    %1501 = vdwg.mxu0
    %1502 = vmatprep.subr.bf16.mxu0 %v588
    %1503 = vmatpush1.bf16.msra.mxu0 %v587
    %1504 = vmatprep.subr.bf16.mxu0 %v592
    %1505 = vmatpush1.bf16.msra.mxu0 %v591
    %1506 = vmatprep.subr.bf16.mxu0 %v596
    %1507 = vmatpush1.bf16.msra.mxu0 %v595
    %1508 = vmatprep.subr.bf16.mxu0 %v600
    %1509 = vmatpush1.bf16.msra.mxu0 %v599
    %1510 = vmatprep.subr.bf16.mxu0 %v604
    %1511 = vmatpush1.bf16.msra.mxu0 %v603
    %1512 = vmatprep.subr.bf16.mxu0 %v608
    %1513 = vmatpush1.bf16.msra.mxu0 %v607
    %1514 = vmatprep.subr.bf16.mxu0 %v612
    %1515 = vmatpush1.bf16.msra.mxu0 %v611
    %1516 = vmatprep.subr.bf16.mxu0 %v616
    %1517 = vmatpush1.bf16.msra.mxu0 %v615
    %1518 = vmatprep.subr.bf16.mxu0 0
    %1519 = vmatpush1.bf16.msra.mxu0 0
    %1520 = vmatprep.subr.bf16.mxu0 0
    %1521 = vmatpush1.bf16.msra.mxu0 0
    %1522 = vmatprep.subr.bf16.mxu0 0
    %1523 = vmatpush1.bf16.msra.mxu0 0
    %1524 = vmatprep.subr.bf16.mxu0 0
    %1525 = vmatpush1.bf16.msra.mxu0 0
    %1526 = vmatprep.subr.bf16.mxu0 0
    %1527 = vmatpush1.bf16.msra.mxu0 0
    %1528 = vmatprep.subr.bf16.mxu0 0
    %1529 = vmatpush1.bf16.msra.mxu0 0
    %1530 = vmatprep.subr.bf16.mxu0 0
    %1531 = vmatpush1.bf16.msra.mxu0 0
    %1532 = vmatprep.subr.bf16.mxu0 0
    %1533 = vmatpush1.bf16.msra.mxu0 0
    %1534 = vmatprep.mubr.bf16.mxu0 0
    %1535 = vmatmul.mubr.bf16.gmra.mrb[0].mxu0 %v1460
    %v1536 = vpop.f32.mrb[0].mxu0
    %v1537 = vadd.f32 0.0, %v1536
    %v1538 = vpop.f32.mrb[0].mxu0
    %v1539 = vadd.f32 0.0, %v1538
    %v1540 = vpop.f32.mrb[0].mxu0
    %v1541 = vpop.f32.mrb[0].mxu0
    %1542 = vdwg.mxu0
    %v1543 = vadd.f32 %v1456, %v1496
    %v1544 = vadd.f32 %v1457, %v1498
    %v1545 = vadd.f32 %v1458, %v1537
    %v1546 = vadd.f32 %v1459, %v1539
    %v1547 = vxor.u32 %v1543, 2147483648
    %v1548 = vmul.f32 %v1547, 1.442695
    %v1549 = vpow.pop %v1548
    %v1550 = vadd.f32 %v1549, 1.0
    %v1551 = vrcp.pop %v1550
    %v1552 = vmul.f32 1.0, %v1551
    %v1553 = vxor.u32 %v1544, 2147483648
    %v1554 = vmul.f32 %v1553, 1.442695
    %v1555 = vpow.pop %v1554
    %v1556 = vadd.f32 %v1555, 1.0
    %v1557 = vrcp.pop %v1556
    %v1558 = vmul.f32 1.0, %v1557
    %v1559 = vtanh.pop %v1545
    %v1560 = vxor.u32 %v1546, 2147483648
    %v1561 = vmul.f32 %v1560, 1.442695
    %v1562 = vpow.pop %v1561
    %v1563 = vadd.f32 %v1562, 1.0
    %v1564 = vrcp.pop %v1563
    %v1565 = vmul.f32 1.0, %v1564
    %v1566 = vmul.f32 %v1558, %v1452
    %v1567 = vmul.f32 %v1552, %v1559
    %v1568 = vadd.f32 %v1566, %v1567
    %v1569 = vtanh.pop %v1568
    %v1570 = vmul.f32 %v1565, %v1569
    %v1571 = vpack.c.bf16 %v1570, %v1570
    %v1572 = vld [vmem:[#allocation9] sm:$0xff]
    %v1573 = vld [vmem:[#allocation9 + $0x8] sm:$0xff]
    %v1574 = vld [vmem:[#allocation9 + $0x10] sm:$0xff]
    %v1575 = vld [vmem:[#allocation9 + $0x18] sm:$0xff]
    %v1576 = vld [vmem:[#allocation9 + $0x20] sm:$0xff]
    %v1577 = vld [vmem:[#allocation9 + $0x28] sm:$0xff]
    %v1578 = vld [vmem:[#allocation9 + $0x30] sm:$0xff]
    %v1579 = vld [vmem:[#allocation9 + $0x38] sm:$0xff]
    %v1580 = vld [vmem:[#allocation9 + $0x40] sm:$0xff]
    %v1581 = vld [vmem:[#allocation9 + $0x48] sm:$0xff]
    %v1582 = vld [vmem:[#allocation9 + $0x50] sm:$0xff]
    %v1583 = vld [vmem:[#allocation9 + $0x58] sm:$0xff]
    %v1584 = vld [vmem:[#allocation9 + $0x60] sm:$0xff]
    %v1585 = vld [vmem:[#allocation9 + $0x68] sm:$0xff]
    %v1586 = vld [vmem:[#allocation9 + $0x70] sm:$0xff]
    %v1587 = vld [vmem:[#allocation9 + $0x78] sm:$0xff]
    %v1588 = vld [vmem:[#allocation9 + $0x80] sm:$0xff]
    %v1589 = vld [vmem:[#allocation9 + $0x88] sm:$0xff]
    %v1590 = vld [vmem:[#allocation9 + $0x90] sm:$0xff]
    %v1591 = vld [vmem:[#allocation9 + $0x98] sm:$0xff]
    %v1592 = vld [vmem:[#allocation9 + $0xa0] sm:$0xff]
    %v1593 = vld [vmem:[#allocation9 + $0xa8] sm:$0xff]
    %v1594 = vld [vmem:[#allocation9 + $0xb0] sm:$0xff]
    %v1595 = vld [vmem:[#allocation9 + $0xb8] sm:$0xff]
    %v1596 = vld [vmem:[#allocation9 + $0xc0] sm:$0xff]
    %v1597 = vld [vmem:[#allocation9 + $0xc8] sm:$0xff]
    %v1598 = vld [vmem:[#allocation9 + $0xd0] sm:$0xff]
    %v1599 = vld [vmem:[#allocation9 + $0xd8] sm:$0xff]
    %v1600 = vld [vmem:[#allocation9 + $0xe0] sm:$0xff]
    %v1601 = vld [vmem:[#allocation9 + $0xe8] sm:$0xff]
    %v1602 = vld [vmem:[#allocation9 + $0xf0] sm:$0xff]
    %v1603 = vld [vmem:[#allocation9 + $0xf8] sm:$0xff]
    %v1604 = vld [vmem:[%s6] sm:$0xf]
    %v1606 = vlaneseq
    %v1607 = vshrl.u32 %v1606, 7
    %v1608 = vsub.s32 0, %v1607
    %v1609 = vrot.slane %v1604, %v1608
    %v1610 = vlaneseq
    %v1611 = vshrl.u32 %v1610, 7
    %v1612 = vsub.s32 1, %v1611
    %v1613 = vrot.slane %v1604, %v1612
    %v1614 = vlaneseq
    %v1615 = vshrl.u32 %v1614, 7
    %v1616 = vsub.s32 2, %v1615
    %v1617 = vrot.slane %v1604, %v1616
    %v1618 = vlaneseq
    %v1619 = vshrl.u32 %v1618, 7
    %v1620 = vsub.s32 3, %v1619
    %v1621 = vrot.slane %v1604, %v1620
    %v1658 = vunpack.c.l.b16 %v1572
    %v1659 = vunpack.c.h.b16 %v1572
    %v1660 = vunpack.c.l.b16 %v1573
    %v1661 = vunpack.c.h.b16 %v1573
    %v1662 = vunpack.c.l.b16 %v1574
    %v1663 = vunpack.c.h.b16 %v1574
    %v1664 = vunpack.c.l.b16 %v1575
    %v1665 = vunpack.c.h.b16 %v1575
    %v1666 = vunpack.c.l.b16 %v1576
    %v1667 = vunpack.c.h.b16 %v1576
    %v1668 = vunpack.c.l.b16 %v1577
    %v1669 = vunpack.c.h.b16 %v1577
    %v1670 = vunpack.c.l.b16 %v1578
    %v1671 = vunpack.c.h.b16 %v1578
    %v1672 = vunpack.c.l.b16 %v1579
    %v1673 = vunpack.c.h.b16 %v1579
    %v1674 = vunpack.c.l.b16 %v1580
    %v1675 = vunpack.c.h.b16 %v1580
    %v1676 = vunpack.c.l.b16 %v1581
    %v1677 = vunpack.c.h.b16 %v1581
    %v1678 = vunpack.c.l.b16 %v1582
    %v1679 = vunpack.c.h.b16 %v1582
    %v1680 = vunpack.c.l.b16 %v1583
    %v1681 = vunpack.c.h.b16 %v1583
    %v1682 = vunpack.c.l.b16 %v1584
    %v1683 = vunpack.c.h.b16 %v1584
    %v1684 = vunpack.c.l.b16 %v1585
    %v1685 = vunpack.c.h.b16 %v1585
    %v1686 = vunpack.c.l.b16 %v1586
    %v1687 = vunpack.c.h.b16 %v1586
    %v1688 = vunpack.c.l.b16 %v1587
    %v1689 = vunpack.c.h.b16 %v1587
    %v1690 = vunpack.c.l.b16 %v1588
    %v1691 = vunpack.c.h.b16 %v1588
    %v1692 = vunpack.c.l.b16 %v1589
    %v1693 = vunpack.c.h.b16 %v1589
    %v1694 = vunpack.c.l.b16 %v1590
    %v1695 = vunpack.c.h.b16 %v1590
    %v1696 = vunpack.c.l.b16 %v1591
    %v1697 = vunpack.c.h.b16 %v1591
    %v1698 = vunpack.c.l.b16 %v1592
    %v1699 = vunpack.c.h.b16 %v1592
    %v1700 = vunpack.c.l.b16 %v1593
    %v1701 = vunpack.c.h.b16 %v1593
    %v1702 = vunpack.c.l.b16 %v1594
    %v1703 = vunpack.c.h.b16 %v1594
    %v1704 = vunpack.c.l.b16 %v1595
    %v1705 = vunpack.c.h.b16 %v1595
    %v1706 = vunpack.c.l.b16 %v1596
    %v1707 = vunpack.c.h.b16 %v1596
    %v1708 = vunpack.c.l.b16 %v1597
    %v1709 = vunpack.c.h.b16 %v1597
    %v1710 = vunpack.c.l.b16 %v1598
    %v1711 = vunpack.c.h.b16 %v1598
    %v1712 = vunpack.c.l.b16 %v1599
    %v1713 = vunpack.c.h.b16 %v1599
    %v1714 = vunpack.c.l.b16 %v1600
    %v1715 = vunpack.c.h.b16 %v1600
    %v1716 = vunpack.c.l.b16 %v1601
    %v1717 = vunpack.c.h.b16 %v1601
    %v1718 = vunpack.c.l.b16 %v1602
    %v1719 = vunpack.c.h.b16 %v1602
    %v1720 = vunpack.c.l.b16 %v1603
    %v1721 = vunpack.c.h.b16 %v1603
    %v1722 = vpack.c.b16 %v1662, %v1658
    %v1723 = vpack.c.b16 %v1663, %v1659
    %v1724 = vpack.c.b16 %v1664, %v1660
    %v1725 = vpack.c.b16 %v1665, %v1661
    %v1726 = vpack.c.b16 %v1670, %v1666
    %v1727 = vpack.c.b16 %v1671, %v1667
    %v1728 = vpack.c.b16 %v1672, %v1668
    %v1729 = vpack.c.b16 %v1673, %v1669
    %v1730 = vpack.c.b16 %v1678, %v1674
    %v1731 = vpack.c.b16 %v1679, %v1675
    %v1732 = vpack.c.b16 %v1680, %v1676
    %v1733 = vpack.c.b16 %v1681, %v1677
    %v1734 = vpack.c.b16 %v1686, %v1682
    %v1735 = vpack.c.b16 %v1687, %v1683
    %v1736 = vpack.c.b16 %v1688, %v1684
    %v1737 = vpack.c.b16 %v1689, %v1685
    %v1738 = vpack.c.b16 %v1694, %v1690
    %v1739 = vpack.c.b16 %v1695, %v1691
    %v1740 = vpack.c.b16 %v1696, %v1692
    %v1741 = vpack.c.b16 %v1697, %v1693
    %v1742 = vpack.c.b16 %v1702, %v1698
    %v1743 = vpack.c.b16 %v1703, %v1699
    %v1744 = vpack.c.b16 %v1704, %v1700
    %v1745 = vpack.c.b16 %v1705, %v1701
    %v1746 = vpack.c.b16 %v1710, %v1706
    %v1747 = vpack.c.b16 %v1711, %v1707
    %v1748 = vpack.c.b16 %v1712, %v1708
    %v1749 = vpack.c.b16 %v1713, %v1709
    %v1750 = vpack.c.b16 %v1718, %v1714
    %v1751 = vpack.c.b16 %v1719, %v1715
    %v1752 = vpack.c.b16 %v1720, %v1716
    %v1753 = vpack.c.b16 %v1721, %v1717
    %1786 = vmatprep.subr.bf16.mxu0 %v1723
    %1787 = vmatpush1.bf16.msra.mxu0 %v1722
    %1788 = vmatprep.subr.bf16.mxu0 %v1727
    %1789 = vmatpush1.bf16.msra.mxu0 %v1726
    %1790 = vmatprep.subr.bf16.mxu0 %v1731
    %1791 = vmatpush1.bf16.msra.mxu0 %v1730
    %1792 = vmatprep.subr.bf16.mxu0 %v1735
    %1793 = vmatpush1.bf16.msra.mxu0 %v1734
    %1794 = vmatprep.subr.bf16.mxu0 %v1739
    %1795 = vmatpush1.bf16.msra.mxu0 %v1738
    %1796 = vmatprep.subr.bf16.mxu0 %v1743
    %1797 = vmatpush1.bf16.msra.mxu0 %v1742
    %1798 = vmatprep.subr.bf16.mxu0 %v1747
    %1799 = vmatpush1.bf16.msra.mxu0 %v1746
    %1800 = vmatprep.subr.bf16.mxu0 %v1751
    %1801 = vmatpush1.bf16.msra.mxu0 %v1750
    %1802 = vmatprep.subr.bf16.mxu0 0
    %1803 = vmatpush1.bf16.msra.mxu0 0
    %1804 = vmatprep.subr.bf16.mxu0 0
    %1805 = vmatpush1.bf16.msra.mxu0 0
    %1806 = vmatprep.subr.bf16.mxu0 0
    %1807 = vmatpush1.bf16.msra.mxu0 0
    %1808 = vmatprep.subr.bf16.mxu0 0
    %1809 = vmatpush1.bf16.msra.mxu0 0
    %1810 = vmatprep.subr.bf16.mxu0 0
    %1811 = vmatpush1.bf16.msra.mxu0 0
    %1812 = vmatprep.subr.bf16.mxu0 0
    %1813 = vmatpush1.bf16.msra.mxu0 0
    %1814 = vmatprep.subr.bf16.mxu0 0
    %1815 = vmatpush1.bf16.msra.mxu0 0
    %1816 = vmatprep.subr.bf16.mxu0 0
    %1817 = vmatpush1.bf16.msra.mxu0 0
    %1818 = vmatprep.mubr.bf16.mxu0 0
    %1819 = vmatmul.mubr.bf16.gmra.mrb[0].mxu0 %v1571
    %v1820 = vpop.f32.mrb[0].mxu0
    %v1821 = vadd.f32 %v1609, %v1820
    %v1822 = vpop.f32.mrb[0].mxu0
    %v1823 = vadd.f32 %v1613, %v1822
    %v1824 = vpop.f32.mrb[0].mxu0
    %v1825 = vpop.f32.mrb[0].mxu0
    %1826 = vdwg.mxu0
    %1827 = vmatprep.subr.bf16.mxu0 %v1725
    %1828 = vmatpush1.bf16.msra.mxu0 %v1724
    %1829 = vmatprep.subr.bf16.mxu0 %v1729
    %1830 = vmatpush1.bf16.msra.mxu0 %v1728
    %1831 = vmatprep.subr.bf16.mxu0 %v1733
    %1832 = vmatpush1.bf16.msra.mxu0 %v1732
    %1833 = vmatprep.subr.bf16.mxu0 %v1737
    %1834 = vmatpush1.bf16.msra.mxu0 %v1736
    %1835 = vmatprep.subr.bf16.mxu0 %v1741
    %1836 = vmatpush1.bf16.msra.mxu0 %v1740
    %1837 = vmatprep.subr.bf16.mxu0 %v1745
    %1838 = vmatpush1.bf16.msra.mxu0 %v1744
    %1839 = vmatprep.subr.bf16.mxu0 %v1749
    %1840 = vmatpush1.bf16.msra.mxu0 %v1748
    %1841 = vmatprep.subr.bf16.mxu0 %v1753
    %1842 = vmatpush1.bf16.msra.mxu0 %v1752
    %1843 = vmatprep.subr.bf16.mxu0 0
    %1844 = vmatpush1.bf16.msra.mxu0 0
    %1845 = vmatprep.subr.bf16.mxu0 0
    %1846 = vmatpush1.bf16.msra.mxu0 0
    %1847 = vmatprep.subr.bf16.mxu0 0
    %1848 = vmatpush1.bf16.msra.mxu0 0
    %1849 = vmatprep.subr.bf16.mxu0 0
    %1850 = vmatpush1.bf16.msra.mxu0 0
    %1851 = vmatprep.subr.bf16.mxu0 0
    %1852 = vmatpush1.bf16.msra.mxu0 0
    %1853 = vmatprep.subr.bf16.mxu0 0
    %1854 = vmatpush1.bf16.msra.mxu0 0
    %1855 = vmatprep.subr.bf16.mxu0 0
    %1856 = vmatpush1.bf16.msra.mxu0 0
    %1857 = vmatprep.subr.bf16.mxu0 0
    %1858 = vmatpush1.bf16.msra.mxu0 0
    %1859 = vmatprep.mubr.bf16.mxu0 0
    %1860 = vmatmul.mubr.bf16.gmra.mrb[0].mxu0 %v1571
    %v1861 = vpop.f32.mrb[0].mxu0
    %v1862 = vadd.f32 %v1617, %v1861
    %v1863 = vpop.f32.mrb[0].mxu0
    %v1864 = vadd.f32 %v1621, %v1863
    %v1865 = vpop.f32.mrb[0].mxu0
    %v1866 = vpop.f32.mrb[0].mxu0
    %1867 = vdwg.mxu0
    %v1868 = vld [vmem:[#allocation11] sm:$0xff]
    %v1869 = vld [vmem:[#allocation11 + $0x8] sm:$0xff]
    %v1870 = vld [vmem:[#allocation11 + $0x10] sm:$0xff]
    %v1871 = vld [vmem:[#allocation11 + $0x18] sm:$0xff]
    %v1872 = vld [vmem:[#allocation11 + $0x20] sm:$0xff]
    %v1873 = vld [vmem:[#allocation11 + $0x28] sm:$0xff]
    %v1874 = vld [vmem:[#allocation11 + $0x30] sm:$0xff]
    %v1875 = vld [vmem:[#allocation11 + $0x38] sm:$0xff]
    %v1876 = vld [vmem:[#allocation11 + $0x40] sm:$0xff]
    %v1877 = vld [vmem:[#allocation11 + $0x48] sm:$0xff]
    %v1878 = vld [vmem:[#allocation11 + $0x50] sm:$0xff]
    %v1879 = vld [vmem:[#allocation11 + $0x58] sm:$0xff]
    %v1880 = vld [vmem:[#allocation11 + $0x60] sm:$0xff]
    %v1881 = vld [vmem:[#allocation11 + $0x68] sm:$0xff]
    %v1882 = vld [vmem:[#allocation11 + $0x70] sm:$0xff]
    %v1883 = vld [vmem:[#allocation11 + $0x78] sm:$0xff]
    %v1884 = vld [vmem:[#allocation11 + $0x80] sm:$0xff]
    %v1885 = vld [vmem:[#allocation11 + $0x88] sm:$0xff]
    %v1886 = vld [vmem:[#allocation11 + $0x90] sm:$0xff]
    %v1887 = vld [vmem:[#allocation11 + $0x98] sm:$0xff]
    %v1888 = vld [vmem:[#allocation11 + $0xa0] sm:$0xff]
    %v1889 = vld [vmem:[#allocation11 + $0xa8] sm:$0xff]
    %v1890 = vld [vmem:[#allocation11 + $0xb0] sm:$0xff]
    %v1891 = vld [vmem:[#allocation11 + $0xb8] sm:$0xff]
    %v1892 = vld [vmem:[#allocation11 + $0xc0] sm:$0xff]
    %v1893 = vld [vmem:[#allocation11 + $0xc8] sm:$0xff]
    %v1894 = vld [vmem:[#allocation11 + $0xd0] sm:$0xff]
    %v1895 = vld [vmem:[#allocation11 + $0xd8] sm:$0xff]
    %v1896 = vld [vmem:[#allocation11 + $0xe0] sm:$0xff]
    %v1897 = vld [vmem:[#allocation11 + $0xe8] sm:$0xff]
    %v1898 = vld [vmem:[#allocation11 + $0xf0] sm:$0xff]
    %v1899 = vld [vmem:[#allocation11 + $0xf8] sm:$0xff]
    %v1932 = vunpack.c.l.b16 %v1868
    %v1933 = vunpack.c.h.b16 %v1868
    %v1934 = vunpack.c.l.b16 %v1869
    %v1935 = vunpack.c.h.b16 %v1869
    %v1936 = vunpack.c.l.b16 %v1870
    %v1937 = vunpack.c.h.b16 %v1870
    %v1938 = vunpack.c.l.b16 %v1871
    %v1939 = vunpack.c.h.b16 %v1871
    %v1940 = vunpack.c.l.b16 %v1872
    %v1941 = vunpack.c.h.b16 %v1872
    %v1942 = vunpack.c.l.b16 %v1873
    %v1943 = vunpack.c.h.b16 %v1873
    %v1944 = vunpack.c.l.b16 %v1874
    %v1945 = vunpack.c.h.b16 %v1874
    %v1946 = vunpack.c.l.b16 %v1875
    %v1947 = vunpack.c.h.b16 %v1875
    %v1948 = vunpack.c.l.b16 %v1876
    %v1949 = vunpack.c.h.b16 %v1876
    %v1950 = vunpack.c.l.b16 %v1877
    %v1951 = vunpack.c.h.b16 %v1877
    %v1952 = vunpack.c.l.b16 %v1878
    %v1953 = vunpack.c.h.b16 %v1878
    %v1954 = vunpack.c.l.b16 %v1879
    %v1955 = vunpack.c.h.b16 %v1879
    %v1956 = vunpack.c.l.b16 %v1880
    %v1957 = vunpack.c.h.b16 %v1880
    %v1958 = vunpack.c.l.b16 %v1881
    %v1959 = vunpack.c.h.b16 %v1881
    %v1960 = vunpack.c.l.b16 %v1882
    %v1961 = vunpack.c.h.b16 %v1882
    %v1962 = vunpack.c.l.b16 %v1883
    %v1963 = vunpack.c.h.b16 %v1883
    %v1964 = vunpack.c.l.b16 %v1884
    %v1965 = vunpack.c.h.b16 %v1884
    %v1966 = vunpack.c.l.b16 %v1885
    %v1967 = vunpack.c.h.b16 %v1885
    %v1968 = vunpack.c.l.b16 %v1886
    %v1969 = vunpack.c.h.b16 %v1886
    %v1970 = vunpack.c.l.b16 %v1887
    %v1971 = vunpack.c.h.b16 %v1887
    %v1972 = vunpack.c.l.b16 %v1888
    %v1973 = vunpack.c.h.b16 %v1888
    %v1974 = vunpack.c.l.b16 %v1889
    %v1975 = vunpack.c.h.b16 %v1889
    %v1976 = vunpack.c.l.b16 %v1890
    %v1977 = vunpack.c.h.b16 %v1890
    %v1978 = vunpack.c.l.b16 %v1891
    %v1979 = vunpack.c.h.b16 %v1891
    %v1980 = vunpack.c.l.b16 %v1892
    %v1981 = vunpack.c.h.b16 %v1892
    %v1982 = vunpack.c.l.b16 %v1893
    %v1983 = vunpack.c.h.b16 %v1893
    %v1984 = vunpack.c.l.b16 %v1894
    %v1985 = vunpack.c.h.b16 %v1894
    %v1986 = vunpack.c.l.b16 %v1895
    %v1987 = vunpack.c.h.b16 %v1895
    %v1988 = vunpack.c.l.b16 %v1896
    %v1989 = vunpack.c.h.b16 %v1896
    %v1990 = vunpack.c.l.b16 %v1897
    %v1991 = vunpack.c.h.b16 %v1897
    %v1992 = vunpack.c.l.b16 %v1898
    %v1993 = vunpack.c.h.b16 %v1898
    %v1994 = vunpack.c.l.b16 %v1899
    %v1995 = vunpack.c.h.b16 %v1899
    %v1996 = vpack.c.b16 %v1936, %v1932
    %v1997 = vpack.c.b16 %v1937, %v1933
    %v1998 = vpack.c.b16 %v1938, %v1934
    %v1999 = vpack.c.b16 %v1939, %v1935
    %v2000 = vpack.c.b16 %v1944, %v1940
    %v2001 = vpack.c.b16 %v1945, %v1941
    %v2002 = vpack.c.b16 %v1946, %v1942
    %v2003 = vpack.c.b16 %v1947, %v1943
    %v2004 = vpack.c.b16 %v1952, %v1948
    %v2005 = vpack.c.b16 %v1953, %v1949
    %v2006 = vpack.c.b16 %v1954, %v1950
    %v2007 = vpack.c.b16 %v1955, %v1951
    %v2008 = vpack.c.b16 %v1960, %v1956
    %v2009 = vpack.c.b16 %v1961, %v1957
    %v2010 = vpack.c.b16 %v1962, %v1958
    %v2011 = vpack.c.b16 %v1963, %v1959
    %v2012 = vpack.c.b16 %v1968, %v1964
    %v2013 = vpack.c.b16 %v1969, %v1965
    %v2014 = vpack.c.b16 %v1970, %v1966
    %v2015 = vpack.c.b16 %v1971, %v1967
    %v2016 = vpack.c.b16 %v1976, %v1972
    %v2017 = vpack.c.b16 %v1977, %v1973
    %v2018 = vpack.c.b16 %v1978, %v1974
    %v2019 = vpack.c.b16 %v1979, %v1975
    %v2020 = vpack.c.b16 %v1984, %v1980
    %v2021 = vpack.c.b16 %v1985, %v1981
    %v2022 = vpack.c.b16 %v1986, %v1982
    %v2023 = vpack.c.b16 %v1987, %v1983
    %v2024 = vpack.c.b16 %v1992, %v1988
    %v2025 = vpack.c.b16 %v1993, %v1989
    %v2026 = vpack.c.b16 %v1994, %v1990
    %v2027 = vpack.c.b16 %v1995, %v1991
    %2060 = vmatprep.subr.bf16.mxu0 %v1997
    %2061 = vmatpush1.bf16.msra.mxu0 %v1996
    %2062 = vmatprep.subr.bf16.mxu0 %v2001
    %2063 = vmatpush1.bf16.msra.mxu0 %v2000
    %2064 = vmatprep.subr.bf16.mxu0 %v2005
    %2065 = vmatpush1.bf16.msra.mxu0 %v2004
    %2066 = vmatprep.subr.bf16.mxu0 %v2009
    %2067 = vmatpush1.bf16.msra.mxu0 %v2008
    %2068 = vmatprep.subr.bf16.mxu0 %v2013
    %2069 = vmatpush1.bf16.msra.mxu0 %v2012
    %2070 = vmatprep.subr.bf16.mxu0 %v2017
    %2071 = vmatpush1.bf16.msra.mxu0 %v2016
    %2072 = vmatprep.subr.bf16.mxu0 %v2021
    %2073 = vmatpush1.bf16.msra.mxu0 %v2020
    %2074 = vmatprep.subr.bf16.mxu0 %v2025
    %2075 = vmatpush1.bf16.msra.mxu0 %v2024
    %2076 = vmatprep.subr.bf16.mxu0 0
    %2077 = vmatpush1.bf16.msra.mxu0 0
    %2078 = vmatprep.subr.bf16.mxu0 0
    %2079 = vmatpush1.bf16.msra.mxu0 0
    %2080 = vmatprep.subr.bf16.mxu0 0
    %2081 = vmatpush1.bf16.msra.mxu0 0
    %2082 = vmatprep.subr.bf16.mxu0 0
    %2083 = vmatpush1.bf16.msra.mxu0 0
    %2084 = vmatprep.subr.bf16.mxu0 0
    %2085 = vmatpush1.bf16.msra.mxu0 0
    %2086 = vmatprep.subr.bf16.mxu0 0
    %2087 = vmatpush1.bf16.msra.mxu0 0
    %2088 = vmatprep.subr.bf16.mxu0 0
    %2089 = vmatpush1.bf16.msra.mxu0 0
    %2090 = vmatprep.subr.bf16.mxu0 0
    %2091 = vmatpush1.bf16.msra.mxu0 0
    %2092 = vmatprep.mubr.bf16.mxu0 0
    %2093 = vmatmul.mubr.bf16.gmra.mrb[0].mxu0 0
    %v2094 = vpop.f32.mrb[0].mxu0
    %v2095 = vadd.f32 0.0, %v2094
    %v2096 = vpop.f32.mrb[0].mxu0
    %v2097 = vadd.f32 0.0, %v2096
    %v2098 = vpop.f32.mrb[0].mxu0
    %v2099 = vpop.f32.mrb[0].mxu0
    %2100 = vdwg.mxu0
    %2101 = vmatprep.subr.bf16.mxu0 %v1999
    %2102 = vmatpush1.bf16.msra.mxu0 %v1998
    %2103 = vmatprep.subr.bf16.mxu0 %v2003
    %2104 = vmatpush1.bf16.msra.mxu0 %v2002
    %2105 = vmatprep.subr.bf16.mxu0 %v2007
    %2106 = vmatpush1.bf16.msra.mxu0 %v2006
    %2107 = vmatprep.subr.bf16.mxu0 %v2011
    %2108 = vmatpush1.bf16.msra.mxu0 %v2010
    %2109 = vmatprep.subr.bf16.mxu0 %v2015
    %2110 = vmatpush1.bf16.msra.mxu0 %v2014
    %2111 = vmatprep.subr.bf16.mxu0 %v2019
    %2112 = vmatpush1.bf16.msra.mxu0 %v2018
    %2113 = vmatprep.subr.bf16.mxu0 %v2023
    %2114 = vmatpush1.bf16.msra.mxu0 %v2022
    %2115 = vmatprep.subr.bf16.mxu0 %v2027
    %2116 = vmatpush1.bf16.msra.mxu0 %v2026
    %2117 = vmatprep.subr.bf16.mxu0 0
    %2118 = vmatpush1.bf16.msra.mxu0 0
    %2119 = vmatprep.subr.bf16.mxu0 0
    %2120 = vmatpush1.bf16.msra.mxu0 0
    %2121 = vmatprep.subr.bf16.mxu0 0
    %2122 = vmatpush1.bf16.msra.mxu0 0
    %2123 = vmatprep.subr.bf16.mxu0 0
    %2124 = vmatpush1.bf16.msra.mxu0 0
    %2125 = vmatprep.subr.bf16.mxu0 0
    %2126 = vmatpush1.bf16.msra.mxu0 0
    %2127 = vmatprep.subr.bf16.mxu0 0
    %2128 = vmatpush1.bf16.msra.mxu0 0
    %2129 = vmatprep.subr.bf16.mxu0 0
    %2130 = vmatpush1.bf16.msra.mxu0 0
    %2131 = vmatprep.subr.bf16.mxu0 0
    %2132 = vmatpush1.bf16.msra.mxu0 0
    %2133 = vmatprep.mubr.bf16.mxu0 0
    %2134 = vmatmul.mubr.bf16.gmra.mrb[0].mxu0 0
    %v2135 = vpop.f32.mrb[0].mxu0
    %v2136 = vadd.f32 0.0, %v2135
    %v2137 = vpop.f32.mrb[0].mxu0
    %v2138 = vadd.f32 0.0, %v2137
    %v2139 = vpop.f32.mrb[0].mxu0
    %v2140 = vpop.f32.mrb[0].mxu0
    %2141 = vdwg.mxu0
    %v2142 = vadd.f32 %v1821, %v2095
    %v2143 = vadd.f32 %v1823, %v2097
    %v2144 = vadd.f32 %v1862, %v2136
    %v2145 = vadd.f32 %v1864, %v2138
    %v2146 = vxor.u32 %v2142, 2147483648
    %v2147 = vmul.f32 %v2146, 1.442695
    %v2148 = vpow.pop %v2147
    %v2149 = vadd.f32 %v2148, 1.0
    %v2150 = vrcp.pop %v2149
    %v2151 = vmul.f32 1.0, %v2150
    %v2152 = vxor.u32 %v2143, 2147483648
    %v2153 = vmul.f32 %v2152, 1.442695
    %v2154 = vpow.pop %v2153
    %v2155 = vadd.f32 %v2154, 1.0
    %v2156 = vrcp.pop %v2155
    %v2157 = vmul.f32 1.0, %v2156
    %v2158 = vtanh.pop %v2144
    %v2159 = vxor.u32 %v2145, 2147483648
    %v2160 = vmul.f32 %v2159, 1.442695
    %v2161 = vpow.pop %v2160
    %v2162 = vadd.f32 %v2161, 1.0
    %v2163 = vrcp.pop %v2162
    %v2164 = vmul.f32 1.0, %v2163
    %v2165 = vmul.f32 %v2157, 0.0
    %v2166 = vmul.f32 %v2151, %v2158
    %v2167 = vadd.f32 %v2165, %v2166
    %v2168 = vtanh.pop %v2167
    %v2169 = vmul.f32 %v2164, %v2168
    %v2170 = vpack.c.bf16 %v2169, %v2169
    %2171 = vmatprep.subr.bf16.mxu0 %v1997
    %2172 = vmatpush1.bf16.msra.mxu0 %v1996
    %2173 = vmatprep.subr.bf16.mxu0 %v2001
    %2174 = vmatpush1.bf16.msra.mxu0 %v2000
    %2175 = vmatprep.subr.bf16.mxu0 %v2005
    %2176 = vmatpush1.bf16.msra.mxu0 %v2004
    %2177 = vmatprep.subr.bf16.mxu0 %v2009
    %2178 = vmatpush1.bf16.msra.mxu0 %v2008
    %2179 = vmatprep.subr.bf16.mxu0 %v2013
    %2180 = vmatpush1.bf16.msra.mxu0 %v2012
    %2181 = vmatprep.subr.bf16.mxu0 %v2017
    %2182 = vmatpush1.bf16.msra.mxu0 %v2016
    %2183 = vmatprep.subr.bf16.mxu0 %v2021
    %2184 = vmatpush1.bf16.msra.mxu0 %v2020
    %2185 = vmatprep.subr.bf16.mxu0 %v2025
    %2186 = vmatpush1.bf16.msra.mxu0 %v2024
    %2187 = vmatprep.subr.bf16.mxu0 0
    %2188 = vmatpush1.bf16.msra.mxu0 0
    %2189 = vmatprep.subr.bf16.mxu0 0
    %2190 = vmatpush1.bf16.msra.mxu0 0
    %2191 = vmatprep.subr.bf16.mxu0 0
    %2192 = vmatpush1.bf16.msra.mxu0 0
    %2193 = vmatprep.subr.bf16.mxu0 0
    %2194 = vmatpush1.bf16.msra.mxu0 0
    %2195 = vmatprep.subr.bf16.mxu0 0
    %2196 = vmatpush1.bf16.msra.mxu0 0
    %2197 = vmatprep.subr.bf16.mxu0 0
    %2198 = vmatpush1.bf16.msra.mxu0 0
    %2199 = vmatprep.subr.bf16.mxu0 0
    %2200 = vmatpush1.bf16.msra.mxu0 0
    %2201 = vmatprep.subr.bf16.mxu0 0
    %2202 = vmatpush1.bf16.msra.mxu0 0
    %2203 = vmatprep.mubr.bf16.mxu0 0
    %2204 = vmatmul.mubr.bf16.gmra.mrb[0].mxu0 %v2170
    %v2205 = vpop.f32.mrb[0].mxu0
    %v2206 = vadd.f32 0.0, %v2205
    %v2207 = vpop.f32.mrb[0].mxu0
    %v2208 = vadd.f32 0.0, %v2207
    %v2209 = vpop.f32.mrb[0].mxu0
    %v2210 = vpop.f32.mrb[0].mxu0
    %2211 = vdwg.mxu0
    %2212 = vmatprep.subr.bf16.mxu0 %v1999
    %2213 = vmatpush1.bf16.msra.mxu0 %v1998
    %2214 = vmatprep.subr.bf16.mxu0 %v2003
    %2215 = vmatpush1.bf16.msra.mxu0 %v2002
    %2216 = vmatprep.subr.bf16.mxu0 %v2007
    %2217 = vmatpush1.bf16.msra.mxu0 %v2006
    %2218 = vmatprep.subr.bf16.mxu0 %v2011
    %2219 = vmatpush1.bf16.msra.mxu0 %v2010
    %2220 = vmatprep.subr.bf16.mxu0 %v2015
    %2221 = vmatpush1.bf16.msra.mxu0 %v2014
    %2222 = vmatprep.subr.bf16.mxu0 %v2019
    %2223 = vmatpush1.bf16.msra.mxu0 %v2018
    %2224 = vmatprep.subr.bf16.mxu0 %v2023
    %2225 = vmatpush1.bf16.msra.mxu0 %v2022
    %2226 = vmatprep.subr.bf16.mxu0 %v2027
    %2227 = vmatpush1.bf16.msra.mxu0 %v2026
    %2228 = vmatprep.subr.bf16.mxu0 0
    %2229 = vmatpush1.bf16.msra.mxu0 0
    %2230 = vmatprep.subr.bf16.mxu0 0
    %2231 = vmatpush1.bf16.msra.mxu0 0
    %2232 = vmatprep.subr.bf16.mxu0 0
    %2233 = vmatpush1.bf16.msra.mxu0 0
    %2234 = vmatprep.subr.bf16.mxu0 0
    %2235 = vmatpush1.bf16.msra.mxu0 0
    %2236 = vmatprep.subr.bf16.mxu0 0
    %2237 = vmatpush1.bf16.msra.mxu0 0
    %2238 = vmatprep.subr.bf16.mxu0 0
    %2239 = vmatpush1.bf16.msra.mxu0 0
    %2240 = vmatprep.subr.bf16.mxu0 0
    %2241 = vmatpush1.bf16.msra.mxu0 0
    %2242 = vmatprep.subr.bf16.mxu0 0
    %2243 = vmatpush1.bf16.msra.mxu0 0
    %2244 = vmatprep.mubr.bf16.mxu0 0
    %2245 = vmatmul.mubr.bf16.gmra.mrb[0].mxu0 %v2170
    %v2246 = vpop.f32.mrb[0].mxu0
    %v2247 = vadd.f32 0.0, %v2246
    %v2248 = vpop.f32.mrb[0].mxu0
    %v2249 = vadd.f32 0.0, %v2248
    %v2250 = vpop.f32.mrb[0].mxu0
    %v2251 = vpop.f32.mrb[0].mxu0
    %2252 = vdwg.mxu0
    %v2253 = vadd.f32 %v1821, %v2206
    %v2254 = vadd.f32 %v1823, %v2208
    %v2255 = vadd.f32 %v1862, %v2247
    %v2256 = vadd.f32 %v1864, %v2249
    %v2257 = vxor.u32 %v2253, 2147483648
    %v2258 = vmul.f32 %v2257, 1.442695
    %v2259 = vpow.pop %v2258
    %v2260 = vadd.f32 %v2259, 1.0
    %v2261 = vrcp.pop %v2260
    %v2262 = vmul.f32 1.0, %v2261
    %v2263 = vxor.u32 %v2254, 2147483648
    %v2264 = vmul.f32 %v2263, 1.442695
    %v2265 = vpow.pop %v2264
    %v2266 = vadd.f32 %v2265, 1.0
    %v2267 = vrcp.pop %v2266
    %v2268 = vmul.f32 1.0, %v2267
    %v2269 = vtanh.pop %v2255
    %v2270 = vxor.u32 %v2256, 2147483648
    %v2271 = vmul.f32 %v2270, 1.442695
    %v2272 = vpow.pop %v2271
    %v2273 = vadd.f32 %v2272, 1.0
    %v2274 = vrcp.pop %v2273
    %v2275 = vmul.f32 1.0, %v2274
    %v2276 = vmul.f32 %v2268, %v2167
    %v2277 = vmul.f32 %v2262, %v2269
    %v2278 = vadd.f32 %v2276, %v2277
    %v2279 = vtanh.pop %v2278
    %v2280 = vmul.f32 %v2275, %v2279
    %v2281 = vpack.c.bf16 %v2280, %v2280
    %2282 = vmatprep.subr.bf16.mxu0 %v1997
    %2283 = vmatpush1.bf16.msra.mxu0 %v1996
    %2284 = vmatprep.subr.bf16.mxu0 %v2001
    %2285 = vmatpush1.bf16.msra.mxu0 %v2000
    %2286 = vmatprep.subr.bf16.mxu0 %v2005
    %2287 = vmatpush1.bf16.msra.mxu0 %v2004
    %2288 = vmatprep.subr.bf16.mxu0 %v2009
    %2289 = vmatpush1.bf16.msra.mxu0 %v2008
    %2290 = vmatprep.subr.bf16.mxu0 %v2013
    %2291 = vmatpush1.bf16.msra.mxu0 %v2012
    %2292 = vmatprep.subr.bf16.mxu0 %v2017
    %2293 = vmatpush1.bf16.msra.mxu0 %v2016
    %2294 = vmatprep.subr.bf16.mxu0 %v2021
    %2295 = vmatpush1.bf16.msra.mxu0 %v2020
    %2296 = vmatprep.subr.bf16.mxu0 %v2025
    %2297 = vmatpush1.bf16.msra.mxu0 %v2024
    %2298 = vmatprep.subr.bf16.mxu0 0
    %2299 = vmatpush1.bf16.msra.mxu0 0
    %2300 = vmatprep.subr.bf16.mxu0 0
    %2301 = vmatpush1.bf16.msra.mxu0 0
    %2302 = vmatprep.subr.bf16.mxu0 0
    %2303 = vmatpush1.bf16.msra.mxu0 0
    %2304 = vmatprep.subr.bf16.mxu0 0
    %2305 = vmatpush1.bf16.msra.mxu0 0
    %2306 = vmatprep.subr.bf16.mxu0 0
    %2307 = vmatpush1.bf16.msra.mxu0 0
    %2308 = vmatprep.subr.bf16.mxu0 0
    %2309 = vmatpush1.bf16.msra.mxu0 0
    %2310 = vmatprep.subr.bf16.mxu0 0
    %2311 = vmatpush1.bf16.msra.mxu0 0
    %2312 = vmatprep.subr.bf16.mxu0 0
    %2313 = vmatpush1.bf16.msra.mxu0 0
    %2314 = vmatprep.mubr.bf16.mxu0 0
    %2315 = vmatmul.mubr.bf16.gmra.mrb[0].mxu0 %v2281
    %v2316 = vpop.f32.mrb[0].mxu0
    %v2317 = vadd.f32 0.0, %v2316
    %v2318 = vpop.f32.mrb[0].mxu0
    %v2319 = vadd.f32 0.0, %v2318
    %v2320 = vpop.f32.mrb[0].mxu0
    %v2321 = vpop.f32.mrb[0].mxu0
    %2322 = vdwg.mxu0
    %2323 = vmatprep.subr.bf16.mxu0 %v1999
    %2324 = vmatpush1.bf16.msra.mxu0 %v1998
    %2325 = vmatprep.subr.bf16.mxu0 %v2003
    %2326 = vmatpush1.bf16.msra.mxu0 %v2002
    %2327 = vmatprep.subr.bf16.mxu0 %v2007
    %2328 = vmatpush1.bf16.msra.mxu0 %v2006
    %2329 = vmatprep.subr.bf16.mxu0 %v2011
    %2330 = vmatpush1.bf16.msra.mxu0 %v2010
    %2331 = vmatprep.subr.bf16.mxu0 %v2015
    %2332 = vmatpush1.bf16.msra.mxu0 %v2014
    %2333 = vmatprep.subr.bf16.mxu0 %v2019
    %2334 = vmatpush1.bf16.msra.mxu0 %v2018
    %2335 = vmatprep.subr.bf16.mxu0 %v2023
    %2336 = vmatpush1.bf16.msra.mxu0 %v2022
    %2337 = vmatprep.subr.bf16.mxu0 %v2027
    %2338 = vmatpush1.bf16.msra.mxu0 %v2026
    %2339 = vmatprep.subr.bf16.mxu0 0
    %2340 = vmatpush1.bf16.msra.mxu0 0
    %2341 = vmatprep.subr.bf16.mxu0 0
    %2342 = vmatpush1.bf16.msra.mxu0 0
    %2343 = vmatprep.subr.bf16.mxu0 0
    %2344 = vmatpush1.bf16.msra.mxu0 0
    %2345 = vmatprep.subr.bf16.mxu0 0
    %2346 = vmatpush1.bf16.msra.mxu0 0
    %2347 = vmatprep.subr.bf16.mxu0 0
    %2348 = vmatpush1.bf16.msra.mxu0 0
    %2349 = vmatprep.subr.bf16.mxu0 0
    %2350 = vmatpush1.bf16.msra.mxu0 0
    %2351 = vmatprep.subr.bf16.mxu0 0
    %2352 = vmatpush1.bf16.msra.mxu0 0
    %2353 = vmatprep.subr.bf16.mxu0 0
    %2354 = vmatpush1.bf16.msra.mxu0 0
    %2355 = vmatprep.mubr.bf16.mxu0 0
    %2356 = vmatmul.mubr.bf16.gmra.mrb[0].mxu0 %v2281
    %v2357 = vpop.f32.mrb[0].mxu0
    %v2358 = vadd.f32 0.0, %v2357
    %v2359 = vpop.f32.mrb[0].mxu0
    %v2360 = vadd.f32 0.0, %v2359
    %v2361 = vpop.f32.mrb[0].mxu0
    %v2362 = vpop.f32.mrb[0].mxu0
    %2363 = vdwg.mxu0
    %v2364 = vadd.f32 %v1821, %v2317
    %v2365 = vadd.f32 %v1823, %v2319
    %v2366 = vadd.f32 %v1862, %v2358
    %v2367 = vadd.f32 %v1864, %v2360
    %v2368 = vxor.u32 %v2364, 2147483648
    %v2369 = vmul.f32 %v2368, 1.442695
    %v2370 = vpow.pop %v2369
    %v2371 = vadd.f32 %v2370, 1.0
    %v2372 = vrcp.pop %v2371
    %v2373 = vmul.f32 1.0, %v2372
    %v2374 = vxor.u32 %v2365, 2147483648
    %v2375 = vmul.f32 %v2374, 1.442695
    %v2376 = vpow.pop %v2375
    %v2377 = vadd.f32 %v2376, 1.0
    %v2378 = vrcp.pop %v2377
    %v2379 = vmul.f32 1.0, %v2378
    %v2380 = vtanh.pop %v2366
    %v2381 = vxor.u32 %v2367, 2147483648
    %v2382 = vmul.f32 %v2381, 1.442695
    %v2383 = vpow.pop %v2382
    %v2384 = vadd.f32 %v2383, 1.0
    %v2385 = vrcp.pop %v2384
    %v2386 = vmul.f32 1.0, %v2385
    %v2387 = vmul.f32 %v2379, %v2278
    %v2388 = vmul.f32 %v2373, %v2380
    %v2389 = vadd.f32 %v2387, %v2388
    %v2390 = vtanh.pop %v2389
    %v2391 = vmul.f32 %v2386, %v2390
    %v2392 = vpack.c.bf16 %v2391, %v2391
    %2393 = vmatprep.subr.bf16.mxu0 %v1997
    %2394 = vmatpush1.bf16.msra.mxu0 %v1996
    %2395 = vmatprep.subr.bf16.mxu0 %v2001
    %2396 = vmatpush1.bf16.msra.mxu0 %v2000
    %2397 = vmatprep.subr.bf16.mxu0 %v2005
    %2398 = vmatpush1.bf16.msra.mxu0 %v2004
    %2399 = vmatprep.subr.bf16.mxu0 %v2009
    %2400 = vmatpush1.bf16.msra.mxu0 %v2008
    %2401 = vmatprep.subr.bf16.mxu0 %v2013
    %2402 = vmatpush1.bf16.msra.mxu0 %v2012
    %2403 = vmatprep.subr.bf16.mxu0 %v2017
    %2404 = vmatpush1.bf16.msra.mxu0 %v2016
    %2405 = vmatprep.subr.bf16.mxu0 %v2021
    %2406 = vmatpush1.bf16.msra.mxu0 %v2020
    %2407 = vmatprep.subr.bf16.mxu0 %v2025
    %2408 = vmatpush1.bf16.msra.mxu0 %v2024
    %2409 = vmatprep.subr.bf16.mxu0 0
    %2410 = vmatpush1.bf16.msra.mxu0 0
    %2411 = vmatprep.subr.bf16.mxu0 0
    %2412 = vmatpush1.bf16.msra.mxu0 0
    %2413 = vmatprep.subr.bf16.mxu0 0
    %2414 = vmatpush1.bf16.msra.mxu0 0
    %2415 = vmatprep.subr.bf16.mxu0 0
    %2416 = vmatpush1.bf16.msra.mxu0 0
    %2417 = vmatprep.subr.bf16.mxu0 0
    %2418 = vmatpush1.bf16.msra.mxu0 0
    %2419 = vmatprep.subr.bf16.mxu0 0
    %2420 = vmatpush1.bf16.msra.mxu0 0
    %2421 = vmatprep.subr.bf16.mxu0 0
    %2422 = vmatpush1.bf16.msra.mxu0 0
    %2423 = vmatprep.subr.bf16.mxu0 0
    %2424 = vmatpush1.bf16.msra.mxu0 0
    %2425 = vmatprep.mubr.bf16.mxu0 0
    %2426 = vmatmul.mubr.bf16.gmra.mrb[0].mxu0 %v2392
    %v2427 = vpop.f32.mrb[0].mxu0
    %v2428 = vadd.f32 0.0, %v2427
    %v2429 = vpop.f32.mrb[0].mxu0
    %v2430 = vadd.f32 0.0, %v2429
    %v2431 = vpop.f32.mrb[0].mxu0
    %v2432 = vpop.f32.mrb[0].mxu0
    %2433 = vdwg.mxu0
    %2434 = vmatprep.subr.bf16.mxu0 %v1999
    %2435 = vmatpush1.bf16.msra.mxu0 %v1998
    %2436 = vmatprep.subr.bf16.mxu0 %v2003
    %2437 = vmatpush1.bf16.msra.mxu0 %v2002
    %2438 = vmatprep.subr.bf16.mxu0 %v2007
    %2439 = vmatpush1.bf16.msra.mxu0 %v2006
    %2440 = vmatprep.subr.bf16.mxu0 %v2011
    %2441 = vmatpush1.bf16.msra.mxu0 %v2010
    %2442 = vmatprep.subr.bf16.mxu0 %v2015
    %2443 = vmatpush1.bf16.msra.mxu0 %v2014
    %2444 = vmatprep.subr.bf16.mxu0 %v2019
    %2445 = vmatpush1.bf16.msra.mxu0 %v2018
    %2446 = vmatprep.subr.bf16.mxu0 %v2023
    %2447 = vmatpush1.bf16.msra.mxu0 %v2022
    %2448 = vmatprep.subr.bf16.mxu0 %v2027
    %2449 = vmatpush1.bf16.msra.mxu0 %v2026
    %2450 = vmatprep.subr.bf16.mxu0 0
    %2451 = vmatpush1.bf16.msra.mxu0 0
    %2452 = vmatprep.subr.bf16.mxu0 0
    %2453 = vmatpush1.bf16.msra.mxu0 0
    %2454 = vmatprep.subr.bf16.mxu0 0
    %2455 = vmatpush1.bf16.msra.mxu0 0
    %2456 = vmatprep.subr.bf16.mxu0 0
    %2457 = vmatpush1.bf16.msra.mxu0 0
    %2458 = vmatprep.subr.bf16.mxu0 0
    %2459 = vmatpush1.bf16.msra.mxu0 0
    %2460 = vmatprep.subr.bf16.mxu0 0
    %2461 = vmatpush1.bf16.msra.mxu0 0
    %2462 = vmatprep.subr.bf16.mxu0 0
    %2463 = vmatpush1.bf16.msra.mxu0 0
    %2464 = vmatprep.subr.bf16.mxu0 0
    %2465 = vmatpush1.bf16.msra.mxu0 0
    %2466 = vmatprep.mubr.bf16.mxu0 0
    %2467 = vmatmul.mubr.bf16.gmra.mrb[0].mxu0 %v2392
    %v2468 = vpop.f32.mrb[0].mxu0
    %v2469 = vadd.f32 0.0, %v2468
    %v2470 = vpop.f32.mrb[0].mxu0
    %v2471 = vadd.f32 0.0, %v2470
    %v2472 = vpop.f32.mrb[0].mxu0
    %v2473 = vpop.f32.mrb[0].mxu0
    %2474 = vdwg.mxu0
    %v2475 = vadd.f32 %v1821, %v2428
    %v2476 = vadd.f32 %v1823, %v2430
    %v2477 = vadd.f32 %v1862, %v2469
    %v2478 = vadd.f32 %v1864, %v2471
    %v2479 = vxor.u32 %v2475, 2147483648
    %v2480 = vmul.f32 %v2479, 1.442695
    %v2481 = vpow.pop %v2480
    %v2482 = vadd.f32 %v2481, 1.0
    %v2483 = vrcp.pop %v2482
    %v2484 = vmul.f32 1.0, %v2483
    %v2485 = vxor.u32 %v2476, 2147483648
    %v2486 = vmul.f32 %v2485, 1.442695
    %v2487 = vpow.pop %v2486
    %v2488 = vadd.f32 %v2487, 1.0
    %v2489 = vrcp.pop %v2488
    %v2490 = vmul.f32 1.0, %v2489
    %v2491 = vtanh.pop %v2477
    %v2492 = vxor.u32 %v2478, 2147483648
    %v2493 = vmul.f32 %v2492, 1.442695
    %v2494 = vpow.pop %v2493
    %v2495 = vadd.f32 %v2494, 1.0
    %v2496 = vrcp.pop %v2495
    %v2497 = vmul.f32 1.0, %v2496
    %v2498 = vmul.f32 %v2490, %v2389
    %v2499 = vmul.f32 %v2484, %v2491
    %v2500 = vadd.f32 %v2498, %v2499
    %v2501 = vtanh.pop %v2500
    %v2502 = vmul.f32 %v2497, %v2501
    %v2503 = vpack.c.bf16 %v2502, %v2502
    %2504 = vmatprep.subr.bf16.mxu0 %v1997
    %2505 = vmatpush1.bf16.msra.mxu0 %v1996
    %2506 = vmatprep.subr.bf16.mxu0 %v2001
    %2507 = vmatpush1.bf16.msra.mxu0 %v2000
    %2508 = vmatprep.subr.bf16.mxu0 %v2005
    %2509 = vmatpush1.bf16.msra.mxu0 %v2004
    %2510 = vmatprep.subr.bf16.mxu0 %v2009
    %2511 = vmatpush1.bf16.msra.mxu0 %v2008
    %2512 = vmatprep.subr.bf16.mxu0 %v2013
    %2513 = vmatpush1.bf16.msra.mxu0 %v2012
    %2514 = vmatprep.subr.bf16.mxu0 %v2017
    %2515 = vmatpush1.bf16.msra.mxu0 %v2016
    %2516 = vmatprep.subr.bf16.mxu0 %v2021
    %2517 = vmatpush1.bf16.msra.mxu0 %v2020
    %2518 = vmatprep.subr.bf16.mxu0 %v2025
    %2519 = vmatpush1.bf16.msra.mxu0 %v2024
    %2520 = vmatprep.subr.bf16.mxu0 0
    %2521 = vmatpush1.bf16.msra.mxu0 0
    %2522 = vmatprep.subr.bf16.mxu0 0
    %2523 = vmatpush1.bf16.msra.mxu0 0
    %2524 = vmatprep.subr.bf16.mxu0 0
    %2525 = vmatpush1.bf16.msra.mxu0 0
    %2526 = vmatprep.subr.bf16.mxu0 0
    %2527 = vmatpush1.bf16.msra.mxu0 0
    %2528 = vmatprep.subr.bf16.mxu0 0
    %2529 = vmatpush1.bf16.msra.mxu0 0
    %2530 = vmatprep.subr.bf16.mxu0 0
    %2531 = vmatpush1.bf16.msra.mxu0 0
    %2532 = vmatprep.subr.bf16.mxu0 0
    %2533 = vmatpush1.bf16.msra.mxu0 0
    %2534 = vmatprep.subr.bf16.mxu0 0
    %2535 = vmatpush1.bf16.msra.mxu0 0
    %2536 = vmatprep.mubr.bf16.mxu0 0
    %2537 = vmatmul.mubr.bf16.gmra.mrb[0].mxu0 %v2503
    %v2538 = vpop.f32.mrb[0].mxu0
    %v2539 = vadd.f32 0.0, %v2538
    %v2540 = vpop.f32.mrb[0].mxu0
    %v2541 = vadd.f32 0.0, %v2540
    %v2542 = vpop.f32.mrb[0].mxu0
    %v2543 = vpop.f32.mrb[0].mxu0
    %2544 = vdwg.mxu0
    %2545 = vmatprep.subr.bf16.mxu0 %v1999
    %2546 = vmatpush1.bf16.msra.mxu0 %v1998
    %2547 = vmatprep.subr.bf16.mxu0 %v2003
    %2548 = vmatpush1.bf16.msra.mxu0 %v2002
    %2549 = vmatprep.subr.bf16.mxu0 %v2007
    %2550 = vmatpush1.bf16.msra.mxu0 %v2006
    %2551 = vmatprep.subr.bf16.mxu0 %v2011
    %2552 = vmatpush1.bf16.msra.mxu0 %v2010
    %2553 = vmatprep.subr.bf16.mxu0 %v2015
    %2554 = vmatpush1.bf16.msra.mxu0 %v2014
    %2555 = vmatprep.subr.bf16.mxu0 %v2019
    %2556 = vmatpush1.bf16.msra.mxu0 %v2018
    %2557 = vmatprep.subr.bf16.mxu0 %v2023
    %2558 = vmatpush1.bf16.msra.mxu0 %v2022
    %2559 = vmatprep.subr.bf16.mxu0 %v2027
    %2560 = vmatpush1.bf16.msra.mxu0 %v2026
    %2561 = vmatprep.subr.bf16.mxu0 0
    %2562 = vmatpush1.bf16.msra.mxu0 0
    %2563 = vmatprep.subr.bf16.mxu0 0
    %2564 = vmatpush1.bf16.msra.mxu0 0
    %2565 = vmatprep.subr.bf16.mxu0 0
    %2566 = vmatpush1.bf16.msra.mxu0 0
    %2567 = vmatprep.subr.bf16.mxu0 0
    %2568 = vmatpush1.bf16.msra.mxu0 0
    %2569 = vmatprep.subr.bf16.mxu0 0
    %2570 = vmatpush1.bf16.msra.mxu0 0
    %2571 = vmatprep.subr.bf16.mxu0 0
    %2572 = vmatpush1.bf16.msra.mxu0 0
    %2573 = vmatprep.subr.bf16.mxu0 0
    %2574 = vmatpush1.bf16.msra.mxu0 0
    %2575 = vmatprep.subr.bf16.mxu0 0
    %2576 = vmatpush1.bf16.msra.mxu0 0
    %2577 = vmatprep.mubr.bf16.mxu0 0
    %2578 = vmatmul.mubr.bf16.gmra.mrb[0].mxu0 %v2503
    %v2579 = vpop.f32.mrb[0].mxu0
    %v2580 = vadd.f32 0.0, %v2579
    %v2581 = vpop.f32.mrb[0].mxu0
    %v2582 = vadd.f32 0.0, %v2581
    %v2583 = vpop.f32.mrb[0].mxu0
    %v2584 = vpop.f32.mrb[0].mxu0
    %2585 = vdwg.mxu0
    %v2586 = vadd.f32 %v1821, %v2539
    %v2587 = vadd.f32 %v1823, %v2541
    %v2588 = vadd.f32 %v1862, %v2580
    %v2589 = vadd.f32 %v1864, %v2582
    %v2590 = vxor.u32 %v2586, 2147483648
    %v2591 = vmul.f32 %v2590, 1.442695
    %v2592 = vpow.pop %v2591
    %v2593 = vadd.f32 %v2592, 1.0
    %v2594 = vrcp.pop %v2593
    %v2595 = vmul.f32 1.0, %v2594
    %v2596 = vxor.u32 %v2587, 2147483648
    %v2597 = vmul.f32 %v2596, 1.442695
    %v2598 = vpow.pop %v2597
    %v2599 = vadd.f32 %v2598, 1.0
    %v2600 = vrcp.pop %v2599
    %v2601 = vmul.f32 1.0, %v2600
    %v2602 = vtanh.pop %v2588
    %v2603 = vxor.u32 %v2589, 2147483648
    %v2604 = vmul.f32 %v2603, 1.442695
    %v2605 = vpow.pop %v2604
    %v2606 = vadd.f32 %v2605, 1.0
    %v2607 = vrcp.pop %v2606
    %v2608 = vmul.f32 1.0, %v2607
    %v2609 = vmul.f32 %v2601, %v2500
    %v2610 = vmul.f32 %v2595, %v2602
    %v2611 = vadd.f32 %v2609, %v2610
    %v2612 = vtanh.pop %v2611
    %v2613 = vmul.f32 %v2608, %v2612
    %v2614 = vpack.c.bf16 %v2613, %v2613
    %2615 = vmatprep.subr.bf16.mxu0 %v1997
    %2616 = vmatpush1.bf16.msra.mxu0 %v1996
    %2617 = vmatprep.subr.bf16.mxu0 %v2001
    %2618 = vmatpush1.bf16.msra.mxu0 %v2000
    %2619 = vmatprep.subr.bf16.mxu0 %v2005
    %2620 = vmatpush1.bf16.msra.mxu0 %v2004
    %2621 = vmatprep.subr.bf16.mxu0 %v2009
    %2622 = vmatpush1.bf16.msra.mxu0 %v2008
    %2623 = vmatprep.subr.bf16.mxu0 %v2013
    %2624 = vmatpush1.bf16.msra.mxu0 %v2012
    %2625 = vmatprep.subr.bf16.mxu0 %v2017
    %2626 = vmatpush1.bf16.msra.mxu0 %v2016
    %2627 = vmatprep.subr.bf16.mxu0 %v2021
    %2628 = vmatpush1.bf16.msra.mxu0 %v2020
    %2629 = vmatprep.subr.bf16.mxu0 %v2025
    %2630 = vmatpush1.bf16.msra.mxu0 %v2024
    %2631 = vmatprep.subr.bf16.mxu0 0
    %2632 = vmatpush1.bf16.msra.mxu0 0
    %2633 = vmatprep.subr.bf16.mxu0 0
    %2634 = vmatpush1.bf16.msra.mxu0 0
    %2635 = vmatprep.subr.bf16.mxu0 0
    %2636 = vmatpush1.bf16.msra.mxu0 0
    %2637 = vmatprep.subr.bf16.mxu0 0
    %2638 = vmatpush1.bf16.msra.mxu0 0
    %2639 = vmatprep.subr.bf16.mxu0 0
    %2640 = vmatpush1.bf16.msra.mxu0 0
    %2641 = vmatprep.subr.bf16.mxu0 0
    %2642 = vmatpush1.bf16.msra.mxu0 0
    %2643 = vmatprep.subr.bf16.mxu0 0
    %2644 = vmatpush1.bf16.msra.mxu0 0
    %2645 = vmatprep.subr.bf16.mxu0 0
    %2646 = vmatpush1.bf16.msra.mxu0 0
    %2647 = vmatprep.mubr.bf16.mxu0 0
    %2648 = vmatmul.mubr.bf16.gmra.mrb[0].mxu0 %v2614
    %v2649 = vpop.f32.mrb[0].mxu0
    %v2650 = vadd.f32 0.0, %v2649
    %v2651 = vpop.f32.mrb[0].mxu0
    %v2652 = vadd.f32 0.0, %v2651
    %v2653 = vpop.f32.mrb[0].mxu0
    %v2654 = vpop.f32.mrb[0].mxu0
    %2655 = vdwg.mxu0
    %2656 = vmatprep.subr.bf16.mxu0 %v1999
    %2657 = vmatpush1.bf16.msra.mxu0 %v1998
    %2658 = vmatprep.subr.bf16.mxu0 %v2003
    %2659 = vmatpush1.bf16.msra.mxu0 %v2002
    %2660 = vmatprep.subr.bf16.mxu0 %v2007
    %2661 = vmatpush1.bf16.msra.mxu0 %v2006
    %2662 = vmatprep.subr.bf16.mxu0 %v2011
    %2663 = vmatpush1.bf16.msra.mxu0 %v2010
    %2664 = vmatprep.subr.bf16.mxu0 %v2015
    %2665 = vmatpush1.bf16.msra.mxu0 %v2014
    %2666 = vmatprep.subr.bf16.mxu0 %v2019
    %2667 = vmatpush1.bf16.msra.mxu0 %v2018
    %2668 = vmatprep.subr.bf16.mxu0 %v2023
    %2669 = vmatpush1.bf16.msra.mxu0 %v2022
    %2670 = vmatprep.subr.bf16.mxu0 %v2027
    %2671 = vmatpush1.bf16.msra.mxu0 %v2026
    %2672 = vmatprep.subr.bf16.mxu0 0
    %2673 = vmatpush1.bf16.msra.mxu0 0
    %2674 = vmatprep.subr.bf16.mxu0 0
    %2675 = vmatpush1.bf16.msra.mxu0 0
    %2676 = vmatprep.subr.bf16.mxu0 0
    %2677 = vmatpush1.bf16.msra.mxu0 0
    %2678 = vmatprep.subr.bf16.mxu0 0
    %2679 = vmatpush1.bf16.msra.mxu0 0
    %2680 = vmatprep.subr.bf16.mxu0 0
    %2681 = vmatpush1.bf16.msra.mxu0 0
    %2682 = vmatprep.subr.bf16.mxu0 0
    %2683 = vmatpush1.bf16.msra.mxu0 0
    %2684 = vmatprep.subr.bf16.mxu0 0
    %2685 = vmatpush1.bf16.msra.mxu0 0
    %2686 = vmatprep.subr.bf16.mxu0 0
    %2687 = vmatpush1.bf16.msra.mxu0 0
    %2688 = vmatprep.mubr.bf16.mxu0 0
    %2689 = vmatmul.mubr.bf16.gmra.mrb[0].mxu0 %v2614
    %v2690 = vpop.f32.mrb[0].mxu0
    %v2691 = vadd.f32 0.0, %v2690
    %v2692 = vpop.f32.mrb[0].mxu0
    %v2693 = vadd.f32 0.0, %v2692
    %v2694 = vpop.f32.mrb[0].mxu0
    %v2695 = vpop.f32.mrb[0].mxu0
    %2696 = vdwg.mxu0
    %v2697 = vadd.f32 %v1821, %v2650
    %v2698 = vadd.f32 %v1823, %v2652
    %v2699 = vadd.f32 %v1862, %v2691
    %v2700 = vadd.f32 %v1864, %v2693
    %v2701 = vxor.u32 %v2697, 2147483648
    %v2702 = vmul.f32 %v2701, 1.442695
    %v2703 = vpow.pop %v2702
    %v2704 = vadd.f32 %v2703, 1.0
    %v2705 = vrcp.pop %v2704
    %v2706 = vmul.f32 1.0, %v2705
    %v2707 = vxor.u32 %v2698, 2147483648
    %v2708 = vmul.f32 %v2707, 1.442695
    %v2709 = vpow.pop %v2708
    %v2710 = vadd.f32 %v2709, 1.0
    %v2711 = vrcp.pop %v2710
    %v2712 = vmul.f32 1.0, %v2711
    %v2713 = vtanh.pop %v2699
    %v2714 = vxor.u32 %v2700, 2147483648
    %v2715 = vmul.f32 %v2714, 1.442695
    %v2716 = vpow.pop %v2715
    %v2717 = vadd.f32 %v2716, 1.0
    %v2718 = vrcp.pop %v2717
    %v2719 = vmul.f32 1.0, %v2718
    %v2720 = vmul.f32 %v2712, %v2611
    %v2721 = vmul.f32 %v2706, %v2713
    %v2722 = vadd.f32 %v2720, %v2721
    %v2723 = vtanh.pop %v2722
    %v2724 = vmul.f32 %v2719, %v2723
    %v2725 = vpack.c.bf16 %v2724, %v2724
    %2726 = vmatprep.subr.bf16.mxu0 %v1997
    %2727 = vmatpush1.bf16.msra.mxu0 %v1996
    %2728 = vmatprep.subr.bf16.mxu0 %v2001
    %2729 = vmatpush1.bf16.msra.mxu0 %v2000
    %2730 = vmatprep.subr.bf16.mxu0 %v2005
    %2731 = vmatpush1.bf16.msra.mxu0 %v2004
    %2732 = vmatprep.subr.bf16.mxu0 %v2009
    %2733 = vmatpush1.bf16.msra.mxu0 %v2008
    %2734 = vmatprep.subr.bf16.mxu0 %v2013
    %2735 = vmatpush1.bf16.msra.mxu0 %v2012
    %2736 = vmatprep.subr.bf16.mxu0 %v2017
    %2737 = vmatpush1.bf16.msra.mxu0 %v2016
    %2738 = vmatprep.subr.bf16.mxu0 %v2021
    %2739 = vmatpush1.bf16.msra.mxu0 %v2020
    %2740 = vmatprep.subr.bf16.mxu0 %v2025
    %2741 = vmatpush1.bf16.msra.mxu0 %v2024
    %2742 = vmatprep.subr.bf16.mxu0 0
    %2743 = vmatpush1.bf16.msra.mxu0 0
    %2744 = vmatprep.subr.bf16.mxu0 0
    %2745 = vmatpush1.bf16.msra.mxu0 0
    %2746 = vmatprep.subr.bf16.mxu0 0
    %2747 = vmatpush1.bf16.msra.mxu0 0
    %2748 = vmatprep.subr.bf16.mxu0 0
    %2749 = vmatpush1.bf16.msra.mxu0 0
    %2750 = vmatprep.subr.bf16.mxu0 0
    %2751 = vmatpush1.bf16.msra.mxu0 0
    %2752 = vmatprep.subr.bf16.mxu0 0
    %2753 = vmatpush1.bf16.msra.mxu0 0
    %2754 = vmatprep.subr.bf16.mxu0 0
    %2755 = vmatpush1.bf16.msra.mxu0 0
    %2756 = vmatprep.subr.bf16.mxu0 0
    %2757 = vmatpush1.bf16.msra.mxu0 0
    %2758 = vmatprep.mubr.bf16.mxu0 0
    %2759 = vmatmul.mubr.bf16.gmra.mrb[0].mxu0 %v2725
    %v2760 = vpop.f32.mrb[0].mxu0
    %v2761 = vadd.f32 0.0, %v2760
    %v2762 = vpop.f32.mrb[0].mxu0
    %v2763 = vadd.f32 0.0, %v2762
    %v2764 = vpop.f32.mrb[0].mxu0
    %v2765 = vpop.f32.mrb[0].mxu0
    %2766 = vdwg.mxu0
    %2767 = vmatprep.subr.bf16.mxu0 %v1999
    %2768 = vmatpush1.bf16.msra.mxu0 %v1998
    %2769 = vmatprep.subr.bf16.mxu0 %v2003
    %2770 = vmatpush1.bf16.msra.mxu0 %v2002
    %2771 = vmatprep.subr.bf16.mxu0 %v2007
    %2772 = vmatpush1.bf16.msra.mxu0 %v2006
    %2773 = vmatprep.subr.bf16.mxu0 %v2011
    %2774 = vmatpush1.bf16.msra.mxu0 %v2010
    %2775 = vmatprep.subr.bf16.mxu0 %v2015
    %2776 = vmatpush1.bf16.msra.mxu0 %v2014
    %2777 = vmatprep.subr.bf16.mxu0 %v2019
    %2778 = vmatpush1.bf16.msra.mxu0 %v2018
    %2779 = vmatprep.subr.bf16.mxu0 %v2023
    %2780 = vmatpush1.bf16.msra.mxu0 %v2022
    %2781 = vmatprep.subr.bf16.mxu0 %v2027
    %2782 = vmatpush1.bf16.msra.mxu0 %v2026
    %2783 = vmatprep.subr.bf16.mxu0 0
    %2784 = vmatpush1.bf16.msra.mxu0 0
    %2785 = vmatprep.subr.bf16.mxu0 0
    %2786 = vmatpush1.bf16.msra.mxu0 0
    %2787 = vmatprep.subr.bf16.mxu0 0
    %2788 = vmatpush1.bf16.msra.mxu0 0
    %2789 = vmatprep.subr.bf16.mxu0 0
    %2790 = vmatpush1.bf16.msra.mxu0 0
    %2791 = vmatprep.subr.bf16.mxu0 0
    %2792 = vmatpush1.bf16.msra.mxu0 0
    %2793 = vmatprep.subr.bf16.mxu0 0
    %2794 = vmatpush1.bf16.msra.mxu0 0
    %2795 = vmatprep.subr.bf16.mxu0 0
    %2796 = vmatpush1.bf16.msra.mxu0 0
    %2797 = vmatprep.subr.bf16.mxu0 0
    %2798 = vmatpush1.bf16.msra.mxu0 0
    %2799 = vmatprep.mubr.bf16.mxu0 0
    %2800 = vmatmul.mubr.bf16.gmra.mrb[0].mxu0 %v2725
    %v2801 = vpop.f32.mrb[0].mxu0
    %v2802 = vadd.f32 0.0, %v2801
    %v2803 = vpop.f32.mrb[0].mxu0
    %v2804 = vadd.f32 0.0, %v2803
    %v2805 = vpop.f32.mrb[0].mxu0
    %v2806 = vpop.f32.mrb[0].mxu0
    %2807 = vdwg.mxu0
    %v2808 = vadd.f32 %v1821, %v2761
    %v2809 = vadd.f32 %v1823, %v2763
    %v2810 = vadd.f32 %v1862, %v2802
    %v2811 = vadd.f32 %v1864, %v2804
    %v2812 = vxor.u32 %v2808, 2147483648
    %v2813 = vmul.f32 %v2812, 1.442695
    %v2814 = vpow.pop %v2813
    %v2815 = vadd.f32 %v2814, 1.0
    %v2816 = vrcp.pop %v2815
    %v2817 = vmul.f32 1.0, %v2816
    %v2818 = vxor.u32 %v2809, 2147483648
    %v2819 = vmul.f32 %v2818, 1.442695
    %v2820 = vpow.pop %v2819
    %v2821 = vadd.f32 %v2820, 1.0
    %v2822 = vrcp.pop %v2821
    %v2823 = vmul.f32 1.0, %v2822
    %v2824 = vtanh.pop %v2810
    %v2825 = vxor.u32 %v2811, 2147483648
    %v2826 = vmul.f32 %v2825, 1.442695
    %v2827 = vpow.pop %v2826
    %v2828 = vadd.f32 %v2827, 1.0
    %v2829 = vrcp.pop %v2828
    %v2830 = vmul.f32 1.0, %v2829
    %v2831 = vmul.f32 %v2823, %v2722
    %v2832 = vmul.f32 %v2817, %v2824
    %v2833 = vadd.f32 %v2831, %v2832
    %v2834 = vtanh.pop %v2833
    %v2835 = vmul.f32 %v2830, %v2834
    %v2836 = vpack.c.bf16 %v2835, %v2835
    %2837 = vmatprep.subr.bf16.mxu0 %v1997
    %2838 = vmatpush1.bf16.msra.mxu0 %v1996
    %2839 = vmatprep.subr.bf16.mxu0 %v2001
    %2840 = vmatpush1.bf16.msra.mxu0 %v2000
    %2841 = vmatprep.subr.bf16.mxu0 %v2005
    %2842 = vmatpush1.bf16.msra.mxu0 %v2004
    %2843 = vmatprep.subr.bf16.mxu0 %v2009
    %2844 = vmatpush1.bf16.msra.mxu0 %v2008
    %2845 = vmatprep.subr.bf16.mxu0 %v2013
    %2846 = vmatpush1.bf16.msra.mxu0 %v2012
    %2847 = vmatprep.subr.bf16.mxu0 %v2017
    %2848 = vmatpush1.bf16.msra.mxu0 %v2016
    %2849 = vmatprep.subr.bf16.mxu0 %v2021
    %2850 = vmatpush1.bf16.msra.mxu0 %v2020
    %2851 = vmatprep.subr.bf16.mxu0 %v2025
    %2852 = vmatpush1.bf16.msra.mxu0 %v2024
    %2853 = vmatprep.subr.bf16.mxu0 0
    %2854 = vmatpush1.bf16.msra.mxu0 0
    %2855 = vmatprep.subr.bf16.mxu0 0
    %2856 = vmatpush1.bf16.msra.mxu0 0
    %2857 = vmatprep.subr.bf16.mxu0 0
    %2858 = vmatpush1.bf16.msra.mxu0 0
    %2859 = vmatprep.subr.bf16.mxu0 0
    %2860 = vmatpush1.bf16.msra.mxu0 0
    %2861 = vmatprep.subr.bf16.mxu0 0
    %2862 = vmatpush1.bf16.msra.mxu0 0
    %2863 = vmatprep.subr.bf16.mxu0 0
    %2864 = vmatpush1.bf16.msra.mxu0 0
    %2865 = vmatprep.subr.bf16.mxu0 0
    %2866 = vmatpush1.bf16.msra.mxu0 0
    %2867 = vmatprep.subr.bf16.mxu0 0
    %2868 = vmatpush1.bf16.msra.mxu0 0
    %2869 = vmatprep.mubr.bf16.mxu0 0
    %2870 = vmatmul.mubr.bf16.gmra.mrb[0].mxu0 %v2836
    %v2871 = vpop.f32.mrb[0].mxu0
    %v2872 = vadd.f32 0.0, %v2871
    %v2873 = vpop.f32.mrb[0].mxu0
    %v2874 = vadd.f32 0.0, %v2873
    %v2875 = vpop.f32.mrb[0].mxu0
    %v2876 = vpop.f32.mrb[0].mxu0
    %2877 = vdwg.mxu0
    %2878 = vmatprep.subr.bf16.mxu0 %v1999
    %2879 = vmatpush1.bf16.msra.mxu0 %v1998
    %2880 = vmatprep.subr.bf16.mxu0 %v2003
    %2881 = vmatpush1.bf16.msra.mxu0 %v2002
    %2882 = vmatprep.subr.bf16.mxu0 %v2007
    %2883 = vmatpush1.bf16.msra.mxu0 %v2006
    %2884 = vmatprep.subr.bf16.mxu0 %v2011
    %2885 = vmatpush1.bf16.msra.mxu0 %v2010
    %2886 = vmatprep.subr.bf16.mxu0 %v2015
    %2887 = vmatpush1.bf16.msra.mxu0 %v2014
    %2888 = vmatprep.subr.bf16.mxu0 %v2019
    %2889 = vmatpush1.bf16.msra.mxu0 %v2018
    %2890 = vmatprep.subr.bf16.mxu0 %v2023
    %2891 = vmatpush1.bf16.msra.mxu0 %v2022
    %2892 = vmatprep.subr.bf16.mxu0 %v2027
    %2893 = vmatpush1.bf16.msra.mxu0 %v2026
    %2894 = vmatprep.subr.bf16.mxu0 0
    %2895 = vmatpush1.bf16.msra.mxu0 0
    %2896 = vmatprep.subr.bf16.mxu0 0
    %2897 = vmatpush1.bf16.msra.mxu0 0
    %2898 = vmatprep.subr.bf16.mxu0 0
    %2899 = vmatpush1.bf16.msra.mxu0 0
    %2900 = vmatprep.subr.bf16.mxu0 0
    %2901 = vmatpush1.bf16.msra.mxu0 0
    %2902 = vmatprep.subr.bf16.mxu0 0
    %2903 = vmatpush1.bf16.msra.mxu0 0
    %2904 = vmatprep.subr.bf16.mxu0 0
    %2905 = vmatpush1.bf16.msra.mxu0 0
    %2906 = vmatprep.subr.bf16.mxu0 0
    %2907 = vmatpush1.bf16.msra.mxu0 0
    %2908 = vmatprep.subr.bf16.mxu0 0
    %2909 = vmatpush1.bf16.msra.mxu0 0
    %2910 = vmatprep.mubr.bf16.mxu0 0
    %2911 = vmatmul.mubr.bf16.gmra.mrb[0].mxu0 %v2836
    %v2912 = vpop.f32.mrb[0].mxu0
    %v2913 = vadd.f32 0.0, %v2912
    %v2914 = vpop.f32.mrb[0].mxu0
    %v2915 = vadd.f32 0.0, %v2914
    %v2916 = vpop.f32.mrb[0].mxu0
    %v2917 = vpop.f32.mrb[0].mxu0
    %2918 = vdwg.mxu0
    %v2919 = vadd.f32 %v1821, %v2872
    %v2920 = vadd.f32 %v1823, %v2874
    %v2921 = vadd.f32 %v1862, %v2913
    %v2922 = vadd.f32 %v1864, %v2915
    %v2923 = vxor.u32 %v2919, 2147483648
    %v2924 = vmul.f32 %v2923, 1.442695
    %v2925 = vpow.pop %v2924
    %v2926 = vadd.f32 %v2925, 1.0
    %v2927 = vrcp.pop %v2926
    %v2928 = vmul.f32 1.0, %v2927
    %v2929 = vxor.u32 %v2920, 2147483648
    %v2930 = vmul.f32 %v2929, 1.442695
    %v2931 = vpow.pop %v2930
    %v2932 = vadd.f32 %v2931, 1.0
    %v2933 = vrcp.pop %v2932
    %v2934 = vmul.f32 1.0, %v2933
    %v2935 = vtanh.pop %v2921
    %v2936 = vxor.u32 %v2922, 2147483648
    %v2937 = vmul.f32 %v2936, 1.442695
    %v2938 = vpow.pop %v2937
    %v2939 = vadd.f32 %v2938, 1.0
    %v2940 = vrcp.pop %v2939
    %v2941 = vmul.f32 1.0, %v2940
    %v2942 = vmul.f32 %v2934, %v2833
    %v2943 = vmul.f32 %v2928, %v2935
    %v2944 = vadd.f32 %v2942, %v2943
    %v2945 = vtanh.pop %v2944
    %v2946 = vmul.f32 %v2941, %v2945
    %v2947 = vpack.c.bf16 %v2280, %v2169
    %v2948 = vpack.c.bf16 %v2502, %v2391
    %v2949 = vpack.c.bf16 %v2724, %v2613
    %v2950 = vpack.c.bf16 %v2946, %v2835
    %v2951 = vld [vmem:[#allocation12] sm:$0xf]
    %v2952 = vld [vmem:[#allocation12 + $0x4] sm:$0xf]
    %v2953 = vld [vmem:[#allocation12 + $0x8] sm:$0xf]
    %v2954 = vld [vmem:[#allocation12 + $0xc] sm:$0xf]
    %v2955 = vld [vmem:[#allocation12 + $0x10] sm:$0xf]
    %v2956 = vld [vmem:[#allocation12 + $0x14] sm:$0xf]
    %v2957 = vld [vmem:[#allocation12 + $0x18] sm:$0xf]
    %v2958 = vld [vmem:[#allocation12 + $0x1c] sm:$0xf]
    %v2959 = vld [vmem:[#allocation12 + $0x20] sm:$0xf]
    %v2960 = vld [vmem:[#allocation12 + $0x24] sm:$0xf]
    %v2961 = vld [vmem:[#allocation12 + $0x28] sm:$0xf]
    %v2962 = vld [vmem:[#allocation12 + $0x2c] sm:$0xf]
    %v2963 = vld [vmem:[#allocation12 + $0x30] sm:$0xf]
    %v2964 = vld [vmem:[#allocation12 + $0x34] sm:$0xf]
    %v2965 = vld [vmem:[#allocation12 + $0x38] sm:$0xf]
    %v2966 = vld [vmem:[#allocation12 + $0x3c] sm:$0xf]
    %v2967 = vld [vmem:[%s8] sm:$0x1]
    %v2969 = vlaneseq
    %v2970 = vshrl.u32 %v2969, 7
    %v2971 = vsub.s32 0, %v2970
    %v2972 = vrot.slane %v2967, %v2971
    %v2990 = vunpack.c.l.b16 %v2951
    %v2991 = vunpack.c.l.b16 %v2952
    %v2992 = vunpack.c.l.b16 %v2953
    %v2993 = vunpack.c.l.b16 %v2954
    %v2994 = vunpack.c.l.b16 %v2955
    %v2995 = vunpack.c.l.b16 %v2956
    %v2996 = vunpack.c.l.b16 %v2957
    %v2997 = vunpack.c.l.b16 %v2958
    %v2998 = vunpack.c.l.b16 %v2959
    %v2999 = vunpack.c.l.b16 %v2960
    %v3000 = vunpack.c.l.b16 %v2961
    %v3001 = vunpack.c.l.b16 %v2962
    %v3002 = vunpack.c.l.b16 %v2963
    %v3003 = vunpack.c.l.b16 %v2964
    %v3004 = vunpack.c.l.b16 %v2965
    %v3005 = vunpack.c.l.b16 %v2966
    %v3006 = vpack.c.b16 %v2991, %v2990
    %v3007 = vpack.c.b16 %v2993, %v2992
    %v3008 = vpack.c.b16 %v2995, %v2994
    %v3009 = vpack.c.b16 %v2997, %v2996
    %v3010 = vpack.c.b16 %v2999, %v2998
    %v3011 = vpack.c.b16 %v3001, %v3000
    %v3012 = vpack.c.b16 %v3003, %v3002
    %v3013 = vpack.c.b16 %v3005, %v3004
    %3022 = vmatprep.subr.bf16.mxu0 0
    %3023 = vmatpush1.bf16.msra.mxu0 %v3006
    %3024 = vmatprep.subr.bf16.mxu0 0
    %3025 = vmatpush1.bf16.msra.mxu0 %v3007
    %3026 = vmatprep.subr.bf16.mxu0 0
    %3027 = vmatpush1.bf16.msra.mxu0 %v3008
    %3028 = vmatprep.subr.bf16.mxu0 0
    %3029 = vmatpush1.bf16.msra.mxu0 %v3009
    %3030 = vmatprep.subr.bf16.mxu0 0
    %3031 = vmatpush1.bf16.msra.mxu0 %v3010
    %3032 = vmatprep.subr.bf16.mxu0 0
    %3033 = vmatpush1.bf16.msra.mxu0 %v3011
    %3034 = vmatprep.subr.bf16.mxu0 0
    %3035 = vmatpush1.bf16.msra.mxu0 %v3012
    %3036 = vmatprep.subr.bf16.mxu0 0
    %3037 = vmatpush1.bf16.msra.mxu0 %v3013
    %3038 = vmatprep.subr.bf16.mxu0 0
    %3039 = vmatpush1.bf16.msra.mxu0 0
    %3040 = vmatprep.subr.bf16.mxu0 0
    %3041 = vmatpush1.bf16.msra.mxu0 0
    %3042 = vmatprep.subr.bf16.mxu0 0
    %3043 = vmatpush1.bf16.msra.mxu0 0
    %3044 = vmatprep.subr.bf16.mxu0 0
    %3045 = vmatpush1.bf16.msra.mxu0 0
    %3046 = vmatprep.subr.bf16.mxu0 0
    %3047 = vmatpush1.bf16.msra.mxu0 0
    %3048 = vmatprep.subr.bf16.mxu0 0
    %3049 = vmatpush1.bf16.msra.mxu0 0
    %3050 = vmatprep.subr.bf16.mxu0 0
    %3051 = vmatpush1.bf16.msra.mxu0 0
    %3052 = vmatprep.subr.bf16.mxu0 0
    %3053 = vmatpush1.bf16.msra.mxu0 0
    %3054 = vmatprep.mubr.bf16.mxu0 0
    %3055 = vmatmul.mubr.bf16.gmra.mrb[0].mxu0 %v2947
    %v3056 = vpop.f32.mrb[0].mxu0
    %v3057 = vadd.f32 %v2972, %v3056
    %v3058 = vpop.f32.mrb[0].mxu0
    %v3059 = vpop.f32.mrb[0].mxu0
    %v3060 = vadd.f32 %v2972, %v3059
    %v3061 = vpop.f32.mrb[0].mxu0
    %3062 = vmatprep.mubr.bf16.mxu0 0
    %3063 = vmatmul.mubr.bf16.gmra.mrb[0].mxu0 %v2948
    %v3064 = vpop.f32.mrb[0].mxu0
    %v3065 = vadd.f32 %v2972, %v3064
    %v3066 = vpop.f32.mrb[0].mxu0
    %v3067 = vpop.f32.mrb[0].mxu0
    %v3068 = vadd.f32 %v2972, %v3067
    %v3069 = vpop.f32.mrb[0].mxu0
    %3070 = vmatprep.mubr.bf16.mxu0 0
    %3071 = vmatmul.mubr.bf16.gmra.mrb[0].mxu0 %v2949
    %v3072 = vpop.f32.mrb[0].mxu0
    %v3073 = vadd.f32 %v2972, %v3072
    %v3074 = vpop.f32.mrb[0].mxu0
    %v3075 = vpop.f32.mrb[0].mxu0
    %v3076 = vadd.f32 %v2972, %v3075
    %v3077 = vpop.f32.mrb[0].mxu0
    %3078 = vmatprep.mubr.bf16.mxu0 0
    %3079 = vmatmul.mubr.bf16.gmra.mrb[0].mxu0 %v2950
    %v3080 = vpop.f32.mrb[0].mxu0
    %v3081 = vadd.f32 %v2972, %v3080
    %v3082 = vpop.f32.mrb[0].mxu0
    %v3083 = vpop.f32.mrb[0].mxu0
    %v3084 = vadd.f32 %v2972, %v3083
    %v3085 = vpop.f32.mrb[0].mxu0
    %3086 = vdwg.mxu0
    %3087 = vst [vmem:[#allocation14] sm:$0xff] %v3057
    %3088 = vst [vmem:[#allocation14 + $0x8] sm:$0xff] %v3060
    %3089 = vst [vmem:[#allocation14 + $0x10] sm:$0xff] %v3065
    %3090 = vst [vmem:[#allocation14 + $0x18] sm:$0xff] %v3068
    %3091 = vst [vmem:[#allocation14 + $0x20] sm:$0xff] %v3073
    %3092 = vst [vmem:[#allocation14 + $0x28] sm:$0xff] %v3076
    %3093 = vst [vmem:[#allocation14 + $0x30] sm:$0xff] %v3081
    %3094 = vst [vmem:[#allocation14 + $0x38] sm:$0xff] %v3084
    // Predicated region
    $region62: #{tpu_custom_call.1} parent=1 // pred_check
      _
    $region63: #{tpu_custom_call.1} parent=1 // pred_check_branch
      %3096 = sbr.rel (0) target = $region65
    $region64: #{tpu_custom_call.1} parent=1 // pred_region
      %s3098 = ssub.s32 1024, 1024
      %3099 = vsyncadd [#allocation5], %s3098
      %s3100 = sshll.u32 [#allocation14], 4
      %s3101 = int_to_ptr.vmem [resolvable:$true] %s3100
      %3106 = dma.vmem_to_hbm [thread:$0]  %s3101, 1024, %s9, [#allocation5], 128, 128, 8
    $region65: #{tpu_custom_call.1} parent=1 // pred_fallthru
      _
    // Predicated region
    $region66: #{tpu_custom_call.1} parent=1 // pred_check
      _
    $region67: #{tpu_custom_call.1} parent=1 // pred_check_branch
      %3108 = sbr.rel (0) target = $region69
    $region68: #{tpu_custom_call.1} parent=1 // pred_region
      %3109 = dma.done [#allocation5], 1024
    $region69: #{tpu_custom_call.1} parent=1 // pred_fallthru
      _
    %3110 = vsyncpa [#allocation4], 1
    %3111 = vsyncpa [#allocation7], 1
    %3112 = vsyncpa [#allocation10], 1
    %3113 = vsyncpa [#allocation13], 1
    %3114 = vsyncpa [#allocation5], 1

</llo_original>
